<compile_context>
chip_gen: v7x
topology: tpu7x:2x2x1
jax: 0.10.0
libtpu: 0.0.40
codegen_flags: <defaults>
</compile_context>

<pallas_src>
import jax
import jax.numpy as jnp
from jax import lax
from jax.experimental import pallas as pl
from jax.experimental.pallas import tpu as pltpu

SELU_ALPHA = 1.6732632423543772848170429916717
SELU_SCALE = 1.0507009873554804934193349852946
BN_EPS = 1e-5


def _round_up(x, m):
    return (x + m - 1) // m * m


def _vmem_limit_bytes():
    """Scoped-VMEM budget derived from the device (v7x: 64 MiB/TC, v5e/v6e: 128 MiB)."""
    try:
        cap = int(pltpu.get_tpu_info().vmem_capacity_bytes)
        return max(16 * 1024 * 1024, min(cap // 2, 64 * 1024 * 1024))
    except Exception:  # conservative fallback if the query is unavailable
        return 32 * 1024 * 1024


def _build_combined_weight(conv_w, groups):
    """(C_out, C//G, 3,3,3) grouped weights -> (27, C, 8*C_out) merged per-tap matrix.

    Row block t = kd*9 + kh*3 + kw multiplies the input sampled at the ORIGINAL-grid
    padded offset (kd, kh, kw); columns are (parity pd,ph,pw, out-channel o).
    """
    C_out, Cg, KD, KH, KW = conv_w.shape
    G = groups
    Og = C_out // G
    C = Cg * G
    f32 = jnp.float32
    wg = jnp.transpose(conv_w.astype(f32).reshape(G, Og, Cg, KD, KH, KW),
                       (0, 2, 3, 4, 5, 1))                        # (G, Cg, 3,3,3, Og)
    wfull = jnp.einsum('gcdhwo,gk->gcdhwko', wg, jnp.eye(G, dtype=f32))
    wfull = wfull.reshape(C, KD, KH, KW, C_out)                   # block-diag over groups
    # parity tap-remap: map_[p, k, k'] = 1  iff  k' == 1 + (p - 1 + k) // 2
    map_ = jnp.array([[[1, 0, 0], [0, 1, 0], [0, 1, 0]],
                      [[0, 1, 0], [0, 1, 0], [0, 0, 1]]], dtype=f32)
    wbig = jnp.einsum('cdhwo,pdD,qhE,rwF->DEFcpqro', wfull, map_, map_, map_)
    return wbig.reshape(27, C, 8 * C_out)


def tconv_layer_forward(x, conv_w, conv_b, bn_gamma, bn_beta, groups=2):
    """x: (N, C, D, H, W) f32; conv_w: (C_out, C//groups, 3, 3, 3). Returns NCDHW f32."""
    N, C, D, H, W = x.shape
    C_out = conv_w.shape[0]
    assert conv_w.shape[2:] == (3, 3, 3), "specialised for 3x3x3 'same' conv"
    f32 = jnp.float32

    # ---- BatchNorm folded into an affine on the PRE-upsample tensor ------------
    # Nearest-x2 replication preserves per-channel mean and biased variance, so the
    # upsampled tensor's training-mode batch stats equal those of x.
    # TODO(synk): running_mean/var momentum update (training side effect) and
    # eval-mode BN (running stats) are not modeled.
    x_cl = jnp.transpose(x, (0, 2, 3, 4, 1)).astype(f32)          # (N, D, H, W, C)
    mean = jnp.mean(x_cl, axis=(0, 1, 2, 3))
    var = jnp.mean((x_cl - mean) ** 2, axis=(0, 1, 2, 3))
    scale = bn_gamma.astype(f32) * lax.rsqrt(var + BN_EPS)
    shift = bn_beta.astype(f32) - mean * scale
    xn = x_cl * scale + shift

    # ---- flattened, padded, channels-last layout fed straight to the kernel ----
    Dp2, Hp2, Wp2 = D + 2, H + 2, W + 2
    R = Hp2 * Wp2                  # rows of one padded (h, w) plane (incl. border rows)
    R8 = _round_up(R, 8)           # rows computed per (n, d) step (extra rows discarded)
    PAD0 = Wp2 + 1                 # max |row shift| of a (kh, kw) tap
    Rpad = _round_up(2 * PAD0 + R8, 8)

    xp = jnp.pad(xn, ((0, 0), (1, 1), (1, 1), (1, 1), (0, 0)))    # zero 'same' padding
    xflat = xp.reshape(N, Dp2, R, C)
    xflat = jnp.pad(xflat, ((0, 0), (0, 0), (PAD0, Rpad - PAD0 - R), (0, 0)))
    xflat = xflat.astype(jnp.bfloat16)                            # streamed operand bf16

    Ncol = 8 * C_out                                              # (parity, out-channel)
    NCOLP = _round_up(max(Ncol, 128), 128)                        # lane-dense output tile
    w3 = _build_combined_weight(conv_w, groups)                   # (27, C, Ncol) f32
    w3 = jnp.pad(w3, ((0, 0), (0, 0), (0, NCOLP - Ncol))).astype(jnp.bfloat16)
    brow = jnp.pad(jnp.tile(conv_b.astype(f32), 8), (0, NCOLP - Ncol)).reshape(1, NCOLP)

    def kernel(x0_ref, x1_ref, x2_ref, w_ref, b_ref, o_ref):
        # x*_ref: (1, 1, Rpad, C) bf16 -- padded depth slices d+0 / d+1 / d+2, with
        #         (h, w) flattened and PAD0 zero guard rows at each end.
        # w_ref:  (27, C, NCOLP) bf16 merged per-tap weights;  b_ref: (1, NCOLP) f32.
        # o_ref:  (1, 1, R8, NCOLP) f32 -- one padded (h, w) plane per (n, d).
        xs = (x0_ref, x1_ref, x2_ref)
        acc = jnp.zeros((R8, NCOLP), f32)
        for kd in range(3):                     # in-VMEM "im2col": 27 row-shifted
            for kh in range(3):                 # windows of the flattened plane,
                for kw in range(3):             # one sub-dot each, f32 accumulate.
                    off = PAD0 + (kh - 1) * Wp2 + (kw - 1)
                    a = xs[kd][0, 0, pl.ds(off, R8), :]
                    t = (kd * 3 + kh) * 3 + kw
                    acc = acc + jnp.dot(a, w_ref[t], preferred_element_type=f32)
        acc = acc + b_ref[...]                                     # conv bias
        neg = SELU_ALPHA * (jnp.exp(jnp.minimum(acc, 0.0)) - 1.0)  # bounded exp on EUP
        o_ref[0, 0] = (SELU_SCALE * jnp.where(acc > 0.0, acc, neg)).astype(o_ref.dtype)

    def x_spec(kd):
        return pl.BlockSpec((1, 1, Rpad, C),
                            lambda n, d, kd=kd: (n, d + kd, 0, 0))

    out = pl.pallas_call(
        kernel,
        out_shape=jax.ShapeDtypeStruct((N, D, R8, NCOLP), f32),
        grid=(N, D),
        in_specs=[x_spec(0), x_spec(1), x_spec(2),
                  # weight / bias blocks are grid-constant (fetched once, tiny here;
                  # at large C they would be worth single-buffering).
                  pl.BlockSpec((27, C, NCOLP), lambda n, d: (0, 0, 0)),
                  pl.BlockSpec((1, NCOLP), lambda n, d: (0, 0))],
        out_specs=pl.BlockSpec((1, 1, R8, NCOLP), lambda n, d: (n, d, 0, 0)),
        compiler_params=pltpu.CompilerParams(
            dimension_semantics=("parallel", "parallel"),
            vmem_limit_bytes=_vmem_limit_bytes()),
    )(xflat, xflat, xflat, w3, brow)

    # ---- drop padded rows/cols and scatter the 8 parities back to NCDHW --------
    # TODO(synk): the final transpose is one extra HBM pass over the 8x output; a
    # channels-last consumer (or fusing it into the next layer) would remove it.
    out = out[:, :, :R, :Ncol].reshape(N, D, Hp2, Wp2, 2, 2, 2, C_out)
    out = out[:, :, 1:H + 1, 1:W + 1]                              # valid (h, w) rows
    out = jnp.transpose(out, (0, 7, 1, 4, 2, 5, 3, 6))             # (N,o,D,pd,H,ph,W,pw)
    return out.reshape(N, C_out, 2 * D, 2 * H, 2 * W)


def reference_forward(x, conv_w, conv_b, bn_gamma, bn_beta, groups=2):
    """Plain-JAX reference matching the PyTorch module (training-mode BN), f32."""
    xu = jnp.repeat(jnp.repeat(jnp.repeat(x, 2, axis=2), 2, axis=3), 2, axis=4)
    mean = jnp.mean(xu, axis=(0, 2, 3, 4), keepdims=True)
    var = jnp.mean((xu - mean) ** 2, axis=(0, 2, 3, 4), keepdims=True)
    xn = (xu - mean) / jnp.sqrt(var + BN_EPS)
    xn = xn * bn_gamma.reshape(1, -1, 1, 1, 1) + bn_beta.reshape(1, -1, 1, 1, 1)
    y = lax.conv_general_dilated(
        xn, conv_w, window_strides=(1, 1, 1), padding=[(1, 1), (1, 1), (1, 1)],
        dimension_numbers=('NCDHW', 'OIDHW', 'NCDHW'), feature_group_count=groups)
    y = y + conv_b.reshape(1, -1, 1, 1, 1)
    return SELU_SCALE * jnp.where(y > 0, y, SELU_ALPHA * (jnp.exp(y) - 1.0))


if __name__ == "__main__":
    # Small shapes consistent with the module: N=2, C_in=4, C_out=4, D=H=W=4, groups=2.
    N, C_in, C_out, D, H, W, G = 2, 4, 4, 4, 4, 4, 2
    key = jax.random.PRNGKey(0)
    kx, kw, kb, kg, kbe = jax.random.split(key, 5)

    x = jax.random.normal(kx, (N, C_in, D, H, W), dtype=jnp.float32)
    conv_w = 0.1 * jax.random.normal(kw, (C_out, C_in // G, 3, 3, 3), dtype=jnp.float32)
    conv_b = 0.1 * jax.random.normal(kb, (C_out,), dtype=jnp.float32)
    bn_gamma = 1.0 + 0.1 * jax.random.normal(kg, (C_in,), dtype=jnp.float32)
    bn_beta = 0.1 * jax.random.normal(kbe, (C_in,), dtype=jnp.float32)

    out = tconv_layer_forward(x, conv_w, conv_b, bn_gamma, bn_beta, groups=G)
    out = jax.block_until_ready(out)

    ref = jax.block_until_ready(
        reference_forward(x, conv_w, conv_b, bn_gamma, bn_beta, groups=G))

    assert out.shape == (N, C_out, 2 * D, 2 * H, 2 * W), out.shape
    err = float(jnp.max(jnp.abs(out - ref)))
    # bf16 streaming operands with f32 accumulation: tolerance relaxed vs pure f32.
    assert jnp.allclose(out, ref, atol=5e-2, rtol=5e-2), err
    print("KERNEL_OK")
</pallas_src>

<mosaic_0001>
module attributes {stable_mosaic.version = 11 : i64} {
  func.func @kernel(%arg0: i32, %arg1: i32, %arg2: memref<1x1x56x4xbf16, #tpu.memory_space<vmem>>, %arg3: memref<1x1x56x4xbf16, #tpu.memory_space<vmem>>, %arg4: memref<1x1x56x4xbf16, #tpu.memory_space<vmem>>, %arg5: memref<27x4x128xbf16, #tpu.memory_space<vmem>>, %arg6: memref<1x128xf32, #tpu.memory_space<vmem>>, %arg7: memref<1x1x40x128xf32, #tpu.memory_space<vmem>>) attributes {dimension_semantics = [#tpu.dimension_semantics<parallel>, #tpu.dimension_semantics<parallel>], iteration_bounds = array<i64: 2, 4>, scalar_prefetch = 0 : i64, scratch_operands = 0 : i64, tpu.core_type = #tpu.core_type<tc>, window_params = [{transform_indices = @transform_0, window_bounds = array<i64: 1, 1, 56, 4>}, {transform_indices = @transform_1, window_bounds = array<i64: 1, 1, 56, 4>}, {transform_indices = @transform_2, window_bounds = array<i64: 1, 1, 56, 4>}, {pipeline_mode = #tpu.pipeline_mode<synchronous>, transform_indices = @transform_3, window_bounds = array<i64: 27, 4, 128>}, {pipeline_mode = #tpu.pipeline_mode<synchronous>, transform_indices = @transform_4, window_bounds = array<i64: 1, 128>}, {transform_indices = @transform_5, window_bounds = array<i64: 1, 1, 40, 128>}]} {
    %cst = arith.constant 0.000000e+00 : f32
    %0 = vector.broadcast %cst : f32 to vector<40x128xf32>
    %c0 = arith.constant 0 : index
    %c0_0 = arith.constant 0 : index
    %c0_1 = arith.constant 0 : index
    %c0_2 = arith.constant 0 : index
    %1 = vector.load %arg2[%c0, %c0_0, %c0_1, %c0_2] : memref<1x1x56x4xbf16, #tpu.memory_space<vmem>>, vector<1x1x40x4xbf16>
    %2 = vector.shape_cast %1 : vector<1x1x40x4xbf16> to vector<40x4xbf16>
    %c0_3 = arith.constant 0 : index
    %c0_4 = arith.constant 0 : index
    %c0_5 = arith.constant 0 : index
    %3 = vector.load %arg5[%c0_3, %c0_4, %c0_5] : memref<27x4x128xbf16, #tpu.memory_space<vmem>>, vector<1x4x128xbf16>
    %4 = vector.shape_cast %3 : vector<1x4x128xbf16> to vector<4x128xbf16>
    %cst_6 = arith.constant dense<0.000000e+00> : vector<40x128xf32>
    %5 = tpu.matmul %2, %4, %cst_6 {dimension_numbers = #tpu.dot_dimension_numbers<[1], [0], [0], [1], [0, 0, 1, 1], [], []>} : vector<40x4xbf16>, vector<4x128xbf16>, vector<40x128xf32> -> vector<40x128xf32>
    %6 = arith.addf %0, %5 : vector<40x128xf32>
    %c0_7 = arith.constant 0 : index
    %c0_8 = arith.constant 0 : index
    %c1 = arith.constant 1 : index
    %c0_9 = arith.constant 0 : index
    %7 = vector.load %arg2[%c0_7, %c0_8, %c1, %c0_9] : memref<1x1x56x4xbf16, #tpu.memory_space<vmem>>, vector<1x1x40x4xbf16>
    %8 = vector.shape_cast %7 : vector<1x1x40x4xbf16> to vector<40x4xbf16>
    %c1_10 = arith.constant 1 : index
    %c0_11 = arith.constant 0 : index
    %c0_12 = arith.constant 0 : index
    %9 = vector.load %arg5[%c1_10, %c0_11, %c0_12] : memref<27x4x128xbf16, #tpu.memory_space<vmem>>, vector<1x4x128xbf16>
    %10 = vector.shape_cast %9 : vector<1x4x128xbf16> to vector<4x128xbf16>
    %cst_13 = arith.constant dense<0.000000e+00> : vector<40x128xf32>
    %11 = tpu.matmul %8, %10, %cst_13 {dimension_numbers = #tpu.dot_dimension_numbers<[1], [0], [0], [1], [0, 0, 1, 1], [], []>} : vector<40x4xbf16>, vector<4x128xbf16>, vector<40x128xf32> -> vector<40x128xf32>
    %12 = arith.addf %6, %11 : vector<40x128xf32>
    %c0_14 = arith.constant 0 : index
    %c0_15 = arith.constant 0 : index
    %c2 = arith.constant 2 : index
    %c0_16 = arith.constant 0 : index
    %13 = vector.load %arg2[%c0_14, %c0_15, %c2, %c0_16] : memref<1x1x56x4xbf16, #tpu.memory_space<vmem>>, vector<1x1x40x4xbf16>
    %14 = vector.shape_cast %13 : vector<1x1x40x4xbf16> to vector<40x4xbf16>
    %c2_17 = arith.constant 2 : index
    %c0_18 = arith.constant 0 : index
    %c0_19 = arith.constant 0 : index
    %15 = vector.load %arg5[%c2_17, %c0_18, %c0_19] : memref<27x4x128xbf16, #tpu.memory_space<vmem>>, vector<1x4x128xbf16>
    %16 = vector.shape_cast %15 : vector<1x4x128xbf16> to vector<4x128xbf16>
    %cst_20 = arith.constant dense<0.000000e+00> : vector<40x128xf32>
    %17 = tpu.matmul %14, %16, %cst_20 {dimension_numbers = #tpu.dot_dimension_numbers<[1], [0], [0], [1], [0, 0, 1, 1], [], []>} : vector<40x4xbf16>, vector<4x128xbf16>, vector<40x128xf32> -> vector<40x128xf32>
    %18 = arith.addf %12, %17 : vector<40x128xf32>
    %c0_21 = arith.constant 0 : index
    %c0_22 = arith.constant 0 : index
    %c6 = arith.constant 6 : index
    %c0_23 = arith.constant 0 : index
    %19 = vector.load %arg2[%c0_21, %c0_22, %c6, %c0_23] : memref<1x1x56x4xbf16, #tpu.memory_space<vmem>>, vector<1x1x40x4xbf16>
    %20 = vector.shape_cast %19 : vector<1x1x40x4xbf16> to vector<40x4xbf16>
    %c3 = arith.constant 3 : index
    %c0_24 = arith.constant 0 : index
    %c0_25 = arith.constant 0 : index
    %21 = vector.load %arg5[%c3, %c0_24, %c0_25] : memref<27x4x128xbf16, #tpu.memory_space<vmem>>, vector<1x4x128xbf16>
    %22 = vector.shape_cast %21 : vector<1x4x128xbf16> to vector<4x128xbf16>
    %cst_26 = arith.constant dense<0.000000e+00> : vector<40x128xf32>
    %23 = tpu.matmul %20, %22, %cst_26 {dimension_numbers = #tpu.dot_dimension_numbers<[1], [0], [0], [1], [0, 0, 1, 1], [], []>} : vector<40x4xbf16>, vector<4x128xbf16>, vector<40x128xf32> -> vector<40x128xf32>
    %24 = arith.addf %18, %23 : vector<40x128xf32>
    %c0_27 = arith.constant 0 : index
    %c0_28 = arith.constant 0 : index
    %c7 = arith.constant 7 : index
    %c0_29 = arith.constant 0 : index
    %25 = vector.load %arg2[%c0_27, %c0_28, %c7, %c0_29] : memref<1x1x56x4xbf16, #tpu.memory_space<vmem>>, vector<1x1x40x4xbf16>
    %26 = vector.shape_cast %25 : vector<1x1x40x4xbf16> to vector<40x4xbf16>
    %c4 = arith.constant 4 : index
    %c0_30 = arith.constant 0 : index
    %c0_31 = arith.constant 0 : index
    %27 = vector.load %arg5[%c4, %c0_30, %c0_31] : memref<27x4x128xbf16, #tpu.memory_space<vmem>>, vector<1x4x128xbf16>
    %28 = vector.shape_cast %27 : vector<1x4x128xbf16> to vector<4x128xbf16>
    %cst_32 = arith.constant dense<0.000000e+00> : vector<40x128xf32>
    %29 = tpu.matmul %26, %28, %cst_32 {dimension_numbers = #tpu.dot_dimension_numbers<[1], [0], [0], [1], [0, 0, 1, 1], [], []>} : vector<40x4xbf16>, vector<4x128xbf16>, vector<40x128xf32> -> vector<40x128xf32>
    %30 = arith.addf %24, %29 : vector<40x128xf32>
    %c0_33 = arith.constant 0 : index
    %c0_34 = arith.constant 0 : index
    %c8 = arith.constant 8 : index
    %c0_35 = arith.constant 0 : index
    %31 = vector.load %arg2[%c0_33, %c0_34, %c8, %c0_35] : memref<1x1x56x4xbf16, #tpu.memory_space<vmem>>, vector<1x1x40x4xbf16>
    %32 = vector.shape_cast %31 : vector<1x1x40x4xbf16> to vector<40x4xbf16>
    %c5 = arith.constant 5 : index
    %c0_36 = arith.constant 0 : index
    %c0_37 = arith.constant 0 : index
    %33 = vector.load %arg5[%c5, %c0_36, %c0_37] : memref<27x4x128xbf16, #tpu.memory_space<vmem>>, vector<1x4x128xbf16>
    %34 = vector.shape_cast %33 : vector<1x4x128xbf16> to vector<4x128xbf16>
    %cst_38 = arith.constant dense<0.000000e+00> : vector<40x128xf32>
    %35 = tpu.matmul %32, %34, %cst_38 {dimension_numbers = #tpu.dot_dimension_numbers<[1], [0], [0], [1], [0, 0, 1, 1], [], []>} : vector<40x4xbf16>, vector<4x128xbf16>, vector<40x128xf32> -> vector<40x128xf32>
    %36 = arith.addf %30, %35 : vector<40x128xf32>
    %c0_39 = arith.constant 0 : index
    %c0_40 = arith.constant 0 : index
    %c12 = arith.constant 12 : index
    %c0_41 = arith.constant 0 : index
    %37 = vector.load %arg2[%c0_39, %c0_40, %c12, %c0_41] : memref<1x1x56x4xbf16, #tpu.memory_space<vmem>>, vector<1x1x40x4xbf16>
    %38 = vector.shape_cast %37 : vector<1x1x40x4xbf16> to vector<40x4xbf16>
    %c6_42 = arith.constant 6 : index
    %c0_43 = arith.constant 0 : index
    %c0_44 = arith.constant 0 : index
    %39 = vector.load %arg5[%c6_42, %c0_43, %c0_44] : memref<27x4x128xbf16, #tpu.memory_space<vmem>>, vector<1x4x128xbf16>
    %40 = vector.shape_cast %39 : vector<1x4x128xbf16> to vector<4x128xbf16>
    %cst_45 = arith.constant dense<0.000000e+00> : vector<40x128xf32>
    %41 = tpu.matmul %38, %40, %cst_45 {dimension_numbers = #tpu.dot_dimension_numbers<[1], [0], [0], [1], [0, 0, 1, 1], [], []>} : vector<40x4xbf16>, vector<4x128xbf16>, vector<40x128xf32> -> vector<40x128xf32>
    %42 = arith.addf %36, %41 : vector<40x128xf32>
    %c0_46 = arith.constant 0 : index
    %c0_47 = arith.constant 0 : index
    %c13 = arith.constant 13 : index
    %c0_48 = arith.constant 0 : index
    %43 = vector.load %arg2[%c0_46, %c0_47, %c13, %c0_48] : memref<1x1x56x4xbf16, #tpu.memory_space<vmem>>, vector<1x1x40x4xbf16>
    %44 = vector.shape_cast %43 : vector<1x1x40x4xbf16> to vector<40x4xbf16>
    %c7_49 = arith.constant 7 : index
    %c0_50 = arith.constant 0 : index
    %c0_51 = arith.constant 0 : index
    %45 = vector.load %arg5[%c7_49, %c0_50, %c0_51] : memref<27x4x128xbf16, #tpu.memory_space<vmem>>, vector<1x4x128xbf16>
    %46 = vector.shape_cast %45 : vector<1x4x128xbf16> to vector<4x128xbf16>
    %cst_52 = arith.constant dense<0.000000e+00> : vector<40x128xf32>
    %47 = tpu.matmul %44, %46, %cst_52 {dimension_numbers = #tpu.dot_dimension_numbers<[1], [0], [0], [1], [0, 0, 1, 1], [], []>} : vector<40x4xbf16>, vector<4x128xbf16>, vector<40x128xf32> -> vector<40x128xf32>
    %48 = arith.addf %42, %47 : vector<40x128xf32>
    %c0_53 = arith.constant 0 : index
    %c0_54 = arith.constant 0 : index
    %c14 = arith.constant 14 : index
    %c0_55 = arith.constant 0 : index
    %49 = vector.load %arg2[%c0_53, %c0_54, %c14, %c0_55] : memref<1x1x56x4xbf16, #tpu.memory_space<vmem>>, vector<1x1x40x4xbf16>
    %50 = vector.shape_cast %49 : vector<1x1x40x4xbf16> to vector<40x4xbf16>
    %c8_56 = arith.constant 8 : index
    %c0_57 = arith.constant 0 : index
    %c0_58 = arith.constant 0 : index
    %51 = vector.load %arg5[%c8_56, %c0_57, %c0_58] : memref<27x4x128xbf16, #tpu.memory_space<vmem>>, vector<1x4x128xbf16>
    %52 = vector.shape_cast %51 : vector<1x4x128xbf16> to vector<4x128xbf16>
    %cst_59 = arith.constant dense<0.000000e+00> : vector<40x128xf32>
    %53 = tpu.matmul %50, %52, %cst_59 {dimension_numbers = #tpu.dot_dimension_numbers<[1], [0], [0], [1], [0, 0, 1, 1], [], []>} : vector<40x4xbf16>, vector<4x128xbf16>, vector<40x128xf32> -> vector<40x128xf32>
    %54 = arith.addf %48, %53 : vector<40x128xf32>
    %c0_60 = arith.constant 0 : index
    %c0_61 = arith.constant 0 : index
    %c0_62 = arith.constant 0 : index
    %c0_63 = arith.constant 0 : index
    %55 = vector.load %arg3[%c0_60, %c0_61, %c0_62, %c0_63] : memref<1x1x56x4xbf16, #tpu.memory_space<vmem>>, vector<1x1x40x4xbf16>
    %56 = vector.shape_cast %55 : vector<1x1x40x4xbf16> to vector<40x4xbf16>
    %c9 = arith.constant 9 : index
    %c0_64 = arith.constant 0 : index
    %c0_65 = arith.constant 0 : index
    %57 = vector.load %arg5[%c9, %c0_64, %c0_65] : memref<27x4x128xbf16, #tpu.memory_space<vmem>>, vector<1x4x128xbf16>
    %58 = vector.shape_cast %57 : vector<1x4x128xbf16> to vector<4x128xbf16>
    %cst_66 = arith.constant dense<0.000000e+00> : vector<40x128xf32>
    %59 = tpu.matmul %56, %58, %cst_66 {dimension_numbers = #tpu.dot_dimension_numbers<[1], [0], [0], [1], [0, 0, 1, 1], [], []>} : vector<40x4xbf16>, vector<4x128xbf16>, vector<40x128xf32> -> vector<40x128xf32>
    %60 = arith.addf %54, %59 : vector<40x128xf32>
    %c0_67 = arith.constant 0 : index
    %c0_68 = arith.constant 0 : index
    %c1_69 = arith.constant 1 : index
    %c0_70 = arith.constant 0 : index
    %61 = vector.load %arg3[%c0_67, %c0_68, %c1_69, %c0_70] : memref<1x1x56x4xbf16, #tpu.memory_space<vmem>>, vector<1x1x40x4xbf16>
    %62 = vector.shape_cast %61 : vector<1x1x40x4xbf16> to vector<40x4xbf16>
    %c10 = arith.constant 10 : index
    %c0_71 = arith.constant 0 : index
    %c0_72 = arith.constant 0 : index
    %63 = vector.load %arg5[%c10, %c0_71, %c0_72] : memref<27x4x128xbf16, #tpu.memory_space<vmem>>, vector<1x4x128xbf16>
    %64 = vector.shape_cast %63 : vector<1x4x128xbf16> to vector<4x128xbf16>
    %cst_73 = arith.constant dense<0.000000e+00> : vector<40x128xf32>
    %65 = tpu.matmul %62, %64, %cst_73 {dimension_numbers = #tpu.dot_dimension_numbers<[1], [0], [0], [1], [0, 0, 1, 1], [], []>} : vector<40x4xbf16>, vector<4x128xbf16>, vector<40x128xf32> -> vector<40x128xf32>
    %66 = arith.addf %60, %65 : vector<40x128xf32>
    %c0_74 = arith.constant 0 : index
    %c0_75 = arith.constant 0 : index
    %c2_76 = arith.constant 2 : index
    %c0_77 = arith.constant 0 : index
    %67 = vector.load %arg3[%c0_74, %c0_75, %c2_76, %c0_77] : memref<1x1x56x4xbf16, #tpu.memory_space<vmem>>, vector<1x1x40x4xbf16>
    %68 = vector.shape_cast %67 : vector<1x1x40x4xbf16> to vector<40x4xbf16>
    %c11 = arith.constant 11 : index
    %c0_78 = arith.constant 0 : index
    %c0_79 = arith.constant 0 : index
    %69 = vector.load %arg5[%c11, %c0_78, %c0_79] : memref<27x4x128xbf16, #tpu.memory_space<vmem>>, vector<1x4x128xbf16>
    %70 = vector.shape_cast %69 : vector<1x4x128xbf16> to vector<4x128xbf16>
    %cst_80 = arith.constant dense<0.000000e+00> : vector<40x128xf32>
    %71 = tpu.matmul %68, %70, %cst_80 {dimension_numbers = #tpu.dot_dimension_numbers<[1], [0], [0], [1], [0, 0, 1, 1], [], []>} : vector<40x4xbf16>, vector<4x128xbf16>, vector<40x128xf32> -> vector<40x128xf32>
    %72 = arith.addf %66, %71 : vector<40x128xf32>
    %c0_81 = arith.constant 0 : index
    %c0_82 = arith.constant 0 : index
    %c6_83 = arith.constant 6 : index
    %c0_84 = arith.constant 0 : index
    %73 = vector.load %arg3[%c0_81, %c0_82, %c6_83, %c0_84] : memref<1x1x56x4xbf16, #tpu.memory_space<vmem>>, vector<1x1x40x4xbf16>
    %74 = vector.shape_cast %73 : vector<1x1x40x4xbf16> to vector<40x4xbf16>
    %c12_85 = arith.constant 12 : index
    %c0_86 = arith.constant 0 : index
    %c0_87 = arith.constant 0 : index
    %75 = vector.load %arg5[%c12_85, %c0_86, %c0_87] : memref<27x4x128xbf16, #tpu.memory_space<vmem>>, vector<1x4x128xbf16>
    %76 = vector.shape_cast %75 : vector<1x4x128xbf16> to vector<4x128xbf16>
    %cst_88 = arith.constant dense<0.000000e+00> : vector<40x128xf32>
    %77 = tpu.matmul %74, %76, %cst_88 {dimension_numbers = #tpu.dot_dimension_numbers<[1], [0], [0], [1], [0, 0, 1, 1], [], []>} : vector<40x4xbf16>, vector<4x128xbf16>, vector<40x128xf32> -> vector<40x128xf32>
    %78 = arith.addf %72, %77 : vector<40x128xf32>
    %c0_89 = arith.constant 0 : index
    %c0_90 = arith.constant 0 : index
    %c7_91 = arith.constant 7 : index
    %c0_92 = arith.constant 0 : index
    %79 = vector.load %arg3[%c0_89, %c0_90, %c7_91, %c0_92] : memref<1x1x56x4xbf16, #tpu.memory_space<vmem>>, vector<1x1x40x4xbf16>
    %80 = vector.shape_cast %79 : vector<1x1x40x4xbf16> to vector<40x4xbf16>
    %c13_93 = arith.constant 13 : index
    %c0_94 = arith.constant 0 : index
    %c0_95 = arith.constant 0 : index
    %81 = vector.load %arg5[%c13_93, %c0_94, %c0_95] : memref<27x4x128xbf16, #tpu.memory_space<vmem>>, vector<1x4x128xbf16>
    %82 = vector.shape_cast %81 : vector<1x4x128xbf16> to vector<4x128xbf16>
    %cst_96 = arith.constant dense<0.000000e+00> : vector<40x128xf32>
    %83 = tpu.matmul %80, %82, %cst_96 {dimension_numbers = #tpu.dot_dimension_numbers<[1], [0], [0], [1], [0, 0, 1, 1], [], []>} : vector<40x4xbf16>, vector<4x128xbf16>, vector<40x128xf32> -> vector<40x128xf32>
    %84 = arith.addf %78, %83 : vector<40x128xf32>
    %c0_97 = arith.constant 0 : index
    %c0_98 = arith.constant 0 : index
    %c8_99 = arith.constant 8 : index
    %c0_100 = arith.constant 0 : index
    %85 = vector.load %arg3[%c0_97, %c0_98, %c8_99, %c0_100] : memref<1x1x56x4xbf16, #tpu.memory_space<vmem>>, vector<1x1x40x4xbf16>
    %86 = vector.shape_cast %85 : vector<1x1x40x4xbf16> to vector<40x4xbf16>
    %c14_101 = arith.constant 14 : index
    %c0_102 = arith.constant 0 : index
    %c0_103 = arith.constant 0 : index
    %87 = vector.load %arg5[%c14_101, %c0_102, %c0_103] : memref<27x4x128xbf16, #tpu.memory_space<vmem>>, vector<1x4x128xbf16>
    %88 = vector.shape_cast %87 : vector<1x4x128xbf16> to vector<4x128xbf16>
    %cst_104 = arith.constant dense<0.000000e+00> : vector<40x128xf32>
    %89 = tpu.matmul %86, %88, %cst_104 {dimension_numbers = #tpu.dot_dimension_numbers<[1], [0], [0], [1], [0, 0, 1, 1], [], []>} : vector<40x4xbf16>, vector<4x128xbf16>, vector<40x128xf32> -> vector<40x128xf32>
    %90 = arith.addf %84, %89 : vector<40x128xf32>
    %c0_105 = arith.constant 0 : index
    %c0_106 = arith.constant 0 : index
    %c12_107 = arith.constant 12 : index
    %c0_108 = arith.constant 0 : index
    %91 = vector.load %arg3[%c0_105, %c0_106, %c12_107, %c0_108] : memref<1x1x56x4xbf16, #tpu.memory_space<vmem>>, vector<1x1x40x4xbf16>
    %92 = vector.shape_cast %91 : vector<1x1x40x4xbf16> to vector<40x4xbf16>
    %c15 = arith.constant 15 : index
    %c0_109 = arith.constant 0 : index
    %c0_110 = arith.constant 0 : index
    %93 = vector.load %arg5[%c15, %c0_109, %c0_110] : memref<27x4x128xbf16, #tpu.memory_space<vmem>>, vector<1x4x128xbf16>
    %94 = vector.shape_cast %93 : vector<1x4x128xbf16> to vector<4x128xbf16>
    %cst_111 = arith.constant dense<0.000000e+00> : vector<40x128xf32>
    %95 = tpu.matmul %92, %94, %cst_111 {dimension_numbers = #tpu.dot_dimension_numbers<[1], [0], [0], [1], [0, 0, 1, 1], [], []>} : vector<40x4xbf16>, vector<4x128xbf16>, vector<40x128xf32> -> vector<40x128xf32>
    %96 = arith.addf %90, %95 : vector<40x128xf32>
    %c0_112 = arith.constant 0 : index
    %c0_113 = arith.constant 0 : index
    %c13_114 = arith.constant 13 : index
    %c0_115 = arith.constant 0 : index
    %97 = vector.load %arg3[%c0_112, %c0_113, %c13_114, %c0_115] : memref<1x1x56x4xbf16, #tpu.memory_space<vmem>>, vector<1x1x40x4xbf16>
    %98 = vector.shape_cast %97 : vector<1x1x40x4xbf16> to vector<40x4xbf16>
    %c16 = arith.constant 16 : index
    %c0_116 = arith.constant 0 : index
    %c0_117 = arith.constant 0 : index
    %99 = vector.load %arg5[%c16, %c0_116, %c0_117] : memref<27x4x128xbf16, #tpu.memory_space<vmem>>, vector<1x4x128xbf16>
    %100 = vector.shape_cast %99 : vector<1x4x128xbf16> to vector<4x128xbf16>
    %cst_118 = arith.constant dense<0.000000e+00> : vector<40x128xf32>
    %101 = tpu.matmul %98, %100, %cst_118 {dimension_numbers = #tpu.dot_dimension_numbers<[1], [0], [0], [1], [0, 0, 1, 1], [], []>} : vector<40x4xbf16>, vector<4x128xbf16>, vector<40x128xf32> -> vector<40x128xf32>
    %102 = arith.addf %96, %101 : vector<40x128xf32>
    %c0_119 = arith.constant 0 : index
    %c0_120 = arith.constant 0 : index
    %c14_121 = arith.constant 14 : index
    %c0_122 = arith.constant 0 : index
    %103 = vector.load %arg3[%c0_119, %c0_120, %c14_121, %c0_122] : memref<1x1x56x4xbf16, #tpu.memory_space<vmem>>, vector<1x1x40x4xbf16>
    %104 = vector.shape_cast %103 : vector<1x1x40x4xbf16> to vector<40x4xbf16>
    %c17 = arith.constant 17 : index
    %c0_123 = arith.constant 0 : index
    %c0_124 = arith.constant 0 : index
    %105 = vector.load %arg5[%c17, %c0_123, %c0_124] : memref<27x4x128xbf16, #tpu.memory_space<vmem>>, vector<1x4x128xbf16>
    %106 = vector.shape_cast %105 : vector<1x4x128xbf16> to vector<4x128xbf16>
    %cst_125 = arith.constant dense<0.000000e+00> : vector<40x128xf32>
    %107 = tpu.matmul %104, %106, %cst_125 {dimension_numbers = #tpu.dot_dimension_numbers<[1], [0], [0], [1], [0, 0, 1, 1], [], []>} : vector<40x4xbf16>, vector<4x128xbf16>, vector<40x128xf32> -> vector<40x128xf32>
    %108 = arith.addf %102, %107 : vector<40x128xf32>
    %c0_126 = arith.constant 0 : index
    %c0_127 = arith.constant 0 : index
    %c0_128 = arith.constant 0 : index
    %c0_129 = arith.constant 0 : index
    %109 = vector.load %arg4[%c0_126, %c0_127, %c0_128, %c0_129] : memref<1x1x56x4xbf16, #tpu.memory_space<vmem>>, vector<1x1x40x4xbf16>
    %110 = vector.shape_cast %109 : vector<1x1x40x4xbf16> to vector<40x4xbf16>
    %c18 = arith.constant 18 : index
    %c0_130 = arith.constant 0 : index
    %c0_131 = arith.constant 0 : index
    %111 = vector.load %arg5[%c18, %c0_130, %c0_131] : memref<27x4x128xbf16, #tpu.memory_space<vmem>>, vector<1x4x128xbf16>
    %112 = vector.shape_cast %111 : vector<1x4x128xbf16> to vector<4x128xbf16>
    %cst_132 = arith.constant dense<0.000000e+00> : vector<40x128xf32>
    %113 = tpu.matmul %110, %112, %cst_132 {dimension_numbers = #tpu.dot_dimension_numbers<[1], [0], [0], [1], [0, 0, 1, 1], [], []>} : vector<40x4xbf16>, vector<4x128xbf16>, vector<40x128xf32> -> vector<40x128xf32>
    %114 = arith.addf %108, %113 : vector<40x128xf32>
    %c0_133 = arith.constant 0 : index
    %c0_134 = arith.constant 0 : index
    %c1_135 = arith.constant 1 : index
    %c0_136 = arith.constant 0 : index
    %115 = vector.load %arg4[%c0_133, %c0_134, %c1_135, %c0_136] : memref<1x1x56x4xbf16, #tpu.memory_space<vmem>>, vector<1x1x40x4xbf16>
    %116 = vector.shape_cast %115 : vector<1x1x40x4xbf16> to vector<40x4xbf16>
    %c19 = arith.constant 19 : index
    %c0_137 = arith.constant 0 : index
    %c0_138 = arith.constant 0 : index
    %117 = vector.load %arg5[%c19, %c0_137, %c0_138] : memref<27x4x128xbf16, #tpu.memory_space<vmem>>, vector<1x4x128xbf16>
    %118 = vector.shape_cast %117 : vector<1x4x128xbf16> to vector<4x128xbf16>
    %cst_139 = arith.constant dense<0.000000e+00> : vector<40x128xf32>
    %119 = tpu.matmul %116, %118, %cst_139 {dimension_numbers = #tpu.dot_dimension_numbers<[1], [0], [0], [1], [0, 0, 1, 1], [], []>} : vector<40x4xbf16>, vector<4x128xbf16>, vector<40x128xf32> -> vector<40x128xf32>
    %120 = arith.addf %114, %119 : vector<40x128xf32>
    %c0_140 = arith.constant 0 : index
    %c0_141 = arith.constant 0 : index
    %c2_142 = arith.constant 2 : index
    %c0_143 = arith.constant 0 : index
    %121 = vector.load %arg4[%c0_140, %c0_141, %c2_142, %c0_143] : memref<1x1x56x4xbf16, #tpu.memory_space<vmem>>, vector<1x1x40x4xbf16>
    %122 = vector.shape_cast %121 : vector<1x1x40x4xbf16> to vector<40x4xbf16>
    %c20 = arith.constant 20 : index
    %c0_144 = arith.constant 0 : index
    %c0_145 = arith.constant 0 : index
    %123 = vector.load %arg5[%c20, %c0_144, %c0_145] : memref<27x4x128xbf16, #tpu.memory_space<vmem>>, vector<1x4x128xbf16>
    %124 = vector.shape_cast %123 : vector<1x4x128xbf16> to vector<4x128xbf16>
    %cst_146 = arith.constant dense<0.000000e+00> : vector<40x128xf32>
    %125 = tpu.matmul %122, %124, %cst_146 {dimension_numbers = #tpu.dot_dimension_numbers<[1], [0], [0], [1], [0, 0, 1, 1], [], []>} : vector<40x4xbf16>, vector<4x128xbf16>, vector<40x128xf32> -> vector<40x128xf32>
    %126 = arith.addf %120, %125 : vector<40x128xf32>
    %c0_147 = arith.constant 0 : index
    %c0_148 = arith.constant 0 : index
    %c6_149 = arith.constant 6 : index
    %c0_150 = arith.constant 0 : index
    %127 = vector.load %arg4[%c0_147, %c0_148, %c6_149, %c0_150] : memref<1x1x56x4xbf16, #tpu.memory_space<vmem>>, vector<1x1x40x4xbf16>
    %128 = vector.shape_cast %127 : vector<1x1x40x4xbf16> to vector<40x4xbf16>
    %c21 = arith.constant 21 : index
    %c0_151 = arith.constant 0 : index
    %c0_152 = arith.constant 0 : index
    %129 = vector.load %arg5[%c21, %c0_151, %c0_152] : memref<27x4x128xbf16, #tpu.memory_space<vmem>>, vector<1x4x128xbf16>
    %130 = vector.shape_cast %129 : vector<1x4x128xbf16> to vector<4x128xbf16>
    %cst_153 = arith.constant dense<0.000000e+00> : vector<40x128xf32>
    %131 = tpu.matmul %128, %130, %cst_153 {dimension_numbers = #tpu.dot_dimension_numbers<[1], [0], [0], [1], [0, 0, 1, 1], [], []>} : vector<40x4xbf16>, vector<4x128xbf16>, vector<40x128xf32> -> vector<40x128xf32>
    %132 = arith.addf %126, %131 : vector<40x128xf32>
    %c0_154 = arith.constant 0 : index
    %c0_155 = arith.constant 0 : index
    %c7_156 = arith.constant 7 : index
    %c0_157 = arith.constant 0 : index
    %133 = vector.load %arg4[%c0_154, %c0_155, %c7_156, %c0_157] : memref<1x1x56x4xbf16, #tpu.memory_space<vmem>>, vector<1x1x40x4xbf16>
    %134 = vector.shape_cast %133 : vector<1x1x40x4xbf16> to vector<40x4xbf16>
    %c22 = arith.constant 22 : index
    %c0_158 = arith.constant 0 : index
    %c0_159 = arith.constant 0 : index
    %135 = vector.load %arg5[%c22, %c0_158, %c0_159] : memref<27x4x128xbf16, #tpu.memory_space<vmem>>, vector<1x4x128xbf16>
    %136 = vector.shape_cast %135 : vector<1x4x128xbf16> to vector<4x128xbf16>
    %cst_160 = arith.constant dense<0.000000e+00> : vector<40x128xf32>
    %137 = tpu.matmul %134, %136, %cst_160 {dimension_numbers = #tpu.dot_dimension_numbers<[1], [0], [0], [1], [0, 0, 1, 1], [], []>} : vector<40x4xbf16>, vector<4x128xbf16>, vector<40x128xf32> -> vector<40x128xf32>
    %138 = arith.addf %132, %137 : vector<40x128xf32>
    %c0_161 = arith.constant 0 : index
    %c0_162 = arith.constant 0 : index
    %c8_163 = arith.constant 8 : index
    %c0_164 = arith.constant 0 : index
    %139 = vector.load %arg4[%c0_161, %c0_162, %c8_163, %c0_164] : memref<1x1x56x4xbf16, #tpu.memory_space<vmem>>, vector<1x1x40x4xbf16>
    %140 = vector.shape_cast %139 : vector<1x1x40x4xbf16> to vector<40x4xbf16>
    %c23 = arith.constant 23 : index
    %c0_165 = arith.constant 0 : index
    %c0_166 = arith.constant 0 : index
    %141 = vector.load %arg5[%c23, %c0_165, %c0_166] : memref<27x4x128xbf16, #tpu.memory_space<vmem>>, vector<1x4x128xbf16>
    %142 = vector.shape_cast %141 : vector<1x4x128xbf16> to vector<4x128xbf16>
    %cst_167 = arith.constant dense<0.000000e+00> : vector<40x128xf32>
    %143 = tpu.matmul %140, %142, %cst_167 {dimension_numbers = #tpu.dot_dimension_numbers<[1], [0], [0], [1], [0, 0, 1, 1], [], []>} : vector<40x4xbf16>, vector<4x128xbf16>, vector<40x128xf32> -> vector<40x128xf32>
    %144 = arith.addf %138, %143 : vector<40x128xf32>
    %c0_168 = arith.constant 0 : index
    %c0_169 = arith.constant 0 : index
    %c12_170 = arith.constant 12 : index
    %c0_171 = arith.constant 0 : index
    %145 = vector.load %arg4[%c0_168, %c0_169, %c12_170, %c0_171] : memref<1x1x56x4xbf16, #tpu.memory_space<vmem>>, vector<1x1x40x4xbf16>
    %146 = vector.shape_cast %145 : vector<1x1x40x4xbf16> to vector<40x4xbf16>
    %c24 = arith.constant 24 : index
    %c0_172 = arith.constant 0 : index
    %c0_173 = arith.constant 0 : index
    %147 = vector.load %arg5[%c24, %c0_172, %c0_173] : memref<27x4x128xbf16, #tpu.memory_space<vmem>>, vector<1x4x128xbf16>
    %148 = vector.shape_cast %147 : vector<1x4x128xbf16> to vector<4x128xbf16>
    %cst_174 = arith.constant dense<0.000000e+00> : vector<40x128xf32>
    %149 = tpu.matmul %146, %148, %cst_174 {dimension_numbers = #tpu.dot_dimension_numbers<[1], [0], [0], [1], [0, 0, 1, 1], [], []>} : vector<40x4xbf16>, vector<4x128xbf16>, vector<40x128xf32> -> vector<40x128xf32>
    %150 = arith.addf %144, %149 : vector<40x128xf32>
    %c0_175 = arith.constant 0 : index
    %c0_176 = arith.constant 0 : index
    %c13_177 = arith.constant 13 : index
    %c0_178 = arith.constant 0 : index
    %151 = vector.load %arg4[%c0_175, %c0_176, %c13_177, %c0_178] : memref<1x1x56x4xbf16, #tpu.memory_space<vmem>>, vector<1x1x40x4xbf16>
    %152 = vector.shape_cast %151 : vector<1x1x40x4xbf16> to vector<40x4xbf16>
    %c25 = arith.constant 25 : index
    %c0_179 = arith.constant 0 : index
    %c0_180 = arith.constant 0 : index
    %153 = vector.load %arg5[%c25, %c0_179, %c0_180] : memref<27x4x128xbf16, #tpu.memory_space<vmem>>, vector<1x4x128xbf16>
    %154 = vector.shape_cast %153 : vector<1x4x128xbf16> to vector<4x128xbf16>
    %cst_181 = arith.constant dense<0.000000e+00> : vector<40x128xf32>
    %155 = tpu.matmul %152, %154, %cst_181 {dimension_numbers = #tpu.dot_dimension_numbers<[1], [0], [0], [1], [0, 0, 1, 1], [], []>} : vector<40x4xbf16>, vector<4x128xbf16>, vector<40x128xf32> -> vector<40x128xf32>
    %156 = arith.addf %150, %155 : vector<40x128xf32>
    %c0_182 = arith.constant 0 : index
    %c0_183 = arith.constant 0 : index
    %c14_184 = arith.constant 14 : index
    %c0_185 = arith.constant 0 : index
    %157 = vector.load %arg4[%c0_182, %c0_183, %c14_184, %c0_185] : memref<1x1x56x4xbf16, #tpu.memory_space<vmem>>, vector<1x1x40x4xbf16>
    %158 = vector.shape_cast %157 : vector<1x1x40x4xbf16> to vector<40x4xbf16>
    %c26 = arith.constant 26 : index
    %c0_186 = arith.constant 0 : index
    %c0_187 = arith.constant 0 : index
    %159 = vector.load %arg5[%c26, %c0_186, %c0_187] : memref<27x4x128xbf16, #tpu.memory_space<vmem>>, vector<1x4x128xbf16>
    %160 = vector.shape_cast %159 : vector<1x4x128xbf16> to vector<4x128xbf16>
    %cst_188 = arith.constant dense<0.000000e+00> : vector<40x128xf32>
    %161 = tpu.matmul %158, %160, %cst_188 {dimension_numbers = #tpu.dot_dimension_numbers<[1], [0], [0], [1], [0, 0, 1, 1], [], []>} : vector<40x4xbf16>, vector<4x128xbf16>, vector<40x128xf32> -> vector<40x128xf32>
    %162 = arith.addf %156, %161 : vector<40x128xf32>
    %c0_189 = arith.constant 0 : index
    %c0_190 = arith.constant 0 : index
    %163 = vector.load %arg6[%c0_189, %c0_190] : memref<1x128xf32, #tpu.memory_space<vmem>>, vector<1x128xf32>
    %164 = vector.broadcast %163 : vector<1x128xf32> to vector<40x128xf32>
    %165 = arith.addf %162, %164 : vector<40x128xf32>
    %cst_191 = arith.constant 0.000000e+00 : f32
    %166 = vector.broadcast %cst_191 : f32 to vector<40x128xf32>
    %167 = arith.minimumf %165, %166 : vector<40x128xf32>
    %168 = math.exp %167 : vector<40x128xf32>
    %cst_192 = arith.constant 1.000000e+00 : f32
    %169 = vector.broadcast %cst_192 : f32 to vector<40x128xf32>
    %170 = arith.subf %168, %169 : vector<40x128xf32>
    %cst_193 = arith.constant 1.67326319 : f32
    %171 = vector.broadcast %cst_193 : f32 to vector<40x128xf32>
    %172 = arith.mulf %171, %170 : vector<40x128xf32>
    %cst_194 = arith.constant 0.000000e+00 : f32
    %173 = vector.broadcast %cst_194 : f32 to vector<40x128xf32>
    %174 = arith.cmpf ogt, %165, %173 : vector<40x128xf32>
    %175 = arith.select %174, %165, %172 : vector<40x128xi1>, vector<40x128xf32>
    %cst_195 = arith.constant 1.05070102 : f32
    %176 = vector.broadcast %cst_195 : f32 to vector<40x128xf32>
    %177 = arith.mulf %176, %175 : vector<40x128xf32>
    %c0_196 = arith.constant 0 : index
    %c0_197 = arith.constant 0 : index
    %c0_198 = arith.constant 0 : index
    %c0_199 = arith.constant 0 : index
    %178 = vector.load %arg7[%c0_196, %c0_197, %c0_198, %c0_199] : memref<1x1x40x128xf32, #tpu.memory_space<vmem>>, vector<1x1x40x128xf32>
    %179 = vector.shape_cast %178 : vector<1x1x40x128xf32> to vector<40x128xf32>
    %180 = vector.shape_cast %177 : vector<40x128xf32> to vector<1x1x40x128xf32>
    tpu.vector_store %arg7[%c0_196, %c0_197, %c0_198, %c0_199], %180 {strides = array<i32>} : memref<1x1x40x128xf32, #tpu.memory_space<vmem>>, vector<1x1x40x128xf32>,
    return
  }
  func.func @transform_0(%arg0: i32, %arg1: i32) -> (i32, i32, i32, i32) {
    %c0_i32 = arith.constant 0 : i32
    %0 = arith.addi %arg1, %c0_i32 : i32
    %c0_i32_0 = arith.constant 0 : i32
    %c0_i32_1 = arith.constant 0 : i32
    %c0_i32_2 = arith.constant 0 : i32
    return %arg0, %0, %c0_i32_0, %c0_i32_1 : i32, i32, i32, i32
  }
  func.func @transform_1(%arg0: i32, %arg1: i32) -> (i32, i32, i32, i32) {
    %c1_i32 = arith.constant 1 : i32
    %0 = arith.addi %arg1, %c1_i32 : i32
    %c0_i32 = arith.constant 0 : i32
    %c0_i32_0 = arith.constant 0 : i32
    %c0_i32_1 = arith.constant 0 : i32
    return %arg0, %0, %c0_i32, %c0_i32_0 : i32, i32, i32, i32
  }
  func.func @transform_2(%arg0: i32, %arg1: i32) -> (i32, i32, i32, i32) {
    %c2_i32 = arith.constant 2 : i32
    %0 = arith.addi %arg1, %c2_i32 : i32
    %c0_i32 = arith.constant 0 : i32
    %c0_i32_0 = arith.constant 0 : i32
    %c0_i32_1 = arith.constant 0 : i32
    return %arg0, %0, %c0_i32, %c0_i32_0 : i32, i32, i32, i32
  }
  func.func @transform_3(%arg0: i32, %arg1: i32) -> (i32, i32, i32) {
    %c0_i32 = arith.constant 0 : i32
    %c0_i32_0 = arith.constant 0 : i32
    %c0_i32_1 = arith.constant 0 : i32
    %c0_i32_2 = arith.constant 0 : i32
    return %c0_i32, %c0_i32_0, %c0_i32_1 : i32, i32, i32
  }
  func.func @transform_4(%arg0: i32, %arg1: i32) -> (i32, i32) {
    %c0_i32 = arith.constant 0 : i32
    %c0_i32_0 = arith.constant 0 : i32
    %c0_i32_1 = arith.constant 0 : i32
    return %c0_i32, %c0_i32_0 : i32, i32
  }
  func.func @transform_5(%arg0: i32, %arg1: i32) -> (i32, i32, i32, i32) {
    %c0_i32 = arith.constant 0 : i32
    %c0_i32_0 = arith.constant 0 : i32
    %c0_i32_1 = arith.constant 0 : i32
    return %arg0, %arg1, %c0_i32, %c0_i32_0 : i32, i32, i32, i32
  }
}

</mosaic_0001>

<llo_original>
// kernel: tpu_custom_call.1
$region0: #{tpu_custom_call.1}
  #allocation0 [shape = 'u32[]', space=smem, size = 0x4, offset = 0x4, fixed_abs, tag = 'smem constant byte address 0x4 - core index']
  #allocation1 [shape = 'u32[144,128]{1,0:T(1,128)}', space=vmem, size = 0x12000, scoped, tag = 'internal scratch']
  %s0 = inlined_call_operand.vmem [shape: bf16[2,6,56,4], index: 0, kind: input, shape index: {}]
  %s1 = inlined_call_operand.vmem [shape: bf16[2,6,56,4], index: 1, kind: input, shape index: {}]
  %s2 = inlined_call_operand.vmem [shape: bf16[2,6,56,4], index: 2, kind: input, shape index: {}]
  %s3 = inlined_call_operand.vmem [shape: bf16[27,4,128], index: 3, kind: input, shape index: {}]
  %s4 = inlined_call_operand.vmem [shape: f32[1,128], index: 4, kind: input, shape index: {}]
  %s5 = inlined_call_operand.hbm [shape: f32[2,4,40,128], index: 5, kind: output, shape index: {}]
  %s6 = sld [smem:[#allocation0]]
  $region53: #{tpu_custom_call.1} parent=0
    _
  %s8 = ssub.s32 1, %s6
  %s9 = scalar_select 0, %s8, %s6
  $region1: #{tpu_custom_call.1} parent=0
    #allocation2 [shape = 'u8[40960]{0}', space=vmem, size = 0xa000, scoped, tag = 'output window, operand 0']
    #allocation3 [shape = 's32[2]{0}', space=sflag, size = 0x8, scoped, tag = 'scoped memory for tpu_custom_call.1']
    %10 = vsyncpa [#allocation3], 0
    %s11 = scalar_lea.sflag [#allocation3], 1
    %12 = vsyncpa %s11, 0
    loop: start=0, step=1, limit=10
    $region2: #{tpu_custom_call.1} parent=1 // loop_pre_header
      _
    $region3: #{tpu_custom_call.1} parent=1 // loop_header
      %s14 = sphi 0, %s18
      %p15 = scmp.ge.s32.totalorder %s14, 10
      %s21 = sphi 0, %s33
      %s22 = sphi 0, %s29
      %s23 = sphi 0, %s21
      %s24 = sphi 0, %s22
      %s25 = sphi 0, %s23
      %s26 = sphi 0, %s24
      %s38 = sphi 0, %s40
      %s41 = sphi 0, %s38
      %s42 = sphi 0, %s41
      %s58 = sphi 0, %s42
      %s68 = sphi 0, %s70
      %s71 = sphi 0, %s68
      %s72 = sphi 0, %s71
      %s88 = sphi 0, %s72
      %s98 = sphi 0, %s100
      %s101 = sphi 0, %s98
      %s102 = sphi 0, %s101
      %s118 = sphi 0, %s102
      %s122 = sphi 0, %s122
      %s124 = sphi 0, %s122
      %s125 = sphi 0, %s124
      %s139 = sphi 0, %s125
      %s143 = sphi 0, %s143
      %s145 = sphi 0, %s143
      %s146 = sphi 0, %s145
      %s160 = sphi 0, %s146
      %s168 = sphi 0, %s170
      %s171 = sphi 0, %s168
      %s172 = sphi 0, %s171
      %s188 = sphi 0, %s172
    $region4: #{tpu_custom_call.1} parent=1 // loop_header_branch
      %17 = sbr.rel (%p15) target = $region8
    $region5: #{tpu_custom_call.1} parent=1 // loop_body
      %s19 = ssub.s32 %s14, 1
      %s20 = ssub.s32 %s14, 2
      %s27 = sadd.s32 1, %s22
      %p28 = scmp.ge.s32.totalorder %s27, 4
      %s29 = scalar_select %p28, 0, %s27
      %s30 = sadd.s32 1, %s21
      %s31 = scalar_select %p28, %s30, %s21
      %p32 = scmp.ge.s32.totalorder %s31, 2
      %s33 = scalar_select %p32, 0, %s31
      %s34 = ssub.s32 %s21, %s33
      %s35 = ssub.s32 %s22, %s29
      %s36 = sor.u32 %s34, %s35
      %p37 = scmp.eq.s32.totalorder %s36, 0
      %s39 = sadd.s32 %s38, 1
      %s40 = scalar_select %p37, %s38, %s39
      %p43 = pneg %p37
      %p44 = scmp.eq.s32.totalorder %s14, 7
      %p45 = por %p43, %p44
      %p46 = scmp.ne.s32.totalorder %s38, %s41
      %p47 = scmp.eq.s32.totalorder %s14, 0
      %p48 = por %p46, %p47
      %p49 = scmp.ne.s32.totalorder %s38, %s41
      %p50 = scmp.eq.s32.totalorder %s19, 7
      %p51 = por %p49, %p50
      %p52 = scmp.ne.s32.totalorder %s41, %s42
      %p53 = scmp.eq.s32.totalorder %s19, 0
      %p54 = por %p52, %p53
      %p55 = scmp.ne.s32.totalorder %s41, %s42
      %p56 = scmp.eq.s32.totalorder %s20, 7
      %p57 = por %p55, %p56
      %p59 = scmp.ne.s32.totalorder %s42, %s58
      %p60 = scmp.eq.s32.totalorder %s20, 0
      %p61 = por %p59, %p60
      %s62 = sadd.s32 %s22, 1
      %s63 = sadd.s32 %s29, 1
      %s64 = ssub.s32 %s21, %s33
      %s65 = ssub.s32 %s62, %s63
      %s66 = sor.u32 %s64, %s65
      %p67 = scmp.eq.s32.totalorder %s66, 0
      %s69 = sadd.s32 %s68, 1
      %s70 = scalar_select %p67, %s68, %s69
      %p73 = pneg %p67
      %p74 = scmp.eq.s32.totalorder %s14, 7
      %p75 = por %p73, %p74
      %p76 = scmp.ne.s32.totalorder %s68, %s71
      %p77 = scmp.eq.s32.totalorder %s14, 0
      %p78 = por %p76, %p77
      %p79 = scmp.ne.s32.totalorder %s68, %s71
      %p80 = scmp.eq.s32.totalorder %s19, 7
      %p81 = por %p79, %p80
      %p82 = scmp.ne.s32.totalorder %s71, %s72
      %p83 = scmp.eq.s32.totalorder %s19, 0
      %p84 = por %p82, %p83
      %p85 = scmp.ne.s32.totalorder %s71, %s72
      %p86 = scmp.eq.s32.totalorder %s20, 7
      %p87 = por %p85, %p86
      %p89 = scmp.ne.s32.totalorder %s72, %s88
      %p90 = scmp.eq.s32.totalorder %s20, 0
      %p91 = por %p89, %p90
      %s92 = sadd.s32 %s22, 2
      %s93 = sadd.s32 %s29, 2
      %s94 = ssub.s32 %s21, %s33
      %s95 = ssub.s32 %s92, %s93
      %s96 = sor.u32 %s94, %s95
      %p97 = scmp.eq.s32.totalorder %s96, 0
      %s99 = sadd.s32 %s98, 1
      %s100 = scalar_select %p97, %s98, %s99
      %p103 = pneg %p97
      %p104 = scmp.eq.s32.totalorder %s14, 7
      %p105 = por %p103, %p104
      %p106 = scmp.ne.s32.totalorder %s98, %s101
      %p107 = scmp.eq.s32.totalorder %s14, 0
      %p108 = por %p106, %p107
      %p109 = scmp.ne.s32.totalorder %s98, %s101
      %p110 = scmp.eq.s32.totalorder %s19, 7
      %p111 = por %p109, %p110
      %p112 = scmp.ne.s32.totalorder %s101, %s102
      %p113 = scmp.eq.s32.totalorder %s19, 0
      %p114 = por %p112, %p113
      %p115 = scmp.ne.s32.totalorder %s101, %s102
      %p116 = scmp.eq.s32.totalorder %s20, 7
      %p117 = por %p115, %p116
      %p119 = scmp.ne.s32.totalorder %s102, %s118
      %p120 = scmp.eq.s32.totalorder %s20, 0
      %p121 = por %p119, %p120
      %s123 = sadd.s32 %s122, 1
      %p126 = scmp.eq.s32.totalorder %s14, 7
      %p127 = scmp.ne.s32.totalorder %s122, %s124
      %p128 = scmp.eq.s32.totalorder %s14, 0
      %p129 = por %p127, %p128
      %p130 = scmp.ne.s32.totalorder %s122, %s124
      %p131 = scmp.eq.s32.totalorder %s19, 7
      %p132 = por %p130, %p131
      %p133 = scmp.ne.s32.totalorder %s124, %s125
      %p134 = scmp.eq.s32.totalorder %s19, 0
      %p135 = por %p133, %p134
      %p136 = scmp.ne.s32.totalorder %s124, %s125
      %p137 = scmp.eq.s32.totalorder %s20, 7
      %p138 = por %p136, %p137
      %p140 = scmp.ne.s32.totalorder %s125, %s139
      %p141 = scmp.eq.s32.totalorder %s20, 0
      %p142 = por %p140, %p141
      %s144 = sadd.s32 %s143, 1
      %p147 = scmp.eq.s32.totalorder %s14, 7
      %p148 = scmp.ne.s32.totalorder %s143, %s145
      %p149 = scmp.eq.s32.totalorder %s14, 0
      %p150 = por %p148, %p149
      %p151 = scmp.ne.s32.totalorder %s143, %s145
      %p152 = scmp.eq.s32.totalorder %s19, 7
      %p153 = por %p151, %p152
      %p154 = scmp.ne.s32.totalorder %s145, %s146
      %p155 = scmp.eq.s32.totalorder %s19, 0
      %p156 = por %p154, %p155
      %p157 = scmp.ne.s32.totalorder %s145, %s146
      %p158 = scmp.eq.s32.totalorder %s20, 7
      %p159 = por %p157, %p158
      %p161 = scmp.ne.s32.totalorder %s146, %s160
      %p162 = scmp.eq.s32.totalorder %s20, 0
      %p163 = por %p161, %p162
      %s164 = ssub.s32 %s21, %s33
      %s165 = ssub.s32 %s22, %s29
      %s166 = sor.u32 %s164, %s165
      %p167 = scmp.eq.s32.totalorder %s166, 0
      %s169 = sadd.s32 %s168, 1
      %s170 = scalar_select %p167, %s168, %s169
      %p173 = pneg %p167
      %p174 = scmp.eq.s32.totalorder %s14, 7
      %p175 = por %p173, %p174
      %p176 = scmp.ne.s32.totalorder %s168, %s171
      %p177 = scmp.eq.s32.totalorder %s14, 0
      %p178 = por %p176, %p177
      %p179 = scmp.ne.s32.totalorder %s168, %s171
      %p180 = scmp.eq.s32.totalorder %s19, 7
      %p181 = por %p179, %p180
      %p182 = scmp.ne.s32.totalorder %s171, %s172
      %p183 = scmp.eq.s32.totalorder %s19, 0
      %p184 = por %p182, %p183
      %p185 = scmp.ne.s32.totalorder %s171, %s172
      %p186 = scmp.eq.s32.totalorder %s20, 7
      %p187 = por %p185, %p186
      %p189 = scmp.ne.s32.totalorder %s172, %s188
      %p190 = scmp.eq.s32.totalorder %s20, 0
      %p191 = por %p189, %p190
      %p192 = scmp.le.s32.totalorder 1, %s14
      %p193 = scmp.lt.s32.totalorder %s14, 9
      %p194 = pnand %p192, %p193
      %p195 = pneg %p194
      // Predicated region
      $region9: #{tpu_custom_call.1} parent=5 // pred_check
        _
      $region10: #{tpu_custom_call.1} parent=5 // pred_check_branch
        %197 = sbr.rel (%p194) target = $region12
      $region11: #{tpu_custom_call.1} parent=5 // pred_region
        %s198 = ssub.s32 %s14, 1
        // Predicated region
        $region13: #{tpu_custom_call.1} parent=11 // pred_check
          %p199 = pneg %p135
        $region14: #{tpu_custom_call.1} parent=11 // pred_check_branch
          %201 = sbr.rel (%p199) target = $region16
        $region15: #{tpu_custom_call.1} parent=11 // pred_region
          _
        $region16: #{tpu_custom_call.1} parent=11 // pred_fallthru
          _
        // Predicated region
        $region17: #{tpu_custom_call.1} parent=11 // pred_check
          %p202 = pneg %p156
        $region18: #{tpu_custom_call.1} parent=11 // pred_check_branch
          %204 = sbr.rel (%p202) target = $region20
        $region19: #{tpu_custom_call.1} parent=11 // pred_region
          _
        $region20: #{tpu_custom_call.1} parent=11 // pred_fallthru
          _
      $region12: #{tpu_custom_call.1} parent=5 // pred_fallthru
        _
      %p205 = scmp.lt.s32.totalorder %s14, 8
      // Predicated region
      $region21: #{tpu_custom_call.1} parent=5 // pred_check
        %p206 = pneg %p205
      $region22: #{tpu_custom_call.1} parent=5 // pred_check_branch
        %208 = sbr.rel (%p206) target = $region24
      $region23: #{tpu_custom_call.1} parent=5 // pred_region
        // Predicated region
        $region25: #{tpu_custom_call.1} parent=23 // pred_check
          %p209 = pneg %p48
        $region26: #{tpu_custom_call.1} parent=23 // pred_check_branch
          %211 = sbr.rel (%p209) target = $region28
        $region27: #{tpu_custom_call.1} parent=23 // pred_region
          %p212 = scmp.lt.s32.totalorder %s21, 1
          %s213 = scalar_select %p212, %s21, 1
          %p214 = scmp.lt.s32.totalorder %s22, 5
          %s215 = scalar_select %p214, %s22, 5
          %s216 = smul.addr %s215, 7
          %s217 = smul.addr %s213, 42
          %s218 = sadd.s32 %s216, %s217
          %s219 = smul.addr %s218, 4
          %s220 = scalar_lea.vmem %s0, %s219
        $region28: #{tpu_custom_call.1} parent=23 // pred_fallthru
          _
        // Predicated region
        $region29: #{tpu_custom_call.1} parent=23 // pred_check
          %p221 = pneg %p78
        $region30: #{tpu_custom_call.1} parent=23 // pred_check_branch
          %223 = sbr.rel (%p221) target = $region32
        $region31: #{tpu_custom_call.1} parent=23 // pred_region
          %s224 = sadd.s32 %s22, 1
          %p225 = scmp.lt.s32.totalorder %s21, 1
          %s226 = scalar_select %p225, %s21, 1
          %p227 = scmp.lt.s32.totalorder %s224, 5
          %s228 = scalar_select %p227, %s224, 5
          %s229 = smul.addr %s228, 7
          %s230 = smul.addr %s226, 42
          %s231 = sadd.s32 %s229, %s230
          %s232 = smul.addr %s231, 4
          %s233 = scalar_lea.vmem %s1, %s232
          %s234 = sadd.s32 %s22, 1
        $region32: #{tpu_custom_call.1} parent=23 // pred_fallthru
          _
        // Predicated region
        $region33: #{tpu_custom_call.1} parent=23 // pred_check
          %p235 = pneg %p108
        $region34: #{tpu_custom_call.1} parent=23 // pred_check_branch
          %237 = sbr.rel (%p235) target = $region36
        $region35: #{tpu_custom_call.1} parent=23 // pred_region
          %s238 = sadd.s32 %s22, 2
          %p239 = scmp.lt.s32.totalorder %s21, 1
          %s240 = scalar_select %p239, %s21, 1
          %p241 = scmp.lt.s32.totalorder %s238, 5
          %s242 = scalar_select %p241, %s238, 5
          %s243 = smul.addr %s242, 7
          %s244 = smul.addr %s240, 42
          %s245 = sadd.s32 %s243, %s244
          %s246 = smul.addr %s245, 4
          %s247 = scalar_lea.vmem %s2, %s246
          %s248 = sadd.s32 %s22, 2
        $region36: #{tpu_custom_call.1} parent=23 // pred_fallthru
          _
      $region24: #{tpu_custom_call.1} parent=5 // pred_fallthru
        _
      %p249 = scmp.le.s32.totalorder 1, %s14
      %p250 = scmp.lt.s32.totalorder %s14, 9
      %p251 = pnand %p249, %p250
      %p252 = pneg %p251
      // Predicated region
      $region37: #{tpu_custom_call.1} parent=5 // pred_check
        _
      $region38: #{tpu_custom_call.1} parent=5 // pred_check_branch
        %254 = sbr.rel (%p251) target = $region40
      $region39: #{tpu_custom_call.1} parent=5 // pred_region
        %s255 = ssub.s32 %s14, 1
        %p256 = scmp.lt.s32.totalorder %s23, 1
        %s257 = scalar_select %p256, %s23, 1
        %p258 = scmp.lt.s32.totalorder %s24, 5
        %s259 = scalar_select %p258, %s24, 5
        %s260 = smul.addr %s259, 7
        %s261 = smul.addr %s257, 42
        %s262 = sadd.s32 %s260, %s261
        %s263 = smul.addr %s262, 4
        %s264 = scalar_lea.vmem %s0, %s263
        %p265 = pneg %p54
        %p266 = pneg %p51
        %s267 = sadd.s32 %s24, 1
        %p268 = scmp.lt.s32.totalorder %s23, 1
        %s269 = scalar_select %p268, %s23, 1
        %p270 = scmp.lt.s32.totalorder %s267, 5
        %s271 = scalar_select %p270, %s267, 5
        %s272 = smul.addr %s271, 7
        %s273 = smul.addr %s269, 42
        %s274 = sadd.s32 %s272, %s273
        %s275 = smul.addr %s274, 4
        %s276 = scalar_lea.vmem %s1, %s275
        %p277 = pneg %p84
        %p278 = pneg %p81
        %s279 = sadd.s32 %s24, 2
        %p280 = scmp.lt.s32.totalorder %s23, 1
        %s281 = scalar_select %p280, %s23, 1
        %p282 = scmp.lt.s32.totalorder %s279, 5
        %s283 = scalar_select %p282, %s279, 5
        %s284 = smul.addr %s283, 7
        %s285 = smul.addr %s281, 42
        %s286 = sadd.s32 %s284, %s285
        %s287 = smul.addr %s286, 4
        %s288 = scalar_lea.vmem %s2, %s287
        %p289 = pneg %p114
        %p290 = pneg %p111
        %p291 = pneg %p135
        %p292 = pneg %p132
        %p293 = pneg %p156
        %p294 = pneg %p153
        %p295 = pneg %p184
        %p296 = pneg %p181
        %s297 = sand.u32 %s171, 1
        %s298 = scalar_lea.sflag [#allocation3], %s297
        %s299 = sand.u32 %s171, 1
        %s300 = smul.addr %s299, 40
        %s301 = scalar_lea.vmem [#allocation2], %s300
        %p302 = scmp.lt.s32.totalorder %s23, 1
        %s303 = scalar_select %p302, %s23, 1
        %p304 = scmp.lt.s32.totalorder %s24, 5
        %s305 = scalar_select %p304, %s24, 5
        %s306 = smul.addr %s305, 7
        %s307 = smul.addr %s303, 42
        %s308 = sadd.s32 %s306, %s307
        %s309 = smul.addr %s308, 4
        %s310 = scalar_lea.vmem %s0, %s309
        %s311 = sadd.s32 %s24, 1
        %p312 = scmp.lt.s32.totalorder %s23, 1
        %s313 = scalar_select %p312, %s23, 1
        %p314 = scmp.lt.s32.totalorder %s311, 5
        %s315 = scalar_select %p314, %s311, 5
        %s316 = smul.addr %s315, 7
        %s317 = smul.addr %s313, 42
        %s318 = sadd.s32 %s316, %s317
        %s319 = smul.addr %s318, 4
        %s320 = scalar_lea.vmem %s1, %s319
        %s321 = sadd.s32 %s24, 1
        %s322 = sadd.s32 %s24, 2
        %p323 = scmp.lt.s32.totalorder %s23, 1
        %s324 = scalar_select %p323, %s23, 1
        %p325 = scmp.lt.s32.totalorder %s322, 5
        %s326 = scalar_select %p325, %s322, 5
        %s327 = smul.addr %s326, 7
        %s328 = smul.addr %s324, 42
        %s329 = sadd.s32 %s327, %s328
        %s330 = smul.addr %s329, 4
        %s331 = scalar_lea.vmem %s2, %s330
        %s332 = sadd.s32 %s24, 2
        %v334 = vld [vmem:[%s310] sm:$0xf]
        %v335 = vld [vmem:[%s310 + $0x4] sm:$0xf]
        %v336 = vld [vmem:[%s310 + $0x8] sm:$0xf]
        %v337 = vld [vmem:[%s310 + $0xc] sm:$0xf]
        %v338 = vld [vmem:[%s310 + $0x10] sm:$0xf]
        %v339 = vld [vmem:[%s3] sm:$0x3]
        %v340 = vld [vmem:[%s310 + $0x14] sm:$0x1]
        %s341 = scalar_lea.vmem %s3, 2
        %v342 = vld [vmem:[%s341] sm:$0x3]
        %v349 = vunpack.c.l.b16 %v334
        %v350 = vunpack.c.l.b16 %v335
        %v351 = vunpack.c.l.b16 %v336
        %v352 = vunpack.c.l.b16 %v337
        %v353 = vunpack.c.l.b16 %v338
        %v354 = vunpack.c.l.b16 %v340
        %v355 = vpack.c.b16 %v350, %v349
        %v356 = vpack.c.b16 %v352, %v351
        %v357 = vpack.c.b16 %v354, %v353
        %vm358 = vsmask.f32 7424
        %v360 = vshrl.u32 %v355, 16
        %v362 = vshll.u32 %v355, 16
        %v364 = vrot.slane %v362, 1
        %v365 = vor.u32 %v360, %v364
        %v367 = vshll.u32 %v356, 16
        %v369 = vrot.slane %v367, 1
        %v370 = vsel %vm358, %v365, %v369
        %v371 = vshrl.u32 %v356, 16
        %v373 = vor.u32 %v371, %v369
        %v375 = vshll.u32 %v357, 16
        %v377 = vrot.slane %v375, 1
        %v378 = vsel %vm358, %v373, %v377
        %v379 = vshrl.u32 %v357, 16
        %v381 = vor.u32 %v379, %v377
        %vm382 = vcmask 31744
        %v384 = vsel %vm382, %v370, 0
        %v387 = vsel %vm382, %v378, 0
        %v390 = vsel %vm382, %v381, 0
        %vm392 = vcmask 1041408
        %v394 = vsel %vm392, %v342, 0
        %396 = vmatprep.subr.bf16.mxu0 0
        %397 = vmatpush1.bf16.msra.mxu0 %v394
        %398 = vmatprep.subr.bf16.mxu0 0
        %399 = vmatpush1.bf16.msra.mxu0 0
        %400 = vmatprep.subr.bf16.mxu0 0
        %401 = vmatpush1.bf16.msra.mxu0 0
        %402 = vmatprep.subr.bf16.mxu0 0
        %403 = vmatpush1.bf16.msra.mxu0 0
        %404 = vmatprep.subr.bf16.mxu0 0
        %405 = vmatpush1.bf16.msra.mxu0 0
        %406 = vmatprep.subr.bf16.mxu0 0
        %407 = vmatpush1.bf16.msra.mxu0 0
        %408 = vmatprep.subr.bf16.mxu0 0
        %409 = vmatpush1.bf16.msra.mxu0 0
        %410 = vmatprep.subr.bf16.mxu0 0
        %411 = vmatpush1.bf16.msra.mxu0 0
        %412 = vmatprep.subr.bf16.mxu0 0
        %413 = vmatpush1.bf16.msra.mxu0 0
        %414 = vmatprep.subr.bf16.mxu0 0
        %415 = vmatpush1.bf16.msra.mxu0 0
        %416 = vmatprep.subr.bf16.mxu0 0
        %417 = vmatpush1.bf16.msra.mxu0 0
        %418 = vmatprep.subr.bf16.mxu0 0
        %419 = vmatpush1.bf16.msra.mxu0 0
        %420 = vmatprep.subr.bf16.mxu0 0
        %421 = vmatpush1.bf16.msra.mxu0 0
        %422 = vmatprep.subr.bf16.mxu0 0
        %423 = vmatpush1.bf16.msra.mxu0 0
        %424 = vmatprep.subr.bf16.mxu0 0
        %425 = vmatpush1.bf16.msra.mxu0 0
        %426 = vmatprep.subr.bf16.mxu0 0
        %427 = vmatpush1.bf16.msra.mxu0 0
        %428 = vmatprep.mubr.bf16.mxu0 0
        %429 = vmatmul.mubr.bf16.gmra.mrb[0].mxu0 %v384
        %v430 = vpop.f32.mrb[0].mxu0
        %v431 = vadd.f32 0.0, %v430
        %v432 = vpop.f32.mrb[0].mxu0
        %v433 = vpop.f32.mrb[0].mxu0
        %v434 = vadd.f32 0.0, %v433
        %v435 = vpop.f32.mrb[0].mxu0
        %436 = vmatprep.mubr.bf16.mxu0 0
        %437 = vmatmul.mubr.bf16.gmra.mrb[0].mxu0 %v387
        %v438 = vpop.f32.mrb[0].mxu0
        %v439 = vadd.f32 0.0, %v438
        %v440 = vpop.f32.mrb[0].mxu0
        %v441 = vpop.f32.mrb[0].mxu0
        %v442 = vadd.f32 0.0, %v441
        %v443 = vpop.f32.mrb[0].mxu0
        %444 = vmatprep.mubr.bf16.mxu0 0
        %445 = vmatmul.mubr.bf16.gmra.mrb[0].mxu0 %v390
        %v446 = vpop.f32.mrb[0].mxu0
        %v447 = vadd.f32 0.0, %v446
        %v448 = vpop.f32.mrb[0].mxu0
        %v449 = vpop.f32.mrb[0].mxu0
        %v450 = vpop.f32.mrb[0].mxu0
        %451 = vdwg.mxu0
        %v452 = vpack.c.b16 %v353, %v353
        %v453 = vsel %vm382, %v355, 0
        %v455 = vsel %vm382, %v356, 0
        %v458 = vsel %vm382, %v452, 0
        %v461 = vsel %vm392, %v339, 0
        %463 = vmatprep.subr.bf16.mxu0 0
        %464 = vmatpush1.bf16.msra.mxu0 %v461
        %465 = vmatprep.subr.bf16.mxu0 0
        %466 = vmatpush1.bf16.msra.mxu0 0
        %467 = vmatprep.subr.bf16.mxu0 0
        %468 = vmatpush1.bf16.msra.mxu0 0
        %469 = vmatprep.subr.bf16.mxu0 0
        %470 = vmatpush1.bf16.msra.mxu0 0
        %471 = vmatprep.subr.bf16.mxu0 0
        %472 = vmatpush1.bf16.msra.mxu0 0
        %473 = vmatprep.subr.bf16.mxu0 0
        %474 = vmatpush1.bf16.msra.mxu0 0
        %475 = vmatprep.subr.bf16.mxu0 0
        %476 = vmatpush1.bf16.msra.mxu0 0
        %477 = vmatprep.subr.bf16.mxu0 0
        %478 = vmatpush1.bf16.msra.mxu0 0
        %479 = vmatprep.subr.bf16.mxu0 0
        %480 = vmatpush1.bf16.msra.mxu0 0
        %481 = vmatprep.subr.bf16.mxu0 0
        %482 = vmatpush1.bf16.msra.mxu0 0
        %483 = vmatprep.subr.bf16.mxu0 0
        %484 = vmatpush1.bf16.msra.mxu0 0
        %485 = vmatprep.subr.bf16.mxu0 0
        %486 = vmatpush1.bf16.msra.mxu0 0
        %487 = vmatprep.subr.bf16.mxu0 0
        %488 = vmatpush1.bf16.msra.mxu0 0
        %489 = vmatprep.subr.bf16.mxu0 0
        %490 = vmatpush1.bf16.msra.mxu0 0
        %491 = vmatprep.subr.bf16.mxu0 0
        %492 = vmatpush1.bf16.msra.mxu0 0
        %493 = vmatprep.subr.bf16.mxu0 0
        %494 = vmatpush1.bf16.msra.mxu0 0
        %495 = vmatprep.mubr.bf16.mxu0 0
        %496 = vmatmul.mubr.bf16.gmra.mrb[0].mxu0 %v453
        %v497 = vpop.f32.mrb[0].mxu0
        %v498 = vadd.f32 %v431, %v497
        %v499 = vpop.f32.mrb[0].mxu0
        %v500 = vpop.f32.mrb[0].mxu0
        %v501 = vadd.f32 %v434, %v500
        %v502 = vpop.f32.mrb[0].mxu0
        %503 = vmatprep.mubr.bf16.mxu0 0
        %504 = vmatmul.mubr.bf16.gmra.mrb[0].mxu0 %v455
        %v505 = vpop.f32.mrb[0].mxu0
        %v506 = vadd.f32 %v439, %v505
        %v507 = vpop.f32.mrb[0].mxu0
        %v508 = vpop.f32.mrb[0].mxu0
        %v509 = vadd.f32 %v442, %v508
        %v510 = vpop.f32.mrb[0].mxu0
        %511 = vmatprep.mubr.bf16.mxu0 0
        %512 = vmatmul.mubr.bf16.gmra.mrb[0].mxu0 %v458
        %v513 = vpop.f32.mrb[0].mxu0
        %v514 = vadd.f32 %v447, %v513
        %v515 = vpop.f32.mrb[0].mxu0
        %v516 = vpop.f32.mrb[0].mxu0
        %v517 = vpop.f32.mrb[0].mxu0
        %518 = vdwg.mxu0
        %v519 = vld [vmem:[%s310] sm:$0xe]
        %s520 = scalar_lea.vmem %s3, 4
        %v521 = vld [vmem:[%s520] sm:$0x3]
        %v523 = vunpack.c.l.b16 %v519
        %v524 = vpack.c.b16 %v350, %v523
        %vm525 = vcmask 1046528
        %v526 = vrot.slane %v524, 1
        %v527 = vrot.slane %v356, 1
        %v528 = vsel %vm525, %v526, %v527
        %v529 = vrot.slane %v357, 1
        %v530 = vsel %vm525, %v527, %v529
        %v532 = vsel %vm382, %v528, 0
        %v535 = vsel %vm382, %v530, 0
        %v538 = vsel %vm382, %v529, 0
        %v541 = vsel %vm392, %v521, 0
        %543 = vmatprep.subr.bf16.mxu0 0
        %544 = vmatpush1.bf16.msra.mxu0 %v541
        %545 = vmatprep.subr.bf16.mxu0 0
        %546 = vmatpush1.bf16.msra.mxu0 0
        %547 = vmatprep.subr.bf16.mxu0 0
        %548 = vmatpush1.bf16.msra.mxu0 0
        %549 = vmatprep.subr.bf16.mxu0 0
        %550 = vmatpush1.bf16.msra.mxu0 0
        %551 = vmatprep.subr.bf16.mxu0 0
        %552 = vmatpush1.bf16.msra.mxu0 0
        %553 = vmatprep.subr.bf16.mxu0 0
        %554 = vmatpush1.bf16.msra.mxu0 0
        %555 = vmatprep.subr.bf16.mxu0 0
        %556 = vmatpush1.bf16.msra.mxu0 0
        %557 = vmatprep.subr.bf16.mxu0 0
        %558 = vmatpush1.bf16.msra.mxu0 0
        %559 = vmatprep.subr.bf16.mxu0 0
        %560 = vmatpush1.bf16.msra.mxu0 0
        %561 = vmatprep.subr.bf16.mxu0 0
        %562 = vmatpush1.bf16.msra.mxu0 0
        %563 = vmatprep.subr.bf16.mxu0 0
        %564 = vmatpush1.bf16.msra.mxu0 0
        %565 = vmatprep.subr.bf16.mxu0 0
        %566 = vmatpush1.bf16.msra.mxu0 0
        %567 = vmatprep.subr.bf16.mxu0 0
        %568 = vmatpush1.bf16.msra.mxu0 0
        %569 = vmatprep.subr.bf16.mxu0 0
        %570 = vmatpush1.bf16.msra.mxu0 0
        %571 = vmatprep.subr.bf16.mxu0 0
        %572 = vmatpush1.bf16.msra.mxu0 0
        %573 = vmatprep.subr.bf16.mxu0 0
        %574 = vmatpush1.bf16.msra.mxu0 0
        %575 = vmatprep.mubr.bf16.mxu0 0
        %576 = vmatmul.mubr.bf16.gmra.mrb[0].mxu0 %v532
        %v577 = vpop.f32.mrb[0].mxu0
        %v578 = vadd.f32 0.0, %v577
        %v579 = vpop.f32.mrb[0].mxu0
        %v580 = vpop.f32.mrb[0].mxu0
        %v581 = vadd.f32 0.0, %v580
        %v582 = vpop.f32.mrb[0].mxu0
        %583 = vmatprep.mubr.bf16.mxu0 0
        %584 = vmatmul.mubr.bf16.gmra.mrb[0].mxu0 %v535
        %v585 = vpop.f32.mrb[0].mxu0
        %v586 = vadd.f32 0.0, %v585
        %v587 = vpop.f32.mrb[0].mxu0
        %v588 = vpop.f32.mrb[0].mxu0
        %v589 = vadd.f32 0.0, %v588
        %v590 = vpop.f32.mrb[0].mxu0
        %591 = vmatprep.mubr.bf16.mxu0 0
        %592 = vmatmul.mubr.bf16.gmra.mrb[0].mxu0 %v538
        %v593 = vpop.f32.mrb[0].mxu0
        %v594 = vadd.f32 0.0, %v593
        %v595 = vpop.f32.mrb[0].mxu0
        %v596 = vpop.f32.mrb[0].mxu0
        %v597 = vpop.f32.mrb[0].mxu0
        %598 = vdwg.mxu0
        %v599 = vadd.f32 %v498, %v578
        %v600 = vadd.f32 %v501, %v581
        %v601 = vadd.f32 %v506, %v586
        %v602 = vadd.f32 %v509, %v589
        %v603 = vadd.f32 %v514, %v594
        %v604 = vld [vmem:[%s310] sm:$0x8]
        %v605 = vld [vmem:[%s310 + $0x14] sm:$0x7]
        %s606 = scalar_lea.vmem %s3, 6
        %v607 = vld [vmem:[%s606] sm:$0x3]
        %v610 = vunpack.c.l.b16 %v604
        %v611 = vunpack.c.l.b16 %v605
        %v612 = vpack.c.b16 %v350, %v610
        %v613 = vpack.c.b16 %v611, %v353
        %vm614 = vcmask 1044480
        %v615 = vrot.slane %v612, 3
        %v616 = vrot.slane %v356, 3
        %v617 = vsel %vm614, %v615, %v616
        %v618 = vrot.slane %v613, 3
        %v619 = vsel %vm614, %v616, %v618
        %v621 = vsel %vm382, %v617, 0
        %v624 = vsel %vm382, %v619, 0
        %v627 = vsel %vm382, %v618, 0
        %v630 = vsel %vm392, %v607, 0
        %632 = vmatprep.subr.bf16.mxu0 0
        %633 = vmatpush1.bf16.msra.mxu0 %v630
        %634 = vmatprep.subr.bf16.mxu0 0
        %635 = vmatpush1.bf16.msra.mxu0 0
        %636 = vmatprep.subr.bf16.mxu0 0
        %637 = vmatpush1.bf16.msra.mxu0 0
        %638 = vmatprep.subr.bf16.mxu0 0
        %639 = vmatpush1.bf16.msra.mxu0 0
        %640 = vmatprep.subr.bf16.mxu0 0
        %641 = vmatpush1.bf16.msra.mxu0 0
        %642 = vmatprep.subr.bf16.mxu0 0
        %643 = vmatpush1.bf16.msra.mxu0 0
        %644 = vmatprep.subr.bf16.mxu0 0
        %645 = vmatpush1.bf16.msra.mxu0 0
        %646 = vmatprep.subr.bf16.mxu0 0
        %647 = vmatpush1.bf16.msra.mxu0 0
        %648 = vmatprep.subr.bf16.mxu0 0
        %649 = vmatpush1.bf16.msra.mxu0 0
        %650 = vmatprep.subr.bf16.mxu0 0
        %651 = vmatpush1.bf16.msra.mxu0 0
        %652 = vmatprep.subr.bf16.mxu0 0
        %653 = vmatpush1.bf16.msra.mxu0 0
        %654 = vmatprep.subr.bf16.mxu0 0
        %655 = vmatpush1.bf16.msra.mxu0 0
        %656 = vmatprep.subr.bf16.mxu0 0
        %657 = vmatpush1.bf16.msra.mxu0 0
        %658 = vmatprep.subr.bf16.mxu0 0
        %659 = vmatpush1.bf16.msra.mxu0 0
        %660 = vmatprep.subr.bf16.mxu0 0
        %661 = vmatpush1.bf16.msra.mxu0 0
        %662 = vmatprep.subr.bf16.mxu0 0
        %663 = vmatpush1.bf16.msra.mxu0 0
        %664 = vmatprep.mubr.bf16.mxu0 0
        %665 = vmatmul.mubr.bf16.gmra.mrb[0].mxu0 %v621
        %v666 = vpop.f32.mrb[0].mxu0
        %v667 = vadd.f32 0.0, %v666
        %v668 = vpop.f32.mrb[0].mxu0
        %v669 = vpop.f32.mrb[0].mxu0
        %v670 = vadd.f32 0.0, %v669
        %v671 = vpop.f32.mrb[0].mxu0
        %672 = vmatprep.mubr.bf16.mxu0 0
        %673 = vmatmul.mubr.bf16.gmra.mrb[0].mxu0 %v624
        %v674 = vpop.f32.mrb[0].mxu0
        %v675 = vadd.f32 0.0, %v674
        %v676 = vpop.f32.mrb[0].mxu0
        %v677 = vpop.f32.mrb[0].mxu0
        %v678 = vadd.f32 0.0, %v677
        %v679 = vpop.f32.mrb[0].mxu0
        %680 = vmatprep.mubr.bf16.mxu0 0
        %681 = vmatmul.mubr.bf16.gmra.mrb[0].mxu0 %v627
        %v682 = vpop.f32.mrb[0].mxu0
        %v683 = vadd.f32 0.0, %v682
        %v684 = vpop.f32.mrb[0].mxu0
        %v685 = vpop.f32.mrb[0].mxu0
        %v686 = vpop.f32.mrb[0].mxu0
        %687 = vdwg.mxu0
        %v688 = vadd.f32 %v599, %v667
        %v689 = vadd.f32 %v600, %v670
        %v690 = vadd.f32 %v601, %v675
        %v691 = vadd.f32 %v602, %v678
        %v692 = vadd.f32 %v603, %v683
        %v693 = vld [vmem:[%s310 + $0x14] sm:$0xf]
        %s694 = scalar_lea.vmem %s3, 8
        %v695 = vld [vmem:[%s694] sm:$0x3]
        %v697 = vunpack.c.l.b16 %v693
        %v698 = vpack.c.b16 %v697, %v353
        %vm699 = vsmask.f32 4352
        %v701 = vshrl.u32 %v612, 16
        %v703 = vrot.slane %v701, 3
        %v704 = vshll.u32 %v612, 16
        %v706 = vrot.slane %v704, 4
        %v707 = vor.u32 %v703, %v706
        %v708 = vrot.slane %v371, 3
        %v709 = vrot.slane %v367, 4
        %v710 = vor.u32 %v708, %v709
        %v711 = vsel %vm699, %v707, %v710
        %v713 = vshrl.u32 %v698, 16
        %v715 = vrot.slane %v713, 3
        %v716 = vshll.u32 %v698, 16
        %v718 = vrot.slane %v716, 4
        %v719 = vor.u32 %v715, %v718
        %v720 = vsel %vm699, %v710, %v719
        %v722 = vsel %vm382, %v711, 0
        %v725 = vsel %vm382, %v720, 0
        %v728 = vsel %vm382, %v719, 0
        %v731 = vsel %vm392, %v695, 0
        %733 = vmatprep.subr.bf16.mxu0 0
        %734 = vmatpush1.bf16.msra.mxu0 %v731
        %735 = vmatprep.subr.bf16.mxu0 0
        %736 = vmatpush1.bf16.msra.mxu0 0
        %737 = vmatprep.subr.bf16.mxu0 0
        %738 = vmatpush1.bf16.msra.mxu0 0
        %739 = vmatprep.subr.bf16.mxu0 0
        %740 = vmatpush1.bf16.msra.mxu0 0
        %741 = vmatprep.subr.bf16.mxu0 0
        %742 = vmatpush1.bf16.msra.mxu0 0
        %743 = vmatprep.subr.bf16.mxu0 0
        %744 = vmatpush1.bf16.msra.mxu0 0
        %745 = vmatprep.subr.bf16.mxu0 0
        %746 = vmatpush1.bf16.msra.mxu0 0
        %747 = vmatprep.subr.bf16.mxu0 0
        %748 = vmatpush1.bf16.msra.mxu0 0
        %749 = vmatprep.subr.bf16.mxu0 0
        %750 = vmatpush1.bf16.msra.mxu0 0
        %751 = vmatprep.subr.bf16.mxu0 0
        %752 = vmatpush1.bf16.msra.mxu0 0
        %753 = vmatprep.subr.bf16.mxu0 0
        %754 = vmatpush1.bf16.msra.mxu0 0
        %755 = vmatprep.subr.bf16.mxu0 0
        %756 = vmatpush1.bf16.msra.mxu0 0
        %757 = vmatprep.subr.bf16.mxu0 0
        %758 = vmatpush1.bf16.msra.mxu0 0
        %759 = vmatprep.subr.bf16.mxu0 0
        %760 = vmatpush1.bf16.msra.mxu0 0
        %761 = vmatprep.subr.bf16.mxu0 0
        %762 = vmatpush1.bf16.msra.mxu0 0
        %763 = vmatprep.subr.bf16.mxu0 0
        %764 = vmatpush1.bf16.msra.mxu0 0
        %765 = vmatprep.mubr.bf16.mxu0 0
        %766 = vmatmul.mubr.bf16.gmra.mrb[0].mxu0 %v722
        %v767 = vpop.f32.mrb[0].mxu0
        %v768 = vadd.f32 0.0, %v767
        %v769 = vpop.f32.mrb[0].mxu0
        %v770 = vpop.f32.mrb[0].mxu0
        %v771 = vadd.f32 0.0, %v770
        %v772 = vpop.f32.mrb[0].mxu0
        %773 = vmatprep.mubr.bf16.mxu0 0
        %774 = vmatmul.mubr.bf16.gmra.mrb[0].mxu0 %v725
        %v775 = vpop.f32.mrb[0].mxu0
        %v776 = vadd.f32 0.0, %v775
        %v777 = vpop.f32.mrb[0].mxu0
        %v778 = vpop.f32.mrb[0].mxu0
        %v779 = vadd.f32 0.0, %v778
        %v780 = vpop.f32.mrb[0].mxu0
        %781 = vmatprep.mubr.bf16.mxu0 0
        %782 = vmatmul.mubr.bf16.gmra.mrb[0].mxu0 %v728
        %v783 = vpop.f32.mrb[0].mxu0
        %v784 = vadd.f32 0.0, %v783
        %v785 = vpop.f32.mrb[0].mxu0
        %v786 = vpop.f32.mrb[0].mxu0
        %v787 = vpop.f32.mrb[0].mxu0
        %788 = vdwg.mxu0
        %v789 = vadd.f32 %v688, %v768
        %v790 = vadd.f32 %v689, %v771
        %v791 = vadd.f32 %v690, %v776
        %v792 = vadd.f32 %v691, %v779
        %v793 = vadd.f32 %v692, %v784
        %s794 = scalar_lea.vmem %s3, 10
        %v795 = vld [vmem:[%s794] sm:$0x3]
        %v796 = vpack.c.b16 %v351, %v350
        %v797 = vpack.c.b16 %v353, %v352
        %v798 = vpack.c.b16 %v697, %v697
        %v800 = vsel %vm382, %v796, 0
        %v803 = vsel %vm382, %v797, 0
        %v806 = vsel %vm382, %v798, 0
        %v809 = vsel %vm392, %v795, 0
        %811 = vmatprep.subr.bf16.mxu0 0
        %812 = vmatpush1.bf16.msra.mxu0 %v809
        %813 = vmatprep.subr.bf16.mxu0 0
        %814 = vmatpush1.bf16.msra.mxu0 0
        %815 = vmatprep.subr.bf16.mxu0 0
        %816 = vmatpush1.bf16.msra.mxu0 0
        %817 = vmatprep.subr.bf16.mxu0 0
        %818 = vmatpush1.bf16.msra.mxu0 0
        %819 = vmatprep.subr.bf16.mxu0 0
        %820 = vmatpush1.bf16.msra.mxu0 0
        %821 = vmatprep.subr.bf16.mxu0 0
        %822 = vmatpush1.bf16.msra.mxu0 0
        %823 = vmatprep.subr.bf16.mxu0 0
        %824 = vmatpush1.bf16.msra.mxu0 0
        %825 = vmatprep.subr.bf16.mxu0 0
        %826 = vmatpush1.bf16.msra.mxu0 0
        %827 = vmatprep.subr.bf16.mxu0 0
        %828 = vmatpush1.bf16.msra.mxu0 0
        %829 = vmatprep.subr.bf16.mxu0 0
        %830 = vmatpush1.bf16.msra.mxu0 0
        %831 = vmatprep.subr.bf16.mxu0 0
        %832 = vmatpush1.bf16.msra.mxu0 0
        %833 = vmatprep.subr.bf16.mxu0 0
        %834 = vmatpush1.bf16.msra.mxu0 0
        %835 = vmatprep.subr.bf16.mxu0 0
        %836 = vmatpush1.bf16.msra.mxu0 0
        %837 = vmatprep.subr.bf16.mxu0 0
        %838 = vmatpush1.bf16.msra.mxu0 0
        %839 = vmatprep.subr.bf16.mxu0 0
        %840 = vmatpush1.bf16.msra.mxu0 0
        %841 = vmatprep.subr.bf16.mxu0 0
        %842 = vmatpush1.bf16.msra.mxu0 0
        %843 = vmatprep.mubr.bf16.mxu0 0
        %844 = vmatmul.mubr.bf16.gmra.mrb[0].mxu0 %v800
        %v845 = vpop.f32.mrb[0].mxu0
        %v846 = vadd.f32 0.0, %v845
        %v847 = vpop.f32.mrb[0].mxu0
        %v848 = vpop.f32.mrb[0].mxu0
        %v849 = vadd.f32 0.0, %v848
        %v850 = vpop.f32.mrb[0].mxu0
        %851 = vmatprep.mubr.bf16.mxu0 0
        %852 = vmatmul.mubr.bf16.gmra.mrb[0].mxu0 %v803
        %v853 = vpop.f32.mrb[0].mxu0
        %v854 = vadd.f32 0.0, %v853
        %v855 = vpop.f32.mrb[0].mxu0
        %v856 = vpop.f32.mrb[0].mxu0
        %v857 = vadd.f32 0.0, %v856
        %v858 = vpop.f32.mrb[0].mxu0
        %859 = vmatprep.mubr.bf16.mxu0 0
        %860 = vmatmul.mubr.bf16.gmra.mrb[0].mxu0 %v806
        %v861 = vpop.f32.mrb[0].mxu0
        %v862 = vadd.f32 0.0, %v861
        %v863 = vpop.f32.mrb[0].mxu0
        %v864 = vpop.f32.mrb[0].mxu0
        %v865 = vpop.f32.mrb[0].mxu0
        %866 = vdwg.mxu0
        %v867 = vadd.f32 %v789, %v846
        %v868 = vadd.f32 %v790, %v849
        %v869 = vadd.f32 %v791, %v854
        %v870 = vadd.f32 %v792, %v857
        %v871 = vadd.f32 %v793, %v862
        %v872 = vld [vmem:[%s310 + $0x4] sm:$0xc]
        %v873 = vld [vmem:[%s310 + $0x8] sm:$0xf]
        %v874 = vld [vmem:[%s310 + $0xc] sm:$0xf]
        %v875 = vld [vmem:[%s310 + $0x10] sm:$0xf]
        %v876 = vld [vmem:[%s310 + $0x14] sm:$0xf]
        %v877 = vld [vmem:[%s310 + $0x18] sm:$0x3]
        %s878 = scalar_lea.vmem %s3, 12
        %v879 = vld [vmem:[%s878] sm:$0x3]
        %v886 = vunpack.c.l.b16 %v872
        %v887 = vunpack.c.l.b16 %v873
        %v888 = vunpack.c.l.b16 %v874
        %v889 = vunpack.c.l.b16 %v875
        %v890 = vunpack.c.l.b16 %v876
        %v891 = vunpack.c.l.b16 %v877
        %v892 = vpack.c.b16 %v887, %v886
        %v893 = vpack.c.b16 %v889, %v888
        %v894 = vpack.c.b16 %v891, %v890
        %vm895 = vcmask 1045504
        %v896 = vrot.slane %v892, 2
        %v897 = vrot.slane %v893, 2
        %v898 = vsel %vm895, %v896, %v897
        %v899 = vrot.slane %v894, 2
        %v900 = vsel %vm895, %v897, %v899
        %v902 = vsel %vm382, %v898, 0
        %v905 = vsel %vm382, %v900, 0
        %v908 = vsel %vm382, %v899, 0
        %v911 = vsel %vm392, %v879, 0
        %913 = vmatprep.subr.bf16.mxu0 0
        %914 = vmatpush1.bf16.msra.mxu0 %v911
        %915 = vmatprep.subr.bf16.mxu0 0
        %916 = vmatpush1.bf16.msra.mxu0 0
        %917 = vmatprep.subr.bf16.mxu0 0
        %918 = vmatpush1.bf16.msra.mxu0 0
        %919 = vmatprep.subr.bf16.mxu0 0
        %920 = vmatpush1.bf16.msra.mxu0 0
        %921 = vmatprep.subr.bf16.mxu0 0
        %922 = vmatpush1.bf16.msra.mxu0 0
        %923 = vmatprep.subr.bf16.mxu0 0
        %924 = vmatpush1.bf16.msra.mxu0 0
        %925 = vmatprep.subr.bf16.mxu0 0
        %926 = vmatpush1.bf16.msra.mxu0 0
        %927 = vmatprep.subr.bf16.mxu0 0
        %928 = vmatpush1.bf16.msra.mxu0 0
        %929 = vmatprep.subr.bf16.mxu0 0
        %930 = vmatpush1.bf16.msra.mxu0 0
        %931 = vmatprep.subr.bf16.mxu0 0
        %932 = vmatpush1.bf16.msra.mxu0 0
        %933 = vmatprep.subr.bf16.mxu0 0
        %934 = vmatpush1.bf16.msra.mxu0 0
        %935 = vmatprep.subr.bf16.mxu0 0
        %936 = vmatpush1.bf16.msra.mxu0 0
        %937 = vmatprep.subr.bf16.mxu0 0
        %938 = vmatpush1.bf16.msra.mxu0 0
        %939 = vmatprep.subr.bf16.mxu0 0
        %940 = vmatpush1.bf16.msra.mxu0 0
        %941 = vmatprep.subr.bf16.mxu0 0
        %942 = vmatpush1.bf16.msra.mxu0 0
        %943 = vmatprep.subr.bf16.mxu0 0
        %944 = vmatpush1.bf16.msra.mxu0 0
        %945 = vmatprep.mubr.bf16.mxu0 0
        %946 = vmatmul.mubr.bf16.gmra.mrb[0].mxu0 %v902
        %v947 = vpop.f32.mrb[0].mxu0
        %v948 = vadd.f32 0.0, %v947
        %v949 = vpop.f32.mrb[0].mxu0
        %v950 = vpop.f32.mrb[0].mxu0
        %v951 = vadd.f32 0.0, %v950
        %v952 = vpop.f32.mrb[0].mxu0
        %953 = vmatprep.mubr.bf16.mxu0 0
        %954 = vmatmul.mubr.bf16.gmra.mrb[0].mxu0 %v905
        %v955 = vpop.f32.mrb[0].mxu0
        %v956 = vadd.f32 0.0, %v955
        %v957 = vpop.f32.mrb[0].mxu0
        %v958 = vpop.f32.mrb[0].mxu0
        %v959 = vadd.f32 0.0, %v958
        %v960 = vpop.f32.mrb[0].mxu0
        %961 = vmatprep.mubr.bf16.mxu0 0
        %962 = vmatmul.mubr.bf16.gmra.mrb[0].mxu0 %v908
        %v963 = vpop.f32.mrb[0].mxu0
        %v964 = vadd.f32 0.0, %v963
        %v965 = vpop.f32.mrb[0].mxu0
        %v966 = vpop.f32.mrb[0].mxu0
        %v967 = vpop.f32.mrb[0].mxu0
        %968 = vdwg.mxu0
        %v969 = vadd.f32 %v867, %v948
        %v970 = vadd.f32 %v868, %v951
        %v971 = vadd.f32 %v869, %v956
        %v972 = vadd.f32 %v870, %v959
        %v973 = vadd.f32 %v871, %v964
        %v974 = vld [vmem:[%s310 + $0x18] sm:$0x7]
        %s975 = scalar_lea.vmem %s3, 14
        %v976 = vld [vmem:[%s975] sm:$0x3]
        %v978 = vunpack.c.l.b16 %v974
        %v979 = vpack.c.b16 %v978, %v890
        %vm980 = vsmask.f32 5376
        %v982 = vshrl.u32 %v892, 16
        %v984 = vrot.slane %v982, 2
        %v985 = vshll.u32 %v892, 16
        %v987 = vrot.slane %v985, 3
        %v988 = vor.u32 %v984, %v987
        %v990 = vshrl.u32 %v893, 16
        %v992 = vrot.slane %v990, 2
        %v993 = vshll.u32 %v893, 16
        %v995 = vrot.slane %v993, 3
        %v996 = vor.u32 %v992, %v995
        %v997 = vsel %vm980, %v988, %v996
        %v999 = vshrl.u32 %v979, 16
        %v1001 = vrot.slane %v999, 2
        %v1002 = vshll.u32 %v979, 16
        %v1004 = vrot.slane %v1002, 3
        %v1005 = vor.u32 %v1001, %v1004
        %v1006 = vsel %vm980, %v996, %v1005
        %v1008 = vsel %vm382, %v997, 0
        %v1011 = vsel %vm382, %v1006, 0
        %v1014 = vsel %vm382, %v1005, 0
        %v1017 = vsel %vm392, %v976, 0
        %1019 = vmatprep.subr.bf16.mxu0 0
        %1020 = vmatpush1.bf16.msra.mxu0 %v1017
        %1021 = vmatprep.subr.bf16.mxu0 0
        %1022 = vmatpush1.bf16.msra.mxu0 0
        %1023 = vmatprep.subr.bf16.mxu0 0
        %1024 = vmatpush1.bf16.msra.mxu0 0
        %1025 = vmatprep.subr.bf16.mxu0 0
        %1026 = vmatpush1.bf16.msra.mxu0 0
        %1027 = vmatprep.subr.bf16.mxu0 0
        %1028 = vmatpush1.bf16.msra.mxu0 0
        %1029 = vmatprep.subr.bf16.mxu0 0
        %1030 = vmatpush1.bf16.msra.mxu0 0
        %1031 = vmatprep.subr.bf16.mxu0 0
        %1032 = vmatpush1.bf16.msra.mxu0 0
        %1033 = vmatprep.subr.bf16.mxu0 0
        %1034 = vmatpush1.bf16.msra.mxu0 0
        %1035 = vmatprep.subr.bf16.mxu0 0
        %1036 = vmatpush1.bf16.msra.mxu0 0
        %1037 = vmatprep.subr.bf16.mxu0 0
        %1038 = vmatpush1.bf16.msra.mxu0 0
        %1039 = vmatprep.subr.bf16.mxu0 0
        %1040 = vmatpush1.bf16.msra.mxu0 0
        %1041 = vmatprep.subr.bf16.mxu0 0
        %1042 = vmatpush1.bf16.msra.mxu0 0
        %1043 = vmatprep.subr.bf16.mxu0 0
        %1044 = vmatpush1.bf16.msra.mxu0 0
        %1045 = vmatprep.subr.bf16.mxu0 0
        %1046 = vmatpush1.bf16.msra.mxu0 0
        %1047 = vmatprep.subr.bf16.mxu0 0
        %1048 = vmatpush1.bf16.msra.mxu0 0
        %1049 = vmatprep.subr.bf16.mxu0 0
        %1050 = vmatpush1.bf16.msra.mxu0 0
        %1051 = vmatprep.mubr.bf16.mxu0 0
        %1052 = vmatmul.mubr.bf16.gmra.mrb[0].mxu0 %v1008
        %v1053 = vpop.f32.mrb[0].mxu0
        %v1054 = vadd.f32 0.0, %v1053
        %v1055 = vpop.f32.mrb[0].mxu0
        %v1056 = vpop.f32.mrb[0].mxu0
        %v1057 = vadd.f32 0.0, %v1056
        %v1058 = vpop.f32.mrb[0].mxu0
        %1059 = vmatprep.mubr.bf16.mxu0 0
        %1060 = vmatmul.mubr.bf16.gmra.mrb[0].mxu0 %v1011
        %v1061 = vpop.f32.mrb[0].mxu0
        %v1062 = vadd.f32 0.0, %v1061
        %v1063 = vpop.f32.mrb[0].mxu0
        %v1064 = vpop.f32.mrb[0].mxu0
        %v1065 = vadd.f32 0.0, %v1064
        %v1066 = vpop.f32.mrb[0].mxu0
        %1067 = vmatprep.mubr.bf16.mxu0 0
        %1068 = vmatmul.mubr.bf16.gmra.mrb[0].mxu0 %v1014
        %v1069 = vpop.f32.mrb[0].mxu0
        %v1070 = vadd.f32 0.0, %v1069
        %v1071 = vpop.f32.mrb[0].mxu0
        %v1072 = vpop.f32.mrb[0].mxu0
        %v1073 = vpop.f32.mrb[0].mxu0
        %1074 = vdwg.mxu0
        %v1075 = vadd.f32 %v969, %v1054
        %v1076 = vadd.f32 %v970, %v1057
        %v1077 = vadd.f32 %v971, %v1062
        %v1078 = vadd.f32 %v972, %v1065
        %v1079 = vadd.f32 %v973, %v1070
        %v1080 = vld [vmem:[%s310 + $0x4] sm:$0x8]
        %s1081 = scalar_lea.vmem %s3, 16
        %v1082 = vld [vmem:[%s1081] sm:$0x3]
        %v1084 = vunpack.c.l.b16 %v1080
        %v1085 = vpack.c.b16 %v887, %v1084
        %v1086 = vrot.slane %v1085, 3
        %v1087 = vrot.slane %v893, 3
        %v1088 = vsel %vm614, %v1086, %v1087
        %v1089 = vrot.slane %v979, 3
        %v1090 = vsel %vm614, %v1087, %v1089
        %v1092 = vsel %vm382, %v1088, 0
        %v1095 = vsel %vm382, %v1090, 0
        %v1098 = vsel %vm382, %v1089, 0
        %v1101 = vsel %vm392, %v1082, 0
        %1103 = vmatprep.subr.bf16.mxu0 0
        %1104 = vmatpush1.bf16.msra.mxu0 %v1101
        %1105 = vmatprep.subr.bf16.mxu0 0
        %1106 = vmatpush1.bf16.msra.mxu0 0
        %1107 = vmatprep.subr.bf16.mxu0 0
        %1108 = vmatpush1.bf16.msra.mxu0 0
        %1109 = vmatprep.subr.bf16.mxu0 0
        %1110 = vmatpush1.bf16.msra.mxu0 0
        %1111 = vmatprep.subr.bf16.mxu0 0
        %1112 = vmatpush1.bf16.msra.mxu0 0
        %1113 = vmatprep.subr.bf16.mxu0 0
        %1114 = vmatpush1.bf16.msra.mxu0 0
        %1115 = vmatprep.subr.bf16.mxu0 0
        %1116 = vmatpush1.bf16.msra.mxu0 0
        %1117 = vmatprep.subr.bf16.mxu0 0
        %1118 = vmatpush1.bf16.msra.mxu0 0
        %1119 = vmatprep.subr.bf16.mxu0 0
        %1120 = vmatpush1.bf16.msra.mxu0 0
        %1121 = vmatprep.subr.bf16.mxu0 0
        %1122 = vmatpush1.bf16.msra.mxu0 0
        %1123 = vmatprep.subr.bf16.mxu0 0
        %1124 = vmatpush1.bf16.msra.mxu0 0
        %1125 = vmatprep.subr.bf16.mxu0 0
        %1126 = vmatpush1.bf16.msra.mxu0 0
        %1127 = vmatprep.subr.bf16.mxu0 0
        %1128 = vmatpush1.bf16.msra.mxu0 0
        %1129 = vmatprep.subr.bf16.mxu0 0
        %1130 = vmatpush1.bf16.msra.mxu0 0
        %1131 = vmatprep.subr.bf16.mxu0 0
        %1132 = vmatpush1.bf16.msra.mxu0 0
        %1133 = vmatprep.subr.bf16.mxu0 0
        %1134 = vmatpush1.bf16.msra.mxu0 0
        %1135 = vmatprep.mubr.bf16.mxu0 0
        %1136 = vmatmul.mubr.bf16.gmra.mrb[0].mxu0 %v1092
        %v1137 = vpop.f32.mrb[0].mxu0
        %v1138 = vadd.f32 0.0, %v1137
        %v1139 = vpop.f32.mrb[0].mxu0
        %v1140 = vpop.f32.mrb[0].mxu0
        %v1141 = vadd.f32 0.0, %v1140
        %v1142 = vpop.f32.mrb[0].mxu0
        %1143 = vmatprep.mubr.bf16.mxu0 0
        %1144 = vmatmul.mubr.bf16.gmra.mrb[0].mxu0 %v1095
        %v1145 = vpop.f32.mrb[0].mxu0
        %v1146 = vadd.f32 0.0, %v1145
        %v1147 = vpop.f32.mrb[0].mxu0
        %v1148 = vpop.f32.mrb[0].mxu0
        %v1149 = vadd.f32 0.0, %v1148
        %v1150 = vpop.f32.mrb[0].mxu0
        %1151 = vmatprep.mubr.bf16.mxu0 0
        %1152 = vmatmul.mubr.bf16.gmra.mrb[0].mxu0 %v1098
        %v1153 = vpop.f32.mrb[0].mxu0
        %v1154 = vadd.f32 0.0, %v1153
        %v1155 = vpop.f32.mrb[0].mxu0
        %v1156 = vpop.f32.mrb[0].mxu0
        %v1157 = vpop.f32.mrb[0].mxu0
        %1158 = vdwg.mxu0
        %v1159 = vadd.f32 %v1075, %v1138
        %v1160 = vadd.f32 %v1076, %v1141
        %v1161 = vadd.f32 %v1077, %v1146
        %v1162 = vadd.f32 %v1078, %v1149
        %v1163 = vadd.f32 %v1079, %v1154
        %v1164 = vld [vmem:[%s320] sm:$0xf]
        %v1165 = vld [vmem:[%s320 + $0x4] sm:$0xf]
        %v1166 = vld [vmem:[%s320 + $0x8] sm:$0xf]
        %v1167 = vld [vmem:[%s320 + $0xc] sm:$0xf]
        %v1168 = vld [vmem:[%s320 + $0x10] sm:$0xf]
        %s1169 = scalar_lea.vmem %s3, 18
        %v1170 = vld [vmem:[%s1169] sm:$0x3]
        %v1176 = vunpack.c.l.b16 %v1164
        %v1177 = vunpack.c.l.b16 %v1165
        %v1178 = vunpack.c.l.b16 %v1166
        %v1179 = vunpack.c.l.b16 %v1167
        %v1180 = vunpack.c.l.b16 %v1168
        %v1181 = vpack.c.b16 %v1177, %v1176
        %v1182 = vpack.c.b16 %v1179, %v1178
        %v1183 = vpack.c.b16 %v1180, %v1180
        %v1185 = vsel %vm382, %v1181, 0
        %v1188 = vsel %vm382, %v1182, 0
        %v1191 = vsel %vm382, %v1183, 0
        %v1194 = vsel %vm392, %v1170, 0
        %1196 = vmatprep.subr.bf16.mxu0 0
        %1197 = vmatpush1.bf16.msra.mxu0 %v1194
        %1198 = vmatprep.subr.bf16.mxu0 0
        %1199 = vmatpush1.bf16.msra.mxu0 0
        %1200 = vmatprep.subr.bf16.mxu0 0
        %1201 = vmatpush1.bf16.msra.mxu0 0
        %1202 = vmatprep.subr.bf16.mxu0 0
        %1203 = vmatpush1.bf16.msra.mxu0 0
        %1204 = vmatprep.subr.bf16.mxu0 0
        %1205 = vmatpush1.bf16.msra.mxu0 0
        %1206 = vmatprep.subr.bf16.mxu0 0
        %1207 = vmatpush1.bf16.msra.mxu0 0
        %1208 = vmatprep.subr.bf16.mxu0 0
        %1209 = vmatpush1.bf16.msra.mxu0 0
        %1210 = vmatprep.subr.bf16.mxu0 0
        %1211 = vmatpush1.bf16.msra.mxu0 0
        %1212 = vmatprep.subr.bf16.mxu0 0
        %1213 = vmatpush1.bf16.msra.mxu0 0
        %1214 = vmatprep.subr.bf16.mxu0 0
        %1215 = vmatpush1.bf16.msra.mxu0 0
        %1216 = vmatprep.subr.bf16.mxu0 0
        %1217 = vmatpush1.bf16.msra.mxu0 0
        %1218 = vmatprep.subr.bf16.mxu0 0
        %1219 = vmatpush1.bf16.msra.mxu0 0
        %1220 = vmatprep.subr.bf16.mxu0 0
        %1221 = vmatpush1.bf16.msra.mxu0 0
        %1222 = vmatprep.subr.bf16.mxu0 0
        %1223 = vmatpush1.bf16.msra.mxu0 0
        %1224 = vmatprep.subr.bf16.mxu0 0
        %1225 = vmatpush1.bf16.msra.mxu0 0
        %1226 = vmatprep.subr.bf16.mxu0 0
        %1227 = vmatpush1.bf16.msra.mxu0 0
        %1228 = vmatprep.mubr.bf16.mxu0 0
        %1229 = vmatmul.mubr.bf16.gmra.mrb[0].mxu0 %v1185
        %v1230 = vpop.f32.mrb[0].mxu0
        %v1231 = vadd.f32 0.0, %v1230
        %v1232 = vpop.f32.mrb[0].mxu0
        %v1233 = vpop.f32.mrb[0].mxu0
        %v1234 = vadd.f32 0.0, %v1233
        %v1235 = vpop.f32.mrb[0].mxu0
        %1236 = vmatprep.mubr.bf16.mxu0 0
        %1237 = vmatmul.mubr.bf16.gmra.mrb[0].mxu0 %v1188
        %v1238 = vpop.f32.mrb[0].mxu0
        %v1239 = vadd.f32 0.0, %v1238
        %v1240 = vpop.f32.mrb[0].mxu0
        %v1241 = vpop.f32.mrb[0].mxu0
        %v1242 = vadd.f32 0.0, %v1241
        %v1243 = vpop.f32.mrb[0].mxu0
        %1244 = vmatprep.mubr.bf16.mxu0 0
        %1245 = vmatmul.mubr.bf16.gmra.mrb[0].mxu0 %v1191
        %v1246 = vpop.f32.mrb[0].mxu0
        %v1247 = vadd.f32 0.0, %v1246
        %v1248 = vpop.f32.mrb[0].mxu0
        %v1249 = vpop.f32.mrb[0].mxu0
        %v1250 = vpop.f32.mrb[0].mxu0
        %1251 = vdwg.mxu0
        %v1252 = vadd.f32 %v1159, %v1231
        %v1253 = vadd.f32 %v1160, %v1234
        %v1254 = vadd.f32 %v1161, %v1239
        %v1255 = vadd.f32 %v1162, %v1242
        %v1256 = vadd.f32 %v1163, %v1247
        %v1257 = vld [vmem:[%s320] sm:$0xf]
        %v1258 = vld [vmem:[%s320 + $0x4] sm:$0xf]
        %v1259 = vld [vmem:[%s320 + $0x8] sm:$0xf]
        %v1260 = vld [vmem:[%s320 + $0xc] sm:$0xf]
        %v1261 = vld [vmem:[%s320 + $0x10] sm:$0xf]
        %v1262 = vld [vmem:[%s320 + $0x14] sm:$0x1]
        %s1263 = scalar_lea.vmem %s3, 20
        %v1264 = vld [vmem:[%s1263] sm:$0x3]
        %v1271 = vunpack.c.l.b16 %v1257
        %v1272 = vunpack.c.l.b16 %v1258
        %v1273 = vunpack.c.l.b16 %v1259
        %v1274 = vunpack.c.l.b16 %v1260
        %v1275 = vunpack.c.l.b16 %v1261
        %v1276 = vunpack.c.l.b16 %v1262
        %v1277 = vpack.c.b16 %v1272, %v1271
        %v1278 = vpack.c.b16 %v1274, %v1273
        %v1279 = vpack.c.b16 %v1276, %v1275
        %v1281 = vshrl.u32 %v1277, 16
        %v1283 = vshll.u32 %v1277, 16
        %v1285 = vrot.slane %v1283, 1
        %v1286 = vor.u32 %v1281, %v1285
        %v1288 = vshll.u32 %v1278, 16
        %v1290 = vrot.slane %v1288, 1
        %v1291 = vsel %vm358, %v1286, %v1290
        %v1292 = vshrl.u32 %v1278, 16
        %v1294 = vor.u32 %v1292, %v1290
        %v1296 = vshll.u32 %v1279, 16
        %v1298 = vrot.slane %v1296, 1
        %v1299 = vsel %vm358, %v1294, %v1298
        %v1300 = vshrl.u32 %v1279, 16
        %v1302 = vor.u32 %v1300, %v1298
        %v1304 = vsel %vm382, %v1291, 0
        %v1307 = vsel %vm382, %v1299, 0
        %v1310 = vsel %vm382, %v1302, 0
        %v1313 = vsel %vm392, %v1264, 0
        %1315 = vmatprep.subr.bf16.mxu0 0
        %1316 = vmatpush1.bf16.msra.mxu0 %v1313
        %1317 = vmatprep.subr.bf16.mxu0 0
        %1318 = vmatpush1.bf16.msra.mxu0 0
        %1319 = vmatprep.subr.bf16.mxu0 0
        %1320 = vmatpush1.bf16.msra.mxu0 0
        %1321 = vmatprep.subr.bf16.mxu0 0
        %1322 = vmatpush1.bf16.msra.mxu0 0
        %1323 = vmatprep.subr.bf16.mxu0 0
        %1324 = vmatpush1.bf16.msra.mxu0 0
        %1325 = vmatprep.subr.bf16.mxu0 0
        %1326 = vmatpush1.bf16.msra.mxu0 0
        %1327 = vmatprep.subr.bf16.mxu0 0
        %1328 = vmatpush1.bf16.msra.mxu0 0
        %1329 = vmatprep.subr.bf16.mxu0 0
        %1330 = vmatpush1.bf16.msra.mxu0 0
        %1331 = vmatprep.subr.bf16.mxu0 0
        %1332 = vmatpush1.bf16.msra.mxu0 0
        %1333 = vmatprep.subr.bf16.mxu0 0
        %1334 = vmatpush1.bf16.msra.mxu0 0
        %1335 = vmatprep.subr.bf16.mxu0 0
        %1336 = vmatpush1.bf16.msra.mxu0 0
        %1337 = vmatprep.subr.bf16.mxu0 0
        %1338 = vmatpush1.bf16.msra.mxu0 0
        %1339 = vmatprep.subr.bf16.mxu0 0
        %1340 = vmatpush1.bf16.msra.mxu0 0
        %1341 = vmatprep.subr.bf16.mxu0 0
        %1342 = vmatpush1.bf16.msra.mxu0 0
        %1343 = vmatprep.subr.bf16.mxu0 0
        %1344 = vmatpush1.bf16.msra.mxu0 0
        %1345 = vmatprep.subr.bf16.mxu0 0
        %1346 = vmatpush1.bf16.msra.mxu0 0
        %1347 = vmatprep.mubr.bf16.mxu0 0
        %1348 = vmatmul.mubr.bf16.gmra.mrb[0].mxu0 %v1304
        %v1349 = vpop.f32.mrb[0].mxu0
        %v1350 = vadd.f32 0.0, %v1349
        %v1351 = vpop.f32.mrb[0].mxu0
        %v1352 = vpop.f32.mrb[0].mxu0
        %v1353 = vadd.f32 0.0, %v1352
        %v1354 = vpop.f32.mrb[0].mxu0
        %1355 = vmatprep.mubr.bf16.mxu0 0
        %1356 = vmatmul.mubr.bf16.gmra.mrb[0].mxu0 %v1307
        %v1357 = vpop.f32.mrb[0].mxu0
        %v1358 = vadd.f32 0.0, %v1357
        %v1359 = vpop.f32.mrb[0].mxu0
        %v1360 = vpop.f32.mrb[0].mxu0
        %v1361 = vadd.f32 0.0, %v1360
        %v1362 = vpop.f32.mrb[0].mxu0
        %1363 = vmatprep.mubr.bf16.mxu0 0
        %1364 = vmatmul.mubr.bf16.gmra.mrb[0].mxu0 %v1310
        %v1365 = vpop.f32.mrb[0].mxu0
        %v1366 = vadd.f32 0.0, %v1365
        %v1367 = vpop.f32.mrb[0].mxu0
        %v1368 = vpop.f32.mrb[0].mxu0
        %v1369 = vpop.f32.mrb[0].mxu0
        %1370 = vdwg.mxu0
        %v1371 = vadd.f32 %v1252, %v1350
        %v1372 = vadd.f32 %v1253, %v1353
        %v1373 = vadd.f32 %v1254, %v1358
        %v1374 = vadd.f32 %v1255, %v1361
        %v1375 = vadd.f32 %v1256, %v1366
        %v1376 = vld [vmem:[%s320] sm:$0xe]
        %s1377 = scalar_lea.vmem %s3, 22
        %v1378 = vld [vmem:[%s1377] sm:$0x3]
        %v1380 = vunpack.c.l.b16 %v1376
        %v1381 = vpack.c.b16 %v1272, %v1380
        %v1382 = vrot.slane %v1381, 1
        %v1383 = vrot.slane %v1278, 1
        %v1384 = vsel %vm525, %v1382, %v1383
        %v1385 = vrot.slane %v1279, 1
        %v1386 = vsel %vm525, %v1383, %v1385
        %v1388 = vsel %vm382, %v1384, 0
        %v1391 = vsel %vm382, %v1386, 0
        %v1394 = vsel %vm382, %v1385, 0
        %v1397 = vsel %vm392, %v1378, 0
        %1399 = vmatprep.subr.bf16.mxu0 0
        %1400 = vmatpush1.bf16.msra.mxu0 %v1397
        %1401 = vmatprep.subr.bf16.mxu0 0
        %1402 = vmatpush1.bf16.msra.mxu0 0
        %1403 = vmatprep.subr.bf16.mxu0 0
        %1404 = vmatpush1.bf16.msra.mxu0 0
        %1405 = vmatprep.subr.bf16.mxu0 0
        %1406 = vmatpush1.bf16.msra.mxu0 0
        %1407 = vmatprep.subr.bf16.mxu0 0
        %1408 = vmatpush1.bf16.msra.mxu0 0
        %1409 = vmatprep.subr.bf16.mxu0 0
        %1410 = vmatpush1.bf16.msra.mxu0 0
        %1411 = vmatprep.subr.bf16.mxu0 0
        %1412 = vmatpush1.bf16.msra.mxu0 0
        %1413 = vmatprep.subr.bf16.mxu0 0
        %1414 = vmatpush1.bf16.msra.mxu0 0
        %1415 = vmatprep.subr.bf16.mxu0 0
        %1416 = vmatpush1.bf16.msra.mxu0 0
        %1417 = vmatprep.subr.bf16.mxu0 0
        %1418 = vmatpush1.bf16.msra.mxu0 0
        %1419 = vmatprep.subr.bf16.mxu0 0
        %1420 = vmatpush1.bf16.msra.mxu0 0
        %1421 = vmatprep.subr.bf16.mxu0 0
        %1422 = vmatpush1.bf16.msra.mxu0 0
        %1423 = vmatprep.subr.bf16.mxu0 0
        %1424 = vmatpush1.bf16.msra.mxu0 0
        %1425 = vmatprep.subr.bf16.mxu0 0
        %1426 = vmatpush1.bf16.msra.mxu0 0
        %1427 = vmatprep.subr.bf16.mxu0 0
        %1428 = vmatpush1.bf16.msra.mxu0 0
        %1429 = vmatprep.subr.bf16.mxu0 0
        %1430 = vmatpush1.bf16.msra.mxu0 0
        %1431 = vmatprep.mubr.bf16.mxu0 0
        %1432 = vmatmul.mubr.bf16.gmra.mrb[0].mxu0 %v1388
        %v1433 = vpop.f32.mrb[0].mxu0
        %v1434 = vadd.f32 0.0, %v1433
        %v1435 = vpop.f32.mrb[0].mxu0
        %v1436 = vpop.f32.mrb[0].mxu0
        %v1437 = vadd.f32 0.0, %v1436
        %v1438 = vpop.f32.mrb[0].mxu0
        %1439 = vmatprep.mubr.bf16.mxu0 0
        %1440 = vmatmul.mubr.bf16.gmra.mrb[0].mxu0 %v1391
        %v1441 = vpop.f32.mrb[0].mxu0
        %v1442 = vadd.f32 0.0, %v1441
        %v1443 = vpop.f32.mrb[0].mxu0
        %v1444 = vpop.f32.mrb[0].mxu0
        %v1445 = vadd.f32 0.0, %v1444
        %v1446 = vpop.f32.mrb[0].mxu0
        %1447 = vmatprep.mubr.bf16.mxu0 0
        %1448 = vmatmul.mubr.bf16.gmra.mrb[0].mxu0 %v1394
        %v1449 = vpop.f32.mrb[0].mxu0
        %v1450 = vadd.f32 0.0, %v1449
        %v1451 = vpop.f32.mrb[0].mxu0
        %v1452 = vpop.f32.mrb[0].mxu0
        %v1453 = vpop.f32.mrb[0].mxu0
        %1454 = vdwg.mxu0
        %v1455 = vadd.f32 %v1371, %v1434
        %v1456 = vadd.f32 %v1372, %v1437
        %v1457 = vadd.f32 %v1373, %v1442
        %v1458 = vadd.f32 %v1374, %v1445
        %v1459 = vadd.f32 %v1375, %v1450
        %v1460 = vld [vmem:[%s320] sm:$0x8]
        %v1461 = vld [vmem:[%s320 + $0x14] sm:$0x7]
        %s1462 = scalar_lea.vmem %s3, 24
        %v1463 = vld [vmem:[%s1462] sm:$0x3]
        %v1466 = vunpack.c.l.b16 %v1460
        %v1467 = vunpack.c.l.b16 %v1461
        %v1468 = vpack.c.b16 %v1272, %v1466
        %v1469 = vpack.c.b16 %v1467, %v1275
        %v1470 = vrot.slane %v1468, 3
        %v1471 = vrot.slane %v1278, 3
        %v1472 = vsel %vm614, %v1470, %v1471
        %v1473 = vrot.slane %v1469, 3
        %v1474 = vsel %vm614, %v1471, %v1473
        %v1476 = vsel %vm382, %v1472, 0
        %v1479 = vsel %vm382, %v1474, 0
        %v1482 = vsel %vm382, %v1473, 0
        %v1485 = vsel %vm392, %v1463, 0
        %1487 = vmatprep.subr.bf16.mxu0 0
        %1488 = vmatpush1.bf16.msra.mxu0 %v1485
        %1489 = vmatprep.subr.bf16.mxu0 0
        %1490 = vmatpush1.bf16.msra.mxu0 0
        %1491 = vmatprep.subr.bf16.mxu0 0
        %1492 = vmatpush1.bf16.msra.mxu0 0
        %1493 = vmatprep.subr.bf16.mxu0 0
        %1494 = vmatpush1.bf16.msra.mxu0 0
        %1495 = vmatprep.subr.bf16.mxu0 0
        %1496 = vmatpush1.bf16.msra.mxu0 0
        %1497 = vmatprep.subr.bf16.mxu0 0
        %1498 = vmatpush1.bf16.msra.mxu0 0
        %1499 = vmatprep.subr.bf16.mxu0 0
        %1500 = vmatpush1.bf16.msra.mxu0 0
        %1501 = vmatprep.subr.bf16.mxu0 0
        %1502 = vmatpush1.bf16.msra.mxu0 0
        %1503 = vmatprep.subr.bf16.mxu0 0
        %1504 = vmatpush1.bf16.msra.mxu0 0
        %1505 = vmatprep.subr.bf16.mxu0 0
        %1506 = vmatpush1.bf16.msra.mxu0 0
        %1507 = vmatprep.subr.bf16.mxu0 0
        %1508 = vmatpush1.bf16.msra.mxu0 0
        %1509 = vmatprep.subr.bf16.mxu0 0
        %1510 = vmatpush1.bf16.msra.mxu0 0
        %1511 = vmatprep.subr.bf16.mxu0 0
        %1512 = vmatpush1.bf16.msra.mxu0 0
        %1513 = vmatprep.subr.bf16.mxu0 0
        %1514 = vmatpush1.bf16.msra.mxu0 0
        %1515 = vmatprep.subr.bf16.mxu0 0
        %1516 = vmatpush1.bf16.msra.mxu0 0
        %1517 = vmatprep.subr.bf16.mxu0 0
        %1518 = vmatpush1.bf16.msra.mxu0 0
        %1519 = vmatprep.mubr.bf16.mxu0 0
        %1520 = vmatmul.mubr.bf16.gmra.mrb[0].mxu0 %v1476
        %v1521 = vpop.f32.mrb[0].mxu0
        %v1522 = vadd.f32 0.0, %v1521
        %v1523 = vpop.f32.mrb[0].mxu0
        %v1524 = vpop.f32.mrb[0].mxu0
        %v1525 = vadd.f32 0.0, %v1524
        %v1526 = vpop.f32.mrb[0].mxu0
        %1527 = vmatprep.mubr.bf16.mxu0 0
        %1528 = vmatmul.mubr.bf16.gmra.mrb[0].mxu0 %v1479
        %v1529 = vpop.f32.mrb[0].mxu0
        %v1530 = vadd.f32 0.0, %v1529
        %v1531 = vpop.f32.mrb[0].mxu0
        %v1532 = vpop.f32.mrb[0].mxu0
        %v1533 = vadd.f32 0.0, %v1532
        %v1534 = vpop.f32.mrb[0].mxu0
        %1535 = vmatprep.mubr.bf16.mxu0 0
        %1536 = vmatmul.mubr.bf16.gmra.mrb[0].mxu0 %v1482
        %v1537 = vpop.f32.mrb[0].mxu0
        %v1538 = vadd.f32 0.0, %v1537
        %v1539 = vpop.f32.mrb[0].mxu0
        %v1540 = vpop.f32.mrb[0].mxu0
        %v1541 = vpop.f32.mrb[0].mxu0
        %1542 = vdwg.mxu0
        %v1543 = vadd.f32 %v1455, %v1522
        %v1544 = vadd.f32 %v1456, %v1525
        %v1545 = vadd.f32 %v1457, %v1530
        %v1546 = vadd.f32 %v1458, %v1533
        %v1547 = vadd.f32 %v1459, %v1538
        %v1548 = vld [vmem:[%s320 + $0x14] sm:$0xf]
        %s1549 = scalar_lea.vmem %s3, 26
        %v1550 = vld [vmem:[%s1549] sm:$0x3]
        %v1552 = vunpack.c.l.b16 %v1548
        %v1553 = vpack.c.b16 %v1552, %v1275
        %v1555 = vshrl.u32 %v1468, 16
        %v1557 = vrot.slane %v1555, 3
        %v1558 = vshll.u32 %v1468, 16
        %v1560 = vrot.slane %v1558, 4
        %v1561 = vor.u32 %v1557, %v1560
        %v1562 = vrot.slane %v1292, 3
        %v1563 = vrot.slane %v1288, 4
        %v1564 = vor.u32 %v1562, %v1563
        %v1565 = vsel %vm699, %v1561, %v1564
        %v1567 = vshrl.u32 %v1553, 16
        %v1569 = vrot.slane %v1567, 3
        %v1570 = vshll.u32 %v1553, 16
        %v1572 = vrot.slane %v1570, 4
        %v1573 = vor.u32 %v1569, %v1572
        %v1574 = vsel %vm699, %v1564, %v1573
        %v1576 = vsel %vm382, %v1565, 0
        %v1579 = vsel %vm382, %v1574, 0
        %v1582 = vsel %vm382, %v1573, 0
        %v1585 = vsel %vm392, %v1550, 0
        %1587 = vmatprep.subr.bf16.mxu0 0
        %1588 = vmatpush1.bf16.msra.mxu0 %v1585
        %1589 = vmatprep.subr.bf16.mxu0 0
        %1590 = vmatpush1.bf16.msra.mxu0 0
        %1591 = vmatprep.subr.bf16.mxu0 0
        %1592 = vmatpush1.bf16.msra.mxu0 0
        %1593 = vmatprep.subr.bf16.mxu0 0
        %1594 = vmatpush1.bf16.msra.mxu0 0
        %1595 = vmatprep.subr.bf16.mxu0 0
        %1596 = vmatpush1.bf16.msra.mxu0 0
        %1597 = vmatprep.subr.bf16.mxu0 0
        %1598 = vmatpush1.bf16.msra.mxu0 0
        %1599 = vmatprep.subr.bf16.mxu0 0
        %1600 = vmatpush1.bf16.msra.mxu0 0
        %1601 = vmatprep.subr.bf16.mxu0 0
        %1602 = vmatpush1.bf16.msra.mxu0 0
        %1603 = vmatprep.subr.bf16.mxu0 0
        %1604 = vmatpush1.bf16.msra.mxu0 0
        %1605 = vmatprep.subr.bf16.mxu0 0
        %1606 = vmatpush1.bf16.msra.mxu0 0
        %1607 = vmatprep.subr.bf16.mxu0 0
        %1608 = vmatpush1.bf16.msra.mxu0 0
        %1609 = vmatprep.subr.bf16.mxu0 0
        %1610 = vmatpush1.bf16.msra.mxu0 0
        %1611 = vmatprep.subr.bf16.mxu0 0
        %1612 = vmatpush1.bf16.msra.mxu0 0
        %1613 = vmatprep.subr.bf16.mxu0 0
        %1614 = vmatpush1.bf16.msra.mxu0 0
        %1615 = vmatprep.subr.bf16.mxu0 0
        %1616 = vmatpush1.bf16.msra.mxu0 0
        %1617 = vmatprep.subr.bf16.mxu0 0
        %1618 = vmatpush1.bf16.msra.mxu0 0
        %1619 = vmatprep.mubr.bf16.mxu0 0
        %1620 = vmatmul.mubr.bf16.gmra.mrb[0].mxu0 %v1576
        %v1621 = vpop.f32.mrb[0].mxu0
        %v1622 = vadd.f32 0.0, %v1621
        %v1623 = vpop.f32.mrb[0].mxu0
        %v1624 = vpop.f32.mrb[0].mxu0
        %v1625 = vadd.f32 0.0, %v1624
        %v1626 = vpop.f32.mrb[0].mxu0
        %1627 = vmatprep.mubr.bf16.mxu0 0
        %1628 = vmatmul.mubr.bf16.gmra.mrb[0].mxu0 %v1579
        %v1629 = vpop.f32.mrb[0].mxu0
        %v1630 = vadd.f32 0.0, %v1629
        %v1631 = vpop.f32.mrb[0].mxu0
        %v1632 = vpop.f32.mrb[0].mxu0
        %v1633 = vadd.f32 0.0, %v1632
        %v1634 = vpop.f32.mrb[0].mxu0
        %1635 = vmatprep.mubr.bf16.mxu0 0
        %1636 = vmatmul.mubr.bf16.gmra.mrb[0].mxu0 %v1582
        %v1637 = vpop.f32.mrb[0].mxu0
        %v1638 = vadd.f32 0.0, %v1637
        %v1639 = vpop.f32.mrb[0].mxu0
        %v1640 = vpop.f32.mrb[0].mxu0
        %v1641 = vpop.f32.mrb[0].mxu0
        %1642 = vdwg.mxu0
        %v1643 = vadd.f32 %v1543, %v1622
        %v1644 = vadd.f32 %v1544, %v1625
        %v1645 = vadd.f32 %v1545, %v1630
        %v1646 = vadd.f32 %v1546, %v1633
        %v1647 = vadd.f32 %v1547, %v1638
        %s1648 = scalar_lea.vmem %s3, 28
        %v1649 = vld [vmem:[%s1648] sm:$0x3]
        %v1650 = vpack.c.b16 %v1273, %v1272
        %v1651 = vpack.c.b16 %v1275, %v1274
        %v1652 = vpack.c.b16 %v1552, %v1552
        %v1654 = vsel %vm382, %v1650, 0
        %v1657 = vsel %vm382, %v1651, 0
        %v1660 = vsel %vm382, %v1652, 0
        %v1663 = vsel %vm392, %v1649, 0
        %1665 = vmatprep.subr.bf16.mxu0 0
        %1666 = vmatpush1.bf16.msra.mxu0 %v1663
        %1667 = vmatprep.subr.bf16.mxu0 0
        %1668 = vmatpush1.bf16.msra.mxu0 0
        %1669 = vmatprep.subr.bf16.mxu0 0
        %1670 = vmatpush1.bf16.msra.mxu0 0
        %1671 = vmatprep.subr.bf16.mxu0 0
        %1672 = vmatpush1.bf16.msra.mxu0 0
        %1673 = vmatprep.subr.bf16.mxu0 0
        %1674 = vmatpush1.bf16.msra.mxu0 0
        %1675 = vmatprep.subr.bf16.mxu0 0
        %1676 = vmatpush1.bf16.msra.mxu0 0
        %1677 = vmatprep.subr.bf16.mxu0 0
        %1678 = vmatpush1.bf16.msra.mxu0 0
        %1679 = vmatprep.subr.bf16.mxu0 0
        %1680 = vmatpush1.bf16.msra.mxu0 0
        %1681 = vmatprep.subr.bf16.mxu0 0
        %1682 = vmatpush1.bf16.msra.mxu0 0
        %1683 = vmatprep.subr.bf16.mxu0 0
        %1684 = vmatpush1.bf16.msra.mxu0 0
        %1685 = vmatprep.subr.bf16.mxu0 0
        %1686 = vmatpush1.bf16.msra.mxu0 0
        %1687 = vmatprep.subr.bf16.mxu0 0
        %1688 = vmatpush1.bf16.msra.mxu0 0
        %1689 = vmatprep.subr.bf16.mxu0 0
        %1690 = vmatpush1.bf16.msra.mxu0 0
        %1691 = vmatprep.subr.bf16.mxu0 0
        %1692 = vmatpush1.bf16.msra.mxu0 0
        %1693 = vmatprep.subr.bf16.mxu0 0
        %1694 = vmatpush1.bf16.msra.mxu0 0
        %1695 = vmatprep.subr.bf16.mxu0 0
        %1696 = vmatpush1.bf16.msra.mxu0 0
        %1697 = vmatprep.mubr.bf16.mxu0 0
        %1698 = vmatmul.mubr.bf16.gmra.mrb[0].mxu0 %v1654
        %v1699 = vpop.f32.mrb[0].mxu0
        %v1700 = vadd.f32 0.0, %v1699
        %v1701 = vpop.f32.mrb[0].mxu0
        %v1702 = vpop.f32.mrb[0].mxu0
        %v1703 = vadd.f32 0.0, %v1702
        %v1704 = vpop.f32.mrb[0].mxu0
        %1705 = vmatprep.mubr.bf16.mxu0 0
        %1706 = vmatmul.mubr.bf16.gmra.mrb[0].mxu0 %v1657
        %v1707 = vpop.f32.mrb[0].mxu0
        %v1708 = vadd.f32 0.0, %v1707
        %v1709 = vpop.f32.mrb[0].mxu0
        %v1710 = vpop.f32.mrb[0].mxu0
        %v1711 = vadd.f32 0.0, %v1710
        %v1712 = vpop.f32.mrb[0].mxu0
        %1713 = vmatprep.mubr.bf16.mxu0 0
        %1714 = vmatmul.mubr.bf16.gmra.mrb[0].mxu0 %v1660
        %v1715 = vpop.f32.mrb[0].mxu0
        %v1716 = vadd.f32 0.0, %v1715
        %v1717 = vpop.f32.mrb[0].mxu0
        %v1718 = vpop.f32.mrb[0].mxu0
        %v1719 = vpop.f32.mrb[0].mxu0
        %1720 = vdwg.mxu0
        %v1721 = vadd.f32 %v1643, %v1700
        %v1722 = vadd.f32 %v1644, %v1703
        %v1723 = vadd.f32 %v1645, %v1708
        %v1724 = vadd.f32 %v1646, %v1711
        %v1725 = vadd.f32 %v1647, %v1716
        %v1726 = vld [vmem:[%s320 + $0x4] sm:$0xc]
        %v1727 = vld [vmem:[%s320 + $0x8] sm:$0xf]
        %v1728 = vld [vmem:[%s320 + $0xc] sm:$0xf]
        %v1729 = vld [vmem:[%s320 + $0x10] sm:$0xf]
        %v1730 = vld [vmem:[%s320 + $0x14] sm:$0xf]
        %v1731 = vld [vmem:[%s320 + $0x18] sm:$0x3]
        %s1732 = scalar_lea.vmem %s3, 30
        %v1733 = vld [vmem:[%s1732] sm:$0x3]
        %v1740 = vunpack.c.l.b16 %v1726
        %v1741 = vunpack.c.l.b16 %v1727
        %v1742 = vunpack.c.l.b16 %v1728
        %v1743 = vunpack.c.l.b16 %v1729
        %v1744 = vunpack.c.l.b16 %v1730
        %v1745 = vunpack.c.l.b16 %v1731
        %v1746 = vpack.c.b16 %v1741, %v1740
        %v1747 = vpack.c.b16 %v1743, %v1742
        %v1748 = vpack.c.b16 %v1745, %v1744
        %v1749 = vrot.slane %v1746, 2
        %v1750 = vrot.slane %v1747, 2
        %v1751 = vsel %vm895, %v1749, %v1750
        %v1752 = vrot.slane %v1748, 2
        %v1753 = vsel %vm895, %v1750, %v1752
        %v1755 = vsel %vm382, %v1751, 0
        %v1758 = vsel %vm382, %v1753, 0
        %v1761 = vsel %vm382, %v1752, 0
        %v1764 = vsel %vm392, %v1733, 0
        %1766 = vmatprep.subr.bf16.mxu0 0
        %1767 = vmatpush1.bf16.msra.mxu0 %v1764
        %1768 = vmatprep.subr.bf16.mxu0 0
        %1769 = vmatpush1.bf16.msra.mxu0 0
        %1770 = vmatprep.subr.bf16.mxu0 0
        %1771 = vmatpush1.bf16.msra.mxu0 0
        %1772 = vmatprep.subr.bf16.mxu0 0
        %1773 = vmatpush1.bf16.msra.mxu0 0
        %1774 = vmatprep.subr.bf16.mxu0 0
        %1775 = vmatpush1.bf16.msra.mxu0 0
        %1776 = vmatprep.subr.bf16.mxu0 0
        %1777 = vmatpush1.bf16.msra.mxu0 0
        %1778 = vmatprep.subr.bf16.mxu0 0
        %1779 = vmatpush1.bf16.msra.mxu0 0
        %1780 = vmatprep.subr.bf16.mxu0 0
        %1781 = vmatpush1.bf16.msra.mxu0 0
        %1782 = vmatprep.subr.bf16.mxu0 0
        %1783 = vmatpush1.bf16.msra.mxu0 0
        %1784 = vmatprep.subr.bf16.mxu0 0
        %1785 = vmatpush1.bf16.msra.mxu0 0
        %1786 = vmatprep.subr.bf16.mxu0 0
        %1787 = vmatpush1.bf16.msra.mxu0 0
        %1788 = vmatprep.subr.bf16.mxu0 0
        %1789 = vmatpush1.bf16.msra.mxu0 0
        %1790 = vmatprep.subr.bf16.mxu0 0
        %1791 = vmatpush1.bf16.msra.mxu0 0
        %1792 = vmatprep.subr.bf16.mxu0 0
        %1793 = vmatpush1.bf16.msra.mxu0 0
        %1794 = vmatprep.subr.bf16.mxu0 0
        %1795 = vmatpush1.bf16.msra.mxu0 0
        %1796 = vmatprep.subr.bf16.mxu0 0
        %1797 = vmatpush1.bf16.msra.mxu0 0
        %1798 = vmatprep.mubr.bf16.mxu0 0
        %1799 = vmatmul.mubr.bf16.gmra.mrb[0].mxu0 %v1755
        %v1800 = vpop.f32.mrb[0].mxu0
        %v1801 = vadd.f32 0.0, %v1800
        %v1802 = vpop.f32.mrb[0].mxu0
        %v1803 = vpop.f32.mrb[0].mxu0
        %v1804 = vadd.f32 0.0, %v1803
        %v1805 = vpop.f32.mrb[0].mxu0
        %1806 = vmatprep.mubr.bf16.mxu0 0
        %1807 = vmatmul.mubr.bf16.gmra.mrb[0].mxu0 %v1758
        %v1808 = vpop.f32.mrb[0].mxu0
        %v1809 = vadd.f32 0.0, %v1808
        %v1810 = vpop.f32.mrb[0].mxu0
        %v1811 = vpop.f32.mrb[0].mxu0
        %v1812 = vadd.f32 0.0, %v1811
        %v1813 = vpop.f32.mrb[0].mxu0
        %1814 = vmatprep.mubr.bf16.mxu0 0
        %1815 = vmatmul.mubr.bf16.gmra.mrb[0].mxu0 %v1761
        %v1816 = vpop.f32.mrb[0].mxu0
        %v1817 = vadd.f32 0.0, %v1816
        %v1818 = vpop.f32.mrb[0].mxu0
        %v1819 = vpop.f32.mrb[0].mxu0
        %v1820 = vpop.f32.mrb[0].mxu0
        %1821 = vdwg.mxu0
        %v1822 = vadd.f32 %v1721, %v1801
        %v1823 = vadd.f32 %v1722, %v1804
        %v1824 = vadd.f32 %v1723, %v1809
        %v1825 = vadd.f32 %v1724, %v1812
        %v1826 = vadd.f32 %v1725, %v1817
        %v1827 = vld [vmem:[%s320 + $0x18] sm:$0x7]
        %s1828 = scalar_lea.vmem %s3, 32
        %v1829 = vld [vmem:[%s1828] sm:$0x3]
        %v1831 = vunpack.c.l.b16 %v1827
        %v1832 = vpack.c.b16 %v1831, %v1744
        %v1834 = vshrl.u32 %v1746, 16
        %v1836 = vrot.slane %v1834, 2
        %v1837 = vshll.u32 %v1746, 16
        %v1839 = vrot.slane %v1837, 3
        %v1840 = vor.u32 %v1836, %v1839
        %v1842 = vshrl.u32 %v1747, 16
        %v1844 = vrot.slane %v1842, 2
        %v1845 = vshll.u32 %v1747, 16
        %v1847 = vrot.slane %v1845, 3
        %v1848 = vor.u32 %v1844, %v1847
        %v1849 = vsel %vm980, %v1840, %v1848
        %v1851 = vshrl.u32 %v1832, 16
        %v1853 = vrot.slane %v1851, 2
        %v1854 = vshll.u32 %v1832, 16
        %v1856 = vrot.slane %v1854, 3
        %v1857 = vor.u32 %v1853, %v1856
        %v1858 = vsel %vm980, %v1848, %v1857
        %v1860 = vsel %vm382, %v1849, 0
        %v1863 = vsel %vm382, %v1858, 0
        %v1866 = vsel %vm382, %v1857, 0
        %v1869 = vsel %vm392, %v1829, 0
        %1871 = vmatprep.subr.bf16.mxu0 0
        %1872 = vmatpush1.bf16.msra.mxu0 %v1869
        %1873 = vmatprep.subr.bf16.mxu0 0
        %1874 = vmatpush1.bf16.msra.mxu0 0
        %1875 = vmatprep.subr.bf16.mxu0 0
        %1876 = vmatpush1.bf16.msra.mxu0 0
        %1877 = vmatprep.subr.bf16.mxu0 0
        %1878 = vmatpush1.bf16.msra.mxu0 0
        %1879 = vmatprep.subr.bf16.mxu0 0
        %1880 = vmatpush1.bf16.msra.mxu0 0
        %1881 = vmatprep.subr.bf16.mxu0 0
        %1882 = vmatpush1.bf16.msra.mxu0 0
        %1883 = vmatprep.subr.bf16.mxu0 0
        %1884 = vmatpush1.bf16.msra.mxu0 0
        %1885 = vmatprep.subr.bf16.mxu0 0
        %1886 = vmatpush1.bf16.msra.mxu0 0
        %1887 = vmatprep.subr.bf16.mxu0 0
        %1888 = vmatpush1.bf16.msra.mxu0 0
        %1889 = vmatprep.subr.bf16.mxu0 0
        %1890 = vmatpush1.bf16.msra.mxu0 0
        %1891 = vmatprep.subr.bf16.mxu0 0
        %1892 = vmatpush1.bf16.msra.mxu0 0
        %1893 = vmatprep.subr.bf16.mxu0 0
        %1894 = vmatpush1.bf16.msra.mxu0 0
        %1895 = vmatprep.subr.bf16.mxu0 0
        %1896 = vmatpush1.bf16.msra.mxu0 0
        %1897 = vmatprep.subr.bf16.mxu0 0
        %1898 = vmatpush1.bf16.msra.mxu0 0
        %1899 = vmatprep.subr.bf16.mxu0 0
        %1900 = vmatpush1.bf16.msra.mxu0 0
        %1901 = vmatprep.subr.bf16.mxu0 0
        %1902 = vmatpush1.bf16.msra.mxu0 0
        %1903 = vmatprep.mubr.bf16.mxu0 0
        %1904 = vmatmul.mubr.bf16.gmra.mrb[0].mxu0 %v1860
        %v1905 = vpop.f32.mrb[0].mxu0
        %v1906 = vadd.f32 0.0, %v1905
        %v1907 = vpop.f32.mrb[0].mxu0
        %v1908 = vpop.f32.mrb[0].mxu0
        %v1909 = vadd.f32 0.0, %v1908
        %v1910 = vpop.f32.mrb[0].mxu0
        %1911 = vmatprep.mubr.bf16.mxu0 0
        %1912 = vmatmul.mubr.bf16.gmra.mrb[0].mxu0 %v1863
        %v1913 = vpop.f32.mrb[0].mxu0
        %v1914 = vadd.f32 0.0, %v1913
        %v1915 = vpop.f32.mrb[0].mxu0
        %v1916 = vpop.f32.mrb[0].mxu0
        %v1917 = vadd.f32 0.0, %v1916
        %v1918 = vpop.f32.mrb[0].mxu0
        %1919 = vmatprep.mubr.bf16.mxu0 0
        %1920 = vmatmul.mubr.bf16.gmra.mrb[0].mxu0 %v1866
        %v1921 = vpop.f32.mrb[0].mxu0
        %v1922 = vadd.f32 0.0, %v1921
        %v1923 = vpop.f32.mrb[0].mxu0
        %v1924 = vpop.f32.mrb[0].mxu0
        %v1925 = vpop.f32.mrb[0].mxu0
        %1926 = vdwg.mxu0
        %v1927 = vadd.f32 %v1822, %v1906
        %v1928 = vadd.f32 %v1823, %v1909
        %v1929 = vadd.f32 %v1824, %v1914
        %v1930 = vadd.f32 %v1825, %v1917
        %v1931 = vadd.f32 %v1826, %v1922
        %v1932 = vld [vmem:[%s320 + $0x4] sm:$0x8]
        %s1933 = scalar_lea.vmem %s3, 34
        %v1934 = vld [vmem:[%s1933] sm:$0x3]
        %v1936 = vunpack.c.l.b16 %v1932
        %v1937 = vpack.c.b16 %v1741, %v1936
        %v1938 = vrot.slane %v1937, 3
        %v1939 = vrot.slane %v1747, 3
        %v1940 = vsel %vm614, %v1938, %v1939
        %v1941 = vrot.slane %v1832, 3
        %v1942 = vsel %vm614, %v1939, %v1941
        %v1944 = vsel %vm382, %v1940, 0
        %v1947 = vsel %vm382, %v1942, 0
        %v1950 = vsel %vm382, %v1941, 0
        %v1953 = vsel %vm392, %v1934, 0
        %1955 = vmatprep.subr.bf16.mxu0 0
        %1956 = vmatpush1.bf16.msra.mxu0 %v1953
        %1957 = vmatprep.subr.bf16.mxu0 0
        %1958 = vmatpush1.bf16.msra.mxu0 0
        %1959 = vmatprep.subr.bf16.mxu0 0
        %1960 = vmatpush1.bf16.msra.mxu0 0
        %1961 = vmatprep.subr.bf16.mxu0 0
        %1962 = vmatpush1.bf16.msra.mxu0 0
        %1963 = vmatprep.subr.bf16.mxu0 0
        %1964 = vmatpush1.bf16.msra.mxu0 0
        %1965 = vmatprep.subr.bf16.mxu0 0
        %1966 = vmatpush1.bf16.msra.mxu0 0
        %1967 = vmatprep.subr.bf16.mxu0 0
        %1968 = vmatpush1.bf16.msra.mxu0 0
        %1969 = vmatprep.subr.bf16.mxu0 0
        %1970 = vmatpush1.bf16.msra.mxu0 0
        %1971 = vmatprep.subr.bf16.mxu0 0
        %1972 = vmatpush1.bf16.msra.mxu0 0
        %1973 = vmatprep.subr.bf16.mxu0 0
        %1974 = vmatpush1.bf16.msra.mxu0 0
        %1975 = vmatprep.subr.bf16.mxu0 0
        %1976 = vmatpush1.bf16.msra.mxu0 0
        %1977 = vmatprep.subr.bf16.mxu0 0
        %1978 = vmatpush1.bf16.msra.mxu0 0
        %1979 = vmatprep.subr.bf16.mxu0 0
        %1980 = vmatpush1.bf16.msra.mxu0 0
        %1981 = vmatprep.subr.bf16.mxu0 0
        %1982 = vmatpush1.bf16.msra.mxu0 0
        %1983 = vmatprep.subr.bf16.mxu0 0
        %1984 = vmatpush1.bf16.msra.mxu0 0
        %1985 = vmatprep.subr.bf16.mxu0 0
        %1986 = vmatpush1.bf16.msra.mxu0 0
        %1987 = vmatprep.mubr.bf16.mxu0 0
        %1988 = vmatmul.mubr.bf16.gmra.mrb[0].mxu0 %v1944
        %v1989 = vpop.f32.mrb[0].mxu0
        %v1990 = vadd.f32 0.0, %v1989
        %v1991 = vpop.f32.mrb[0].mxu0
        %v1992 = vpop.f32.mrb[0].mxu0
        %v1993 = vadd.f32 0.0, %v1992
        %v1994 = vpop.f32.mrb[0].mxu0
        %1995 = vmatprep.mubr.bf16.mxu0 0
        %1996 = vmatmul.mubr.bf16.gmra.mrb[0].mxu0 %v1947
        %v1997 = vpop.f32.mrb[0].mxu0
        %v1998 = vadd.f32 0.0, %v1997
        %v1999 = vpop.f32.mrb[0].mxu0
        %v2000 = vpop.f32.mrb[0].mxu0
        %v2001 = vadd.f32 0.0, %v2000
        %v2002 = vpop.f32.mrb[0].mxu0
        %2003 = vmatprep.mubr.bf16.mxu0 0
        %2004 = vmatmul.mubr.bf16.gmra.mrb[0].mxu0 %v1950
        %v2005 = vpop.f32.mrb[0].mxu0
        %v2006 = vadd.f32 0.0, %v2005
        %v2007 = vpop.f32.mrb[0].mxu0
        %v2008 = vpop.f32.mrb[0].mxu0
        %v2009 = vpop.f32.mrb[0].mxu0
        %2010 = vdwg.mxu0
        %v2011 = vadd.f32 %v1927, %v1990
        %v2012 = vadd.f32 %v1928, %v1993
        %v2013 = vadd.f32 %v1929, %v1998
        %v2014 = vadd.f32 %v1930, %v2001
        %v2015 = vadd.f32 %v1931, %v2006
        %v2016 = vld [vmem:[%s331] sm:$0xf]
        %v2017 = vld [vmem:[%s331 + $0x4] sm:$0xf]
        %v2018 = vld [vmem:[%s331 + $0x8] sm:$0xf]
        %v2019 = vld [vmem:[%s331 + $0xc] sm:$0xf]
        %v2020 = vld [vmem:[%s331 + $0x10] sm:$0xf]
        %s2021 = scalar_lea.vmem %s3, 36
        %v2022 = vld [vmem:[%s2021] sm:$0x3]
        %v2028 = vunpack.c.l.b16 %v2016
        %v2029 = vunpack.c.l.b16 %v2017
        %v2030 = vunpack.c.l.b16 %v2018
        %v2031 = vunpack.c.l.b16 %v2019
        %v2032 = vunpack.c.l.b16 %v2020
        %v2033 = vpack.c.b16 %v2029, %v2028
        %v2034 = vpack.c.b16 %v2031, %v2030
        %v2035 = vpack.c.b16 %v2032, %v2032
        %v2037 = vsel %vm382, %v2033, 0
        %v2040 = vsel %vm382, %v2034, 0
        %v2043 = vsel %vm382, %v2035, 0
        %v2046 = vsel %vm392, %v2022, 0
        %2048 = vmatprep.subr.bf16.mxu0 0
        %2049 = vmatpush1.bf16.msra.mxu0 %v2046
        %2050 = vmatprep.subr.bf16.mxu0 0
        %2051 = vmatpush1.bf16.msra.mxu0 0
        %2052 = vmatprep.subr.bf16.mxu0 0
        %2053 = vmatpush1.bf16.msra.mxu0 0
        %2054 = vmatprep.subr.bf16.mxu0 0
        %2055 = vmatpush1.bf16.msra.mxu0 0
        %2056 = vmatprep.subr.bf16.mxu0 0
        %2057 = vmatpush1.bf16.msra.mxu0 0
        %2058 = vmatprep.subr.bf16.mxu0 0
        %2059 = vmatpush1.bf16.msra.mxu0 0
        %2060 = vmatprep.subr.bf16.mxu0 0
        %2061 = vmatpush1.bf16.msra.mxu0 0
        %2062 = vmatprep.subr.bf16.mxu0 0
        %2063 = vmatpush1.bf16.msra.mxu0 0
        %2064 = vmatprep.subr.bf16.mxu0 0
        %2065 = vmatpush1.bf16.msra.mxu0 0
        %2066 = vmatprep.subr.bf16.mxu0 0
        %2067 = vmatpush1.bf16.msra.mxu0 0
        %2068 = vmatprep.subr.bf16.mxu0 0
        %2069 = vmatpush1.bf16.msra.mxu0 0
        %2070 = vmatprep.subr.bf16.mxu0 0
        %2071 = vmatpush1.bf16.msra.mxu0 0
        %2072 = vmatprep.subr.bf16.mxu0 0
        %2073 = vmatpush1.bf16.msra.mxu0 0
        %2074 = vmatprep.subr.bf16.mxu0 0
        %2075 = vmatpush1.bf16.msra.mxu0 0
        %2076 = vmatprep.subr.bf16.mxu0 0
        %2077 = vmatpush1.bf16.msra.mxu0 0
        %2078 = vmatprep.subr.bf16.mxu0 0
        %2079 = vmatpush1.bf16.msra.mxu0 0
        %2080 = vmatprep.mubr.bf16.mxu0 0
        %2081 = vmatmul.mubr.bf16.gmra.mrb[0].mxu0 %v2037
        %v2082 = vpop.f32.mrb[0].mxu0
        %v2083 = vadd.f32 0.0, %v2082
        %v2084 = vpop.f32.mrb[0].mxu0
        %v2085 = vpop.f32.mrb[0].mxu0
        %v2086 = vadd.f32 0.0, %v2085
        %v2087 = vpop.f32.mrb[0].mxu0
        %2088 = vmatprep.mubr.bf16.mxu0 0
        %2089 = vmatmul.mubr.bf16.gmra.mrb[0].mxu0 %v2040
        %v2090 = vpop.f32.mrb[0].mxu0
        %v2091 = vadd.f32 0.0, %v2090
        %v2092 = vpop.f32.mrb[0].mxu0
        %v2093 = vpop.f32.mrb[0].mxu0
        %v2094 = vadd.f32 0.0, %v2093
        %v2095 = vpop.f32.mrb[0].mxu0
        %2096 = vmatprep.mubr.bf16.mxu0 0
        %2097 = vmatmul.mubr.bf16.gmra.mrb[0].mxu0 %v2043
        %v2098 = vpop.f32.mrb[0].mxu0
        %v2099 = vadd.f32 0.0, %v2098
        %v2100 = vpop.f32.mrb[0].mxu0
        %v2101 = vpop.f32.mrb[0].mxu0
        %v2102 = vpop.f32.mrb[0].mxu0
        %2103 = vdwg.mxu0
        %v2104 = vadd.f32 %v2011, %v2083
        %v2105 = vadd.f32 %v2012, %v2086
        %v2106 = vadd.f32 %v2013, %v2091
        %v2107 = vadd.f32 %v2014, %v2094
        %v2108 = vadd.f32 %v2015, %v2099
        %v2109 = vld [vmem:[%s331] sm:$0xf]
        %v2110 = vld [vmem:[%s331 + $0x4] sm:$0xf]
        %v2111 = vld [vmem:[%s331 + $0x8] sm:$0xf]
        %v2112 = vld [vmem:[%s331 + $0xc] sm:$0xf]
        %v2113 = vld [vmem:[%s331 + $0x10] sm:$0xf]
        %v2114 = vld [vmem:[%s331 + $0x14] sm:$0x1]
        %s2115 = scalar_lea.vmem %s3, 38
        %v2116 = vld [vmem:[%s2115] sm:$0x3]
        %v2123 = vunpack.c.l.b16 %v2109
        %v2124 = vunpack.c.l.b16 %v2110
        %v2125 = vunpack.c.l.b16 %v2111
        %v2126 = vunpack.c.l.b16 %v2112
        %v2127 = vunpack.c.l.b16 %v2113
        %v2128 = vunpack.c.l.b16 %v2114
        %v2129 = vpack.c.b16 %v2124, %v2123
        %v2130 = vpack.c.b16 %v2126, %v2125
        %v2131 = vpack.c.b16 %v2128, %v2127
        %v2133 = vshrl.u32 %v2129, 16
        %v2135 = vshll.u32 %v2129, 16
        %v2137 = vrot.slane %v2135, 1
        %v2138 = vor.u32 %v2133, %v2137
        %v2140 = vshll.u32 %v2130, 16
        %v2142 = vrot.slane %v2140, 1
        %v2143 = vsel %vm358, %v2138, %v2142
        %v2144 = vshrl.u32 %v2130, 16
        %v2146 = vor.u32 %v2144, %v2142
        %v2148 = vshll.u32 %v2131, 16
        %v2150 = vrot.slane %v2148, 1
        %v2151 = vsel %vm358, %v2146, %v2150
        %v2152 = vshrl.u32 %v2131, 16
        %v2154 = vor.u32 %v2152, %v2150
        %v2156 = vsel %vm382, %v2143, 0
        %v2159 = vsel %vm382, %v2151, 0
        %v2162 = vsel %vm382, %v2154, 0
        %v2165 = vsel %vm392, %v2116, 0
        %2167 = vmatprep.subr.bf16.mxu0 0
        %2168 = vmatpush1.bf16.msra.mxu0 %v2165
        %2169 = vmatprep.subr.bf16.mxu0 0
        %2170 = vmatpush1.bf16.msra.mxu0 0
        %2171 = vmatprep.subr.bf16.mxu0 0
        %2172 = vmatpush1.bf16.msra.mxu0 0
        %2173 = vmatprep.subr.bf16.mxu0 0
        %2174 = vmatpush1.bf16.msra.mxu0 0
        %2175 = vmatprep.subr.bf16.mxu0 0
        %2176 = vmatpush1.bf16.msra.mxu0 0
        %2177 = vmatprep.subr.bf16.mxu0 0
        %2178 = vmatpush1.bf16.msra.mxu0 0
        %2179 = vmatprep.subr.bf16.mxu0 0
        %2180 = vmatpush1.bf16.msra.mxu0 0
        %2181 = vmatprep.subr.bf16.mxu0 0
        %2182 = vmatpush1.bf16.msra.mxu0 0
        %2183 = vmatprep.subr.bf16.mxu0 0
        %2184 = vmatpush1.bf16.msra.mxu0 0
        %2185 = vmatprep.subr.bf16.mxu0 0
        %2186 = vmatpush1.bf16.msra.mxu0 0
        %2187 = vmatprep.subr.bf16.mxu0 0
        %2188 = vmatpush1.bf16.msra.mxu0 0
        %2189 = vmatprep.subr.bf16.mxu0 0
        %2190 = vmatpush1.bf16.msra.mxu0 0
        %2191 = vmatprep.subr.bf16.mxu0 0
        %2192 = vmatpush1.bf16.msra.mxu0 0
        %2193 = vmatprep.subr.bf16.mxu0 0
        %2194 = vmatpush1.bf16.msra.mxu0 0
        %2195 = vmatprep.subr.bf16.mxu0 0
        %2196 = vmatpush1.bf16.msra.mxu0 0
        %2197 = vmatprep.subr.bf16.mxu0 0
        %2198 = vmatpush1.bf16.msra.mxu0 0
        %2199 = vmatprep.mubr.bf16.mxu0 0
        %2200 = vmatmul.mubr.bf16.gmra.mrb[0].mxu0 %v2156
        %v2201 = vpop.f32.mrb[0].mxu0
        %v2202 = vadd.f32 0.0, %v2201
        %v2203 = vpop.f32.mrb[0].mxu0
        %v2204 = vpop.f32.mrb[0].mxu0
        %v2205 = vadd.f32 0.0, %v2204
        %v2206 = vpop.f32.mrb[0].mxu0
        %2207 = vmatprep.mubr.bf16.mxu0 0
        %2208 = vmatmul.mubr.bf16.gmra.mrb[0].mxu0 %v2159
        %v2209 = vpop.f32.mrb[0].mxu0
        %v2210 = vadd.f32 0.0, %v2209
        %v2211 = vpop.f32.mrb[0].mxu0
        %v2212 = vpop.f32.mrb[0].mxu0
        %v2213 = vadd.f32 0.0, %v2212
        %v2214 = vpop.f32.mrb[0].mxu0
        %2215 = vmatprep.mubr.bf16.mxu0 0
        %2216 = vmatmul.mubr.bf16.gmra.mrb[0].mxu0 %v2162
        %v2217 = vpop.f32.mrb[0].mxu0
        %v2218 = vadd.f32 0.0, %v2217
        %v2219 = vpop.f32.mrb[0].mxu0
        %v2220 = vpop.f32.mrb[0].mxu0
        %v2221 = vpop.f32.mrb[0].mxu0
        %2222 = vdwg.mxu0
        %v2223 = vadd.f32 %v2104, %v2202
        %v2224 = vadd.f32 %v2105, %v2205
        %v2225 = vadd.f32 %v2106, %v2210
        %v2226 = vadd.f32 %v2107, %v2213
        %v2227 = vadd.f32 %v2108, %v2218
        %v2228 = vld [vmem:[%s331] sm:$0xe]
        %s2229 = scalar_lea.vmem %s3, 40
        %v2230 = vld [vmem:[%s2229] sm:$0x3]
        %v2232 = vunpack.c.l.b16 %v2228
        %v2233 = vpack.c.b16 %v2124, %v2232
        %v2234 = vrot.slane %v2233, 1
        %v2235 = vrot.slane %v2130, 1
        %v2236 = vsel %vm525, %v2234, %v2235
        %v2237 = vrot.slane %v2131, 1
        %v2238 = vsel %vm525, %v2235, %v2237
        %v2240 = vsel %vm382, %v2236, 0
        %v2243 = vsel %vm382, %v2238, 0
        %v2246 = vsel %vm382, %v2237, 0
        %v2249 = vsel %vm392, %v2230, 0
        %2251 = vmatprep.subr.bf16.mxu0 0
        %2252 = vmatpush1.bf16.msra.mxu0 %v2249
        %2253 = vmatprep.subr.bf16.mxu0 0
        %2254 = vmatpush1.bf16.msra.mxu0 0
        %2255 = vmatprep.subr.bf16.mxu0 0
        %2256 = vmatpush1.bf16.msra.mxu0 0
        %2257 = vmatprep.subr.bf16.mxu0 0
        %2258 = vmatpush1.bf16.msra.mxu0 0
        %2259 = vmatprep.subr.bf16.mxu0 0
        %2260 = vmatpush1.bf16.msra.mxu0 0
        %2261 = vmatprep.subr.bf16.mxu0 0
        %2262 = vmatpush1.bf16.msra.mxu0 0
        %2263 = vmatprep.subr.bf16.mxu0 0
        %2264 = vmatpush1.bf16.msra.mxu0 0
        %2265 = vmatprep.subr.bf16.mxu0 0
        %2266 = vmatpush1.bf16.msra.mxu0 0
        %2267 = vmatprep.subr.bf16.mxu0 0
        %2268 = vmatpush1.bf16.msra.mxu0 0
        %2269 = vmatprep.subr.bf16.mxu0 0
        %2270 = vmatpush1.bf16.msra.mxu0 0
        %2271 = vmatprep.subr.bf16.mxu0 0
        %2272 = vmatpush1.bf16.msra.mxu0 0
        %2273 = vmatprep.subr.bf16.mxu0 0
        %2274 = vmatpush1.bf16.msra.mxu0 0
        %2275 = vmatprep.subr.bf16.mxu0 0
        %2276 = vmatpush1.bf16.msra.mxu0 0
        %2277 = vmatprep.subr.bf16.mxu0 0
        %2278 = vmatpush1.bf16.msra.mxu0 0
        %2279 = vmatprep.subr.bf16.mxu0 0
        %2280 = vmatpush1.bf16.msra.mxu0 0
        %2281 = vmatprep.subr.bf16.mxu0 0
        %2282 = vmatpush1.bf16.msra.mxu0 0
        %2283 = vmatprep.mubr.bf16.mxu0 0
        %2284 = vmatmul.mubr.bf16.gmra.mrb[0].mxu0 %v2240
        %v2285 = vpop.f32.mrb[0].mxu0
        %v2286 = vadd.f32 0.0, %v2285
        %v2287 = vpop.f32.mrb[0].mxu0
        %v2288 = vpop.f32.mrb[0].mxu0
        %v2289 = vadd.f32 0.0, %v2288
        %v2290 = vpop.f32.mrb[0].mxu0
        %2291 = vmatprep.mubr.bf16.mxu0 0
        %2292 = vmatmul.mubr.bf16.gmra.mrb[0].mxu0 %v2243
        %v2293 = vpop.f32.mrb[0].mxu0
        %v2294 = vadd.f32 0.0, %v2293
        %v2295 = vpop.f32.mrb[0].mxu0
        %v2296 = vpop.f32.mrb[0].mxu0
        %v2297 = vadd.f32 0.0, %v2296
        %v2298 = vpop.f32.mrb[0].mxu0
        %2299 = vmatprep.mubr.bf16.mxu0 0
        %2300 = vmatmul.mubr.bf16.gmra.mrb[0].mxu0 %v2246
        %v2301 = vpop.f32.mrb[0].mxu0
        %v2302 = vadd.f32 0.0, %v2301
        %v2303 = vpop.f32.mrb[0].mxu0
        %v2304 = vpop.f32.mrb[0].mxu0
        %v2305 = vpop.f32.mrb[0].mxu0
        %2306 = vdwg.mxu0
        %v2307 = vadd.f32 %v2223, %v2286
        %v2308 = vadd.f32 %v2224, %v2289
        %v2309 = vadd.f32 %v2225, %v2294
        %v2310 = vadd.f32 %v2226, %v2297
        %v2311 = vadd.f32 %v2227, %v2302
        %v2312 = vld [vmem:[%s331] sm:$0x8]
        %v2313 = vld [vmem:[%s331 + $0x14] sm:$0x7]
        %s2314 = scalar_lea.vmem %s3, 42
        %v2315 = vld [vmem:[%s2314] sm:$0x3]
        %v2318 = vunpack.c.l.b16 %v2312
        %v2319 = vunpack.c.l.b16 %v2313
        %v2320 = vpack.c.b16 %v2124, %v2318
        %v2321 = vpack.c.b16 %v2319, %v2127
        %v2322 = vrot.slane %v2320, 3
        %v2323 = vrot.slane %v2130, 3
        %v2324 = vsel %vm614, %v2322, %v2323
        %v2325 = vrot.slane %v2321, 3
        %v2326 = vsel %vm614, %v2323, %v2325
        %v2328 = vsel %vm382, %v2324, 0
        %v2331 = vsel %vm382, %v2326, 0
        %v2334 = vsel %vm382, %v2325, 0
        %v2337 = vsel %vm392, %v2315, 0
        %2339 = vmatprep.subr.bf16.mxu0 0
        %2340 = vmatpush1.bf16.msra.mxu0 %v2337
        %2341 = vmatprep.subr.bf16.mxu0 0
        %2342 = vmatpush1.bf16.msra.mxu0 0
        %2343 = vmatprep.subr.bf16.mxu0 0
        %2344 = vmatpush1.bf16.msra.mxu0 0
        %2345 = vmatprep.subr.bf16.mxu0 0
        %2346 = vmatpush1.bf16.msra.mxu0 0
        %2347 = vmatprep.subr.bf16.mxu0 0
        %2348 = vmatpush1.bf16.msra.mxu0 0
        %2349 = vmatprep.subr.bf16.mxu0 0
        %2350 = vmatpush1.bf16.msra.mxu0 0
        %2351 = vmatprep.subr.bf16.mxu0 0
        %2352 = vmatpush1.bf16.msra.mxu0 0
        %2353 = vmatprep.subr.bf16.mxu0 0
        %2354 = vmatpush1.bf16.msra.mxu0 0
        %2355 = vmatprep.subr.bf16.mxu0 0
        %2356 = vmatpush1.bf16.msra.mxu0 0
        %2357 = vmatprep.subr.bf16.mxu0 0
        %2358 = vmatpush1.bf16.msra.mxu0 0
        %2359 = vmatprep.subr.bf16.mxu0 0
        %2360 = vmatpush1.bf16.msra.mxu0 0
        %2361 = vmatprep.subr.bf16.mxu0 0
        %2362 = vmatpush1.bf16.msra.mxu0 0
        %2363 = vmatprep.subr.bf16.mxu0 0
        %2364 = vmatpush1.bf16.msra.mxu0 0
        %2365 = vmatprep.subr.bf16.mxu0 0
        %2366 = vmatpush1.bf16.msra.mxu0 0
        %2367 = vmatprep.subr.bf16.mxu0 0
        %2368 = vmatpush1.bf16.msra.mxu0 0
        %2369 = vmatprep.subr.bf16.mxu0 0
        %2370 = vmatpush1.bf16.msra.mxu0 0
        %2371 = vmatprep.mubr.bf16.mxu0 0
        %2372 = vmatmul.mubr.bf16.gmra.mrb[0].mxu0 %v2328
        %v2373 = vpop.f32.mrb[0].mxu0
        %v2374 = vadd.f32 0.0, %v2373
        %v2375 = vpop.f32.mrb[0].mxu0
        %v2376 = vpop.f32.mrb[0].mxu0
        %v2377 = vadd.f32 0.0, %v2376
        %v2378 = vpop.f32.mrb[0].mxu0
        %2379 = vmatprep.mubr.bf16.mxu0 0
        %2380 = vmatmul.mubr.bf16.gmra.mrb[0].mxu0 %v2331
        %v2381 = vpop.f32.mrb[0].mxu0
        %v2382 = vadd.f32 0.0, %v2381
        %v2383 = vpop.f32.mrb[0].mxu0
        %v2384 = vpop.f32.mrb[0].mxu0
        %v2385 = vadd.f32 0.0, %v2384
        %v2386 = vpop.f32.mrb[0].mxu0
        %2387 = vmatprep.mubr.bf16.mxu0 0
        %2388 = vmatmul.mubr.bf16.gmra.mrb[0].mxu0 %v2334
        %v2389 = vpop.f32.mrb[0].mxu0
        %v2390 = vadd.f32 0.0, %v2389
        %v2391 = vpop.f32.mrb[0].mxu0
        %v2392 = vpop.f32.mrb[0].mxu0
        %v2393 = vpop.f32.mrb[0].mxu0
        %2394 = vdwg.mxu0
        %v2395 = vadd.f32 %v2307, %v2374
        %v2396 = vadd.f32 %v2308, %v2377
        %v2397 = vadd.f32 %v2309, %v2382
        %v2398 = vadd.f32 %v2310, %v2385
        %v2399 = vadd.f32 %v2311, %v2390
        %v2400 = vld [vmem:[%s331 + $0x14] sm:$0xf]
        %s2401 = scalar_lea.vmem %s3, 44
        %v2402 = vld [vmem:[%s2401] sm:$0x3]
        %v2404 = vunpack.c.l.b16 %v2400
        %v2405 = vpack.c.b16 %v2404, %v2127
        %v2407 = vshrl.u32 %v2320, 16
        %v2409 = vrot.slane %v2407, 3
        %v2410 = vshll.u32 %v2320, 16
        %v2412 = vrot.slane %v2410, 4
        %v2413 = vor.u32 %v2409, %v2412
        %v2414 = vrot.slane %v2144, 3
        %v2415 = vrot.slane %v2140, 4
        %v2416 = vor.u32 %v2414, %v2415
        %v2417 = vsel %vm699, %v2413, %v2416
        %v2419 = vshrl.u32 %v2405, 16
        %v2421 = vrot.slane %v2419, 3
        %v2422 = vshll.u32 %v2405, 16
        %v2424 = vrot.slane %v2422, 4
        %v2425 = vor.u32 %v2421, %v2424
        %v2426 = vsel %vm699, %v2416, %v2425
        %v2428 = vsel %vm382, %v2417, 0
        %v2431 = vsel %vm382, %v2426, 0
        %v2434 = vsel %vm382, %v2425, 0
        %v2437 = vsel %vm392, %v2402, 0
        %2439 = vmatprep.subr.bf16.mxu0 0
        %2440 = vmatpush1.bf16.msra.mxu0 %v2437
        %2441 = vmatprep.subr.bf16.mxu0 0
        %2442 = vmatpush1.bf16.msra.mxu0 0
        %2443 = vmatprep.subr.bf16.mxu0 0
        %2444 = vmatpush1.bf16.msra.mxu0 0
        %2445 = vmatprep.subr.bf16.mxu0 0
        %2446 = vmatpush1.bf16.msra.mxu0 0
        %2447 = vmatprep.subr.bf16.mxu0 0
        %2448 = vmatpush1.bf16.msra.mxu0 0
        %2449 = vmatprep.subr.bf16.mxu0 0
        %2450 = vmatpush1.bf16.msra.mxu0 0
        %2451 = vmatprep.subr.bf16.mxu0 0
        %2452 = vmatpush1.bf16.msra.mxu0 0
        %2453 = vmatprep.subr.bf16.mxu0 0
        %2454 = vmatpush1.bf16.msra.mxu0 0
        %2455 = vmatprep.subr.bf16.mxu0 0
        %2456 = vmatpush1.bf16.msra.mxu0 0
        %2457 = vmatprep.subr.bf16.mxu0 0
        %2458 = vmatpush1.bf16.msra.mxu0 0
        %2459 = vmatprep.subr.bf16.mxu0 0
        %2460 = vmatpush1.bf16.msra.mxu0 0
        %2461 = vmatprep.subr.bf16.mxu0 0
        %2462 = vmatpush1.bf16.msra.mxu0 0
        %2463 = vmatprep.subr.bf16.mxu0 0
        %2464 = vmatpush1.bf16.msra.mxu0 0
        %2465 = vmatprep.subr.bf16.mxu0 0
        %2466 = vmatpush1.bf16.msra.mxu0 0
        %2467 = vmatprep.subr.bf16.mxu0 0
        %2468 = vmatpush1.bf16.msra.mxu0 0
        %2469 = vmatprep.subr.bf16.mxu0 0
        %2470 = vmatpush1.bf16.msra.mxu0 0
        %2471 = vmatprep.mubr.bf16.mxu0 0
        %2472 = vmatmul.mubr.bf16.gmra.mrb[0].mxu0 %v2428
        %v2473 = vpop.f32.mrb[0].mxu0
        %v2474 = vadd.f32 0.0, %v2473
        %v2475 = vpop.f32.mrb[0].mxu0
        %v2476 = vpop.f32.mrb[0].mxu0
        %v2477 = vadd.f32 0.0, %v2476
        %v2478 = vpop.f32.mrb[0].mxu0
        %2479 = vmatprep.mubr.bf16.mxu0 0
        %2480 = vmatmul.mubr.bf16.gmra.mrb[0].mxu0 %v2431
        %v2481 = vpop.f32.mrb[0].mxu0
        %v2482 = vadd.f32 0.0, %v2481
        %v2483 = vpop.f32.mrb[0].mxu0
        %v2484 = vpop.f32.mrb[0].mxu0
        %v2485 = vadd.f32 0.0, %v2484
        %v2486 = vpop.f32.mrb[0].mxu0
        %2487 = vmatprep.mubr.bf16.mxu0 0
        %2488 = vmatmul.mubr.bf16.gmra.mrb[0].mxu0 %v2434
        %v2489 = vpop.f32.mrb[0].mxu0
        %v2490 = vadd.f32 0.0, %v2489
        %v2491 = vpop.f32.mrb[0].mxu0
        %v2492 = vpop.f32.mrb[0].mxu0
        %v2493 = vpop.f32.mrb[0].mxu0
        %2494 = vdwg.mxu0
        %v2495 = vadd.f32 %v2395, %v2474
        %v2496 = vadd.f32 %v2396, %v2477
        %v2497 = vadd.f32 %v2397, %v2482
        %v2498 = vadd.f32 %v2398, %v2485
        %v2499 = vadd.f32 %v2399, %v2490
        %s2500 = scalar_lea.vmem %s3, 46
        %v2501 = vld [vmem:[%s2500] sm:$0x3]
        %v2502 = vpack.c.b16 %v2125, %v2124
        %v2503 = vpack.c.b16 %v2127, %v2126
        %v2504 = vpack.c.b16 %v2404, %v2404
        %v2506 = vsel %vm382, %v2502, 0
        %v2509 = vsel %vm382, %v2503, 0
        %v2512 = vsel %vm382, %v2504, 0
        %v2515 = vsel %vm392, %v2501, 0
        %2517 = vmatprep.subr.bf16.mxu0 0
        %2518 = vmatpush1.bf16.msra.mxu0 %v2515
        %2519 = vmatprep.subr.bf16.mxu0 0
        %2520 = vmatpush1.bf16.msra.mxu0 0
        %2521 = vmatprep.subr.bf16.mxu0 0
        %2522 = vmatpush1.bf16.msra.mxu0 0
        %2523 = vmatprep.subr.bf16.mxu0 0
        %2524 = vmatpush1.bf16.msra.mxu0 0
        %2525 = vmatprep.subr.bf16.mxu0 0
        %2526 = vmatpush1.bf16.msra.mxu0 0
        %2527 = vmatprep.subr.bf16.mxu0 0
        %2528 = vmatpush1.bf16.msra.mxu0 0
        %2529 = vmatprep.subr.bf16.mxu0 0
        %2530 = vmatpush1.bf16.msra.mxu0 0
        %2531 = vmatprep.subr.bf16.mxu0 0
        %2532 = vmatpush1.bf16.msra.mxu0 0
        %2533 = vmatprep.subr.bf16.mxu0 0
        %2534 = vmatpush1.bf16.msra.mxu0 0
        %2535 = vmatprep.subr.bf16.mxu0 0
        %2536 = vmatpush1.bf16.msra.mxu0 0
        %2537 = vmatprep.subr.bf16.mxu0 0
        %2538 = vmatpush1.bf16.msra.mxu0 0
        %2539 = vmatprep.subr.bf16.mxu0 0
        %2540 = vmatpush1.bf16.msra.mxu0 0
        %2541 = vmatprep.subr.bf16.mxu0 0
        %2542 = vmatpush1.bf16.msra.mxu0 0
        %2543 = vmatprep.subr.bf16.mxu0 0
        %2544 = vmatpush1.bf16.msra.mxu0 0
        %2545 = vmatprep.subr.bf16.mxu0 0
        %2546 = vmatpush1.bf16.msra.mxu0 0
        %2547 = vmatprep.subr.bf16.mxu0 0
        %2548 = vmatpush1.bf16.msra.mxu0 0
        %2549 = vmatprep.mubr.bf16.mxu0 0
        %2550 = vmatmul.mubr.bf16.gmra.mrb[0].mxu0 %v2506
        %v2551 = vpop.f32.mrb[0].mxu0
        %v2552 = vadd.f32 0.0, %v2551
        %v2553 = vpop.f32.mrb[0].mxu0
        %v2554 = vpop.f32.mrb[0].mxu0
        %v2555 = vadd.f32 0.0, %v2554
        %v2556 = vpop.f32.mrb[0].mxu0
        %2557 = vmatprep.mubr.bf16.mxu0 0
        %2558 = vmatmul.mubr.bf16.gmra.mrb[0].mxu0 %v2509
        %v2559 = vpop.f32.mrb[0].mxu0
        %v2560 = vadd.f32 0.0, %v2559
        %v2561 = vpop.f32.mrb[0].mxu0
        %v2562 = vpop.f32.mrb[0].mxu0
        %v2563 = vadd.f32 0.0, %v2562
        %v2564 = vpop.f32.mrb[0].mxu0
        %2565 = vmatprep.mubr.bf16.mxu0 0
        %2566 = vmatmul.mubr.bf16.gmra.mrb[0].mxu0 %v2512
        %v2567 = vpop.f32.mrb[0].mxu0
        %v2568 = vadd.f32 0.0, %v2567
        %v2569 = vpop.f32.mrb[0].mxu0
        %v2570 = vpop.f32.mrb[0].mxu0
        %v2571 = vpop.f32.mrb[0].mxu0
        %2572 = vdwg.mxu0
        %v2573 = vadd.f32 %v2495, %v2552
        %v2574 = vadd.f32 %v2496, %v2555
        %v2575 = vadd.f32 %v2497, %v2560
        %v2576 = vadd.f32 %v2498, %v2563
        %v2577 = vadd.f32 %v2499, %v2568
        %v2578 = vld [vmem:[%s331 + $0x4] sm:$0xc]
        %v2579 = vld [vmem:[%s331 + $0x8] sm:$0xf]
        %v2580 = vld [vmem:[%s331 + $0xc] sm:$0xf]
        %v2581 = vld [vmem:[%s331 + $0x10] sm:$0xf]
        %v2582 = vld [vmem:[%s331 + $0x14] sm:$0xf]
        %v2583 = vld [vmem:[%s331 + $0x18] sm:$0x3]
        %s2584 = scalar_lea.vmem %s3, 48
        %v2585 = vld [vmem:[%s2584] sm:$0x3]
        %v2592 = vunpack.c.l.b16 %v2578
        %v2593 = vunpack.c.l.b16 %v2579
        %v2594 = vunpack.c.l.b16 %v2580
        %v2595 = vunpack.c.l.b16 %v2581
        %v2596 = vunpack.c.l.b16 %v2582
        %v2597 = vunpack.c.l.b16 %v2583
        %v2598 = vpack.c.b16 %v2593, %v2592
        %v2599 = vpack.c.b16 %v2595, %v2594
        %v2600 = vpack.c.b16 %v2597, %v2596
        %v2601 = vrot.slane %v2598, 2
        %v2602 = vrot.slane %v2599, 2
        %v2603 = vsel %vm895, %v2601, %v2602
        %v2604 = vrot.slane %v2600, 2
        %v2605 = vsel %vm895, %v2602, %v2604
        %v2607 = vsel %vm382, %v2603, 0
        %v2610 = vsel %vm382, %v2605, 0
        %v2613 = vsel %vm382, %v2604, 0
        %v2616 = vsel %vm392, %v2585, 0
        %2618 = vmatprep.subr.bf16.mxu0 0
        %2619 = vmatpush1.bf16.msra.mxu0 %v2616
        %2620 = vmatprep.subr.bf16.mxu0 0
        %2621 = vmatpush1.bf16.msra.mxu0 0
        %2622 = vmatprep.subr.bf16.mxu0 0
        %2623 = vmatpush1.bf16.msra.mxu0 0
        %2624 = vmatprep.subr.bf16.mxu0 0
        %2625 = vmatpush1.bf16.msra.mxu0 0
        %2626 = vmatprep.subr.bf16.mxu0 0
        %2627 = vmatpush1.bf16.msra.mxu0 0
        %2628 = vmatprep.subr.bf16.mxu0 0
        %2629 = vmatpush1.bf16.msra.mxu0 0
        %2630 = vmatprep.subr.bf16.mxu0 0
        %2631 = vmatpush1.bf16.msra.mxu0 0
        %2632 = vmatprep.subr.bf16.mxu0 0
        %2633 = vmatpush1.bf16.msra.mxu0 0
        %2634 = vmatprep.subr.bf16.mxu0 0
        %2635 = vmatpush1.bf16.msra.mxu0 0
        %2636 = vmatprep.subr.bf16.mxu0 0
        %2637 = vmatpush1.bf16.msra.mxu0 0
        %2638 = vmatprep.subr.bf16.mxu0 0
        %2639 = vmatpush1.bf16.msra.mxu0 0
        %2640 = vmatprep.subr.bf16.mxu0 0
        %2641 = vmatpush1.bf16.msra.mxu0 0
        %2642 = vmatprep.subr.bf16.mxu0 0
        %2643 = vmatpush1.bf16.msra.mxu0 0
        %2644 = vmatprep.subr.bf16.mxu0 0
        %2645 = vmatpush1.bf16.msra.mxu0 0
        %2646 = vmatprep.subr.bf16.mxu0 0
        %2647 = vmatpush1.bf16.msra.mxu0 0
        %2648 = vmatprep.subr.bf16.mxu0 0
        %2649 = vmatpush1.bf16.msra.mxu0 0
        %2650 = vmatprep.mubr.bf16.mxu0 0
        %2651 = vmatmul.mubr.bf16.gmra.mrb[0].mxu0 %v2607
        %v2652 = vpop.f32.mrb[0].mxu0
        %v2653 = vadd.f32 0.0, %v2652
        %v2654 = vpop.f32.mrb[0].mxu0
        %v2655 = vpop.f32.mrb[0].mxu0
        %v2656 = vadd.f32 0.0, %v2655
        %v2657 = vpop.f32.mrb[0].mxu0
        %2658 = vmatprep.mubr.bf16.mxu0 0
        %2659 = vmatmul.mubr.bf16.gmra.mrb[0].mxu0 %v2610
        %v2660 = vpop.f32.mrb[0].mxu0
        %v2661 = vadd.f32 0.0, %v2660
        %v2662 = vpop.f32.mrb[0].mxu0
        %v2663 = vpop.f32.mrb[0].mxu0
        %v2664 = vadd.f32 0.0, %v2663
        %v2665 = vpop.f32.mrb[0].mxu0
        %2666 = vmatprep.mubr.bf16.mxu0 0
        %2667 = vmatmul.mubr.bf16.gmra.mrb[0].mxu0 %v2613
        %v2668 = vpop.f32.mrb[0].mxu0
        %v2669 = vadd.f32 0.0, %v2668
        %v2670 = vpop.f32.mrb[0].mxu0
        %v2671 = vpop.f32.mrb[0].mxu0
        %v2672 = vpop.f32.mrb[0].mxu0
        %2673 = vdwg.mxu0
        %v2674 = vadd.f32 %v2573, %v2653
        %v2675 = vadd.f32 %v2574, %v2656
        %v2676 = vadd.f32 %v2575, %v2661
        %v2677 = vadd.f32 %v2576, %v2664
        %v2678 = vadd.f32 %v2577, %v2669
        %v2679 = vld [vmem:[%s331 + $0x18] sm:$0x7]
        %s2680 = scalar_lea.vmem %s3, 50
        %v2681 = vld [vmem:[%s2680] sm:$0x3]
        %v2683 = vunpack.c.l.b16 %v2679
        %v2684 = vpack.c.b16 %v2683, %v2596
        %v2686 = vshrl.u32 %v2598, 16
        %v2688 = vrot.slane %v2686, 2
        %v2689 = vshll.u32 %v2598, 16
        %v2691 = vrot.slane %v2689, 3
        %v2692 = vor.u32 %v2688, %v2691
        %v2694 = vshrl.u32 %v2599, 16
        %v2696 = vrot.slane %v2694, 2
        %v2697 = vshll.u32 %v2599, 16
        %v2699 = vrot.slane %v2697, 3
        %v2700 = vor.u32 %v2696, %v2699
        %v2701 = vsel %vm980, %v2692, %v2700
        %v2703 = vshrl.u32 %v2684, 16
        %v2705 = vrot.slane %v2703, 2
        %v2706 = vshll.u32 %v2684, 16
        %v2708 = vrot.slane %v2706, 3
        %v2709 = vor.u32 %v2705, %v2708
        %v2710 = vsel %vm980, %v2700, %v2709
        %v2712 = vsel %vm382, %v2701, 0
        %v2715 = vsel %vm382, %v2710, 0
        %v2718 = vsel %vm382, %v2709, 0
        %v2721 = vsel %vm392, %v2681, 0
        %2723 = vmatprep.subr.bf16.mxu0 0
        %2724 = vmatpush1.bf16.msra.mxu0 %v2721
        %2725 = vmatprep.subr.bf16.mxu0 0
        %2726 = vmatpush1.bf16.msra.mxu0 0
        %2727 = vmatprep.subr.bf16.mxu0 0
        %2728 = vmatpush1.bf16.msra.mxu0 0
        %2729 = vmatprep.subr.bf16.mxu0 0
        %2730 = vmatpush1.bf16.msra.mxu0 0
        %2731 = vmatprep.subr.bf16.mxu0 0
        %2732 = vmatpush1.bf16.msra.mxu0 0
        %2733 = vmatprep.subr.bf16.mxu0 0
        %2734 = vmatpush1.bf16.msra.mxu0 0
        %2735 = vmatprep.subr.bf16.mxu0 0
        %2736 = vmatpush1.bf16.msra.mxu0 0
        %2737 = vmatprep.subr.bf16.mxu0 0
        %2738 = vmatpush1.bf16.msra.mxu0 0
        %2739 = vmatprep.subr.bf16.mxu0 0
        %2740 = vmatpush1.bf16.msra.mxu0 0
        %2741 = vmatprep.subr.bf16.mxu0 0
        %2742 = vmatpush1.bf16.msra.mxu0 0
        %2743 = vmatprep.subr.bf16.mxu0 0
        %2744 = vmatpush1.bf16.msra.mxu0 0
        %2745 = vmatprep.subr.bf16.mxu0 0
        %2746 = vmatpush1.bf16.msra.mxu0 0
        %2747 = vmatprep.subr.bf16.mxu0 0
        %2748 = vmatpush1.bf16.msra.mxu0 0
        %2749 = vmatprep.subr.bf16.mxu0 0
        %2750 = vmatpush1.bf16.msra.mxu0 0
        %2751 = vmatprep.subr.bf16.mxu0 0
        %2752 = vmatpush1.bf16.msra.mxu0 0
        %2753 = vmatprep.subr.bf16.mxu0 0
        %2754 = vmatpush1.bf16.msra.mxu0 0
        %2755 = vmatprep.mubr.bf16.mxu0 0
        %2756 = vmatmul.mubr.bf16.gmra.mrb[0].mxu0 %v2712
        %v2757 = vpop.f32.mrb[0].mxu0
        %v2758 = vadd.f32 0.0, %v2757
        %v2759 = vpop.f32.mrb[0].mxu0
        %v2760 = vpop.f32.mrb[0].mxu0
        %v2761 = vadd.f32 0.0, %v2760
        %v2762 = vpop.f32.mrb[0].mxu0
        %2763 = vmatprep.mubr.bf16.mxu0 0
        %2764 = vmatmul.mubr.bf16.gmra.mrb[0].mxu0 %v2715
        %v2765 = vpop.f32.mrb[0].mxu0
        %v2766 = vadd.f32 0.0, %v2765
        %v2767 = vpop.f32.mrb[0].mxu0
        %v2768 = vpop.f32.mrb[0].mxu0
        %v2769 = vadd.f32 0.0, %v2768
        %v2770 = vpop.f32.mrb[0].mxu0
        %2771 = vmatprep.mubr.bf16.mxu0 0
        %2772 = vmatmul.mubr.bf16.gmra.mrb[0].mxu0 %v2718
        %v2773 = vpop.f32.mrb[0].mxu0
        %v2774 = vadd.f32 0.0, %v2773
        %v2775 = vpop.f32.mrb[0].mxu0
        %v2776 = vpop.f32.mrb[0].mxu0
        %v2777 = vpop.f32.mrb[0].mxu0
        %2778 = vdwg.mxu0
        %v2779 = vadd.f32 %v2674, %v2758
        %v2780 = vadd.f32 %v2675, %v2761
        %v2781 = vadd.f32 %v2676, %v2766
        %v2782 = vadd.f32 %v2677, %v2769
        %v2783 = vadd.f32 %v2678, %v2774
        %v2784 = vld [vmem:[%s331 + $0x4] sm:$0x8]
        %s2785 = scalar_lea.vmem %s3, 52
        %v2786 = vld [vmem:[%s2785] sm:$0x3]
        %v2788 = vunpack.c.l.b16 %v2784
        %v2789 = vpack.c.b16 %v2593, %v2788
        %v2790 = vrot.slane %v2789, 3
        %v2791 = vrot.slane %v2599, 3
        %v2792 = vsel %vm614, %v2790, %v2791
        %v2793 = vrot.slane %v2684, 3
        %v2794 = vsel %vm614, %v2791, %v2793
        %v2796 = vsel %vm382, %v2792, 0
        %v2799 = vsel %vm382, %v2794, 0
        %v2802 = vsel %vm382, %v2793, 0
        %v2805 = vsel %vm392, %v2786, 0
        %2807 = vmatprep.subr.bf16.mxu0 0
        %2808 = vmatpush1.bf16.msra.mxu0 %v2805
        %2809 = vmatprep.subr.bf16.mxu0 0
        %2810 = vmatpush1.bf16.msra.mxu0 0
        %2811 = vmatprep.subr.bf16.mxu0 0
        %2812 = vmatpush1.bf16.msra.mxu0 0
        %2813 = vmatprep.subr.bf16.mxu0 0
        %2814 = vmatpush1.bf16.msra.mxu0 0
        %2815 = vmatprep.subr.bf16.mxu0 0
        %2816 = vmatpush1.bf16.msra.mxu0 0
        %2817 = vmatprep.subr.bf16.mxu0 0
        %2818 = vmatpush1.bf16.msra.mxu0 0
        %2819 = vmatprep.subr.bf16.mxu0 0
        %2820 = vmatpush1.bf16.msra.mxu0 0
        %2821 = vmatprep.subr.bf16.mxu0 0
        %2822 = vmatpush1.bf16.msra.mxu0 0
        %2823 = vmatprep.subr.bf16.mxu0 0
        %2824 = vmatpush1.bf16.msra.mxu0 0
        %2825 = vmatprep.subr.bf16.mxu0 0
        %2826 = vmatpush1.bf16.msra.mxu0 0
        %2827 = vmatprep.subr.bf16.mxu0 0
        %2828 = vmatpush1.bf16.msra.mxu0 0
        %2829 = vmatprep.subr.bf16.mxu0 0
        %2830 = vmatpush1.bf16.msra.mxu0 0
        %2831 = vmatprep.subr.bf16.mxu0 0
        %2832 = vmatpush1.bf16.msra.mxu0 0
        %2833 = vmatprep.subr.bf16.mxu0 0
        %2834 = vmatpush1.bf16.msra.mxu0 0
        %2835 = vmatprep.subr.bf16.mxu0 0
        %2836 = vmatpush1.bf16.msra.mxu0 0
        %2837 = vmatprep.subr.bf16.mxu0 0
        %2838 = vmatpush1.bf16.msra.mxu0 0
        %2839 = vmatprep.mubr.bf16.mxu0 0
        %2840 = vmatmul.mubr.bf16.gmra.mrb[0].mxu0 %v2796
        %v2841 = vpop.f32.mrb[0].mxu0
        %v2842 = vadd.f32 0.0, %v2841
        %v2843 = vpop.f32.mrb[0].mxu0
        %v2844 = vpop.f32.mrb[0].mxu0
        %v2845 = vadd.f32 0.0, %v2844
        %v2846 = vpop.f32.mrb[0].mxu0
        %2847 = vmatprep.mubr.bf16.mxu0 0
        %2848 = vmatmul.mubr.bf16.gmra.mrb[0].mxu0 %v2799
        %v2849 = vpop.f32.mrb[0].mxu0
        %v2850 = vadd.f32 0.0, %v2849
        %v2851 = vpop.f32.mrb[0].mxu0
        %v2852 = vpop.f32.mrb[0].mxu0
        %v2853 = vadd.f32 0.0, %v2852
        %v2854 = vpop.f32.mrb[0].mxu0
        %2855 = vmatprep.mubr.bf16.mxu0 0
        %2856 = vmatmul.mubr.bf16.gmra.mrb[0].mxu0 %v2802
        %v2857 = vpop.f32.mrb[0].mxu0
        %v2858 = vadd.f32 0.0, %v2857
        %v2859 = vpop.f32.mrb[0].mxu0
        %v2860 = vpop.f32.mrb[0].mxu0
        %v2861 = vpop.f32.mrb[0].mxu0
        %2862 = vdwg.mxu0
        %v2863 = vadd.f32 %v2779, %v2842
        %v2864 = vadd.f32 %v2780, %v2845
        %v2865 = vadd.f32 %v2781, %v2850
        %v2866 = vadd.f32 %v2782, %v2853
        %v2867 = vadd.f32 %v2783, %v2858
        %v2868 = vld [vmem:[%s4] sm:$0x1]
        %v2870 = vlaneseq
        %v2871 = vshrl.u32 %v2870, 7
        %v2872 = vsub.s32 0, %v2871
        %v2873 = vrot.slane %v2868, %v2872
        %v2875 = vadd.f32 %v2863, %v2873
        %v2876 = vadd.f32 %v2864, %v2873
        %v2877 = vadd.f32 %v2865, %v2873
        %v2878 = vadd.f32 %v2866, %v2873
        %v2879 = vadd.f32 %v2867, %v2873
        %v2880 = vmin.f32 %v2875, 0.0
        %v2881 = vmin.f32 %v2876, 0.0
        %v2882 = vmin.f32 %v2877, 0.0
        %v2883 = vmin.f32 %v2878, 0.0
        %v2884 = vmin.f32 %v2879, 0.0
        %v2885 = vmul.f32 %v2880, 1.442695
        %v2886 = vpow.pop %v2885
        %v2887 = vmul.f32 %v2881, 1.442695
        %v2888 = vpow.pop %v2887
        %v2889 = vmul.f32 %v2882, 1.442695
        %v2890 = vpow.pop %v2889
        %v2891 = vmul.f32 %v2883, 1.442695
        %v2892 = vpow.pop %v2891
        %v2893 = vmul.f32 %v2884, 1.442695
        %v2894 = vpow.pop %v2893
        %v2895 = vsub.f32 %v2886, 1.0
        %v2896 = vsub.f32 %v2888, 1.0
        %v2897 = vsub.f32 %v2890, 1.0
        %v2898 = vsub.f32 %v2892, 1.0
        %v2899 = vsub.f32 %v2894, 1.0
        %v2900 = vmul.f32 %v2895, 1.6732632
        %v2901 = vmul.f32 %v2896, 1.6732632
        %v2902 = vmul.f32 %v2897, 1.6732632
        %v2903 = vmul.f32 %v2898, 1.6732632
        %v2904 = vmul.f32 %v2899, 1.6732632
        %vm2905 = vcmp.gt.f32.partialorder %v2875, 0.0
        %vm2906 = vcmp.gt.f32.partialorder %v2876, 0.0
        %vm2907 = vcmp.gt.f32.partialorder %v2877, 0.0
        %vm2908 = vcmp.gt.f32.partialorder %v2878, 0.0
        %vm2909 = vcmp.gt.f32.partialorder %v2879, 0.0
        %v2910 = vsel %vm2905, %v2875, %v2900
        %v2911 = vsel %vm2906, %v2876, %v2901
        %v2912 = vsel %vm2907, %v2877, %v2902
        %v2913 = vsel %vm2908, %v2878, %v2903
        %v2914 = vsel %vm2909, %v2879, %v2904
        %v2915 = vmul.f32 %v2910, 1.050701
        %v2916 = vmul.f32 %v2911, 1.050701
        %v2917 = vmul.f32 %v2912, 1.050701
        %v2918 = vmul.f32 %v2913, 1.050701
        %v2919 = vmul.f32 %v2914, 1.050701
        %2920 = vst [vmem:[%s301] sm:$0xff] %v2915
        %2921 = vst [vmem:[%s301 + $0x8] sm:$0xff] %v2916
        %2922 = vst [vmem:[%s301 + $0x10] sm:$0xff] %v2917
        %2923 = vst [vmem:[%s301 + $0x18] sm:$0xff] %v2918
        %2924 = vst [vmem:[%s301 + $0x20] sm:$0xff] %v2919
        %s2925 = sand.u32 %s171, 1
        %s2926 = scalar_lea.sflag [#allocation3], %s2925
        %s2927 = sand.u32 %s171, 1
        %s2928 = smul.addr %s2927, 40
        %s2929 = scalar_lea.vmem [#allocation2], %s2928
        // Predicated region
        $region41: #{tpu_custom_call.1} parent=39 // pred_check
          %p2930 = pneg %p181
        $region42: #{tpu_custom_call.1} parent=39 // pred_check_branch
          %2932 = sbr.rel (%p2930) target = $region44
        $region43: #{tpu_custom_call.1} parent=39 // pred_region
          %s2934 = ssub.s32 640, 640
          %2935 = vsyncadd %s2926, %s2934
          %s2936 = smul.addr %s24, 5
          %s2937 = smul.addr %s23, 20
          %s2938 = sadd.s32 %s2936, %s2937
          %s2939 = smul.addr %s2938, 128
          %s2940 = scalar_lea.hbm %s5, %s2939
          %s2941 = sshll.u32 %s2929, 4
          %s2942 = int_to_ptr.vmem [resolvable:$true] %s2941
          %2947 = dma.vmem_to_hbm [thread:$0]  %s2942, 640, %s2940, %s2926, 128, 128, 8
        $region44: #{tpu_custom_call.1} parent=39 // pred_fallthru
          _
      $region40: #{tpu_custom_call.1} parent=5 // pred_fallthru
        _
      %p2948 = scmp.le.s32.totalorder 2, %s14
      // Predicated region
      $region45: #{tpu_custom_call.1} parent=5 // pred_check
        %p2949 = pneg %p2948
      $region46: #{tpu_custom_call.1} parent=5 // pred_check_branch
        %2951 = sbr.rel (%p2949) target = $region48
      $region47: #{tpu_custom_call.1} parent=5 // pred_region
        %s2952 = ssub.s32 %s14, 2
        // Predicated region
        $region49: #{tpu_custom_call.1} parent=47 // pred_check
          %p2953 = pneg %p187
        $region50: #{tpu_custom_call.1} parent=47 // pred_check_branch
          %2955 = sbr.rel (%p2953) target = $region52
        $region51: #{tpu_custom_call.1} parent=47 // pred_region
          %s2956 = sand.u32 %s172, 1
          %s2957 = scalar_lea.sflag [#allocation3], %s2956
          %s2958 = sand.u32 %s172, 1
          %s2959 = smul.addr %s2958, 40
          %s2960 = scalar_lea.vmem [#allocation2], %s2959
          %2961 = dma.done %s2957, 640
        $region52: #{tpu_custom_call.1} parent=47 // pred_fallthru
          _
      $region48: #{tpu_custom_call.1} parent=5 // pred_fallthru
        _
    $region6: #{tpu_custom_call.1} parent=1 // loop_footer
      %s18 = sadd.s32 1, %s14
    $region7: #{tpu_custom_call.1} parent=1 // loop_footer_branch
      %13 = sbr.rel target = $region3
    $region8: #{tpu_custom_call.1} parent=1 // loop_exit
      _
    %2962 = vsyncpa [#allocation3], 1
    %s2963 = scalar_lea.sflag [#allocation3], 1
    %2964 = vsyncpa %s2963, 1

</llo_original>
